<compile_context>
chip_gen: v7x
topology: tpu7x:2x2x1
jax: 0.10.0
libtpu: 0.0.40
codegen_flags: <defaults>
</compile_context>

<pallas_src>
import functools

import jax
import jax.numpy as jnp
from jax.experimental import pallas as pl
from jax.experimental.pallas import tpu as pltpu


_VMEM_LIMIT_BYTES = 48 * 1024 * 1024   # scoped VMEM limit; < 64 MiB so legal on v7x too
_TILE_BUDGET_BYTES = 4 * 1024 * 1024   # per-block target (double buffering leaves headroom)


# ---------------------------------------------------------------------------
# helpers
# ---------------------------------------------------------------------------
def _round_up(x, m):
    return (x + m - 1) // m * m


def _pick_row_tile(n_rows, bytes_per_row, multiple=1, budget=_TILE_BUDGET_BYTES):
    """Largest divisor of n_rows (multiple of `multiple`) under the VMEM budget."""
    divisors = [t for t in range(multiple, n_rows + 1, multiple) if n_rows % t == 0]
    if not divisors:
        return n_rows
    fitting = [t for t in divisors if t * bytes_per_row <= budget]
    return max(fitting) if fitting else min(divisors)


def _pick_apply_rows(h, wc, budget=_TILE_BUDGET_BYTES):
    """Row-tile for the elementwise affine pass on a (h, wc) slab.

    Block second-to-last dim must be a multiple of 8 or equal the full dim."""
    if 4 * h * wc * 3 <= budget:
        return h
    cands = [t for t in range(8, h, 8) if h % t == 0 and 4 * t * wc * 3 <= budget]
    return max(cands) if cands else h


def _compiler_params(dims):
    return pltpu.CompilerParams(dimension_semantics=dims,
                                vmem_limit_bytes=_VMEM_LIMIT_BYTES)


# ---------------------------------------------------------------------------
# Pallas kernels
# ---------------------------------------------------------------------------
def _conv3x3_bias_kernel(x_ref, halo_ref, w_ref, b_ref, o_ref):
    # x_ref:    (1, tr, W+2, Cp)   padded input rows [r*tr, r*tr+tr)
    # halo_ref: (1, 2,  W+2, Cp)   padded input rows [r*tr+tr, r*tr+tr+2)
    # w_ref:    (9, Cp, Cout)      w[kh*3+kw]
    # b_ref:    (1, Cout)
    # o_ref:    (1, tr, W, Cout)
    _, tr, wo, cout = o_ref.shape
    x = jnp.concatenate([x_ref[0], halo_ref[0]], axis=0)      # (tr+2, W+2, Cp)
    cin = x.shape[-1]
    acc = jnp.zeros((tr * wo, cout), jnp.float32)
    for kh in range(3):
        for kw in range(3):
            xs = x[kh:kh + tr, kw:kw + wo, :].reshape(tr * wo, cin)
            acc = acc + jnp.dot(xs, w_ref[kh * 3 + kw],
                                preferred_element_type=jnp.float32)
    acc = acc + b_ref[...]
    o_ref[0] = acc.reshape(tr, wo, cout)


def _down_conv_accum(s_ref, halo_ref, w_ref, tr, wo):
    # LeakyReLU(0.2) -> 2x2 stride-1 conv (== original 4x4 stride-2 conv on the
    # space-to-depth'd, zero-padded input), accumulated in f32 on the MXU.
    s = jnp.concatenate([s_ref[0], halo_ref[0]], axis=0)      # (tr+1, Wo+1, 4*Cin)
    s = jnp.where(s >= 0, s, 0.2 * s)                          # leaky once per element
    k = s.shape[-1]
    cout = w_ref.shape[-1]
    acc = jnp.zeros((tr * wo, cout), jnp.float32)
    for sh in range(2):
        for sw in range(2):
            xs = s[sh:sh + tr, sw:sw + wo, :].reshape(tr * wo, k)
            acc = acc + jnp.dot(xs, w_ref[sh * 2 + sw],
                                preferred_element_type=jnp.float32)
    return acc


def _down_bn_kernel(s_ref, halo_ref, w_ref, y_ref, stats_ref):
    # Pass 1 of the InstanceNorm block: conv + per-sample sum / sum-of-squares.
    _, tr, wo, cout = y_ref.shape

    @pl.when(pl.program_id(1) == 0)
    def _init():
        stats_ref[...] = jnp.zeros_like(stats_ref)

    acc = _down_conv_accum(s_ref, halo_ref, w_ref, tr, wo)     # (tr*wo, cout)
    y_ref[0] = acc.reshape(tr, wo, cout)
    stats_ref[0, 0:1, :] += jnp.sum(acc, axis=0, keepdims=True)
    stats_ref[0, 1:2, :] += jnp.sum(acc * acc, axis=0, keepdims=True)


def _down_plain_kernel(s_ref, halo_ref, w_ref, o_ref):
    # Last encoder block: conv only, no norm.
    _, tr, wo, cout = o_ref.shape
    acc = _down_conv_accum(s_ref, halo_ref, w_ref, tr, wo)
    o_ref[0] = acc.reshape(tr, wo, cout)


def _instnorm_apply_kernel(scale_ref, shift_ref, y_ref, o_ref):
    # Pass 2 of InstanceNorm: out = y * scale[n] + shift[n] (per-sample scalars)
    # on a lane-dense (1, tr, Wo*Cout) block.
    n = pl.program_id(0)
    o_ref[...] = y_ref[...] * scale_ref[n] + shift_ref[n]


# ---------------------------------------------------------------------------
# Layer wrappers (NHWC)
# ---------------------------------------------------------------------------
def conv3x3_bias(x, w, b):
    """Conv2d(k=3, s=1, p=1, bias=True). x: (N,H,W,Cin), w: (3,3,Cin,Cout)."""
    N, H, W, Cin = x.shape
    Cout = w.shape[-1]
    assert H % 2 == 0, "encoder assumes even spatial dims"

    cin_p = _round_up(Cin, 8)                                  # K-alignment
    xpad = jnp.pad(x, ((0, 0), (1, 1), (1, 1), (0, cin_p - Cin)))
    wp = jnp.pad(w, ((0, 0), (0, 0), (0, cin_p - Cin), (0, 0))).reshape(9, cin_p, Cout)
    b2 = b.reshape(1, Cout)

    row_bytes = 4 * ((W + 2) * cin_p + W * Cout) * 3
    tr = _pick_row_tile(H, row_bytes, multiple=2)              # even => 2-row halo blocks
    R = H // tr
    half = tr // 2

    flops = 2 * N * H * W * Cout * 9 * cin_p
    bytes_accessed = 4 * (xpad.size + wp.size + b2.size + N * H * W * Cout)

    out = pl.pallas_call(
        _conv3x3_bias_kernel,
        out_shape=jax.ShapeDtypeStruct((N, H, W, Cout), jnp.float32),
        grid=(N, R),
        in_specs=[
            pl.BlockSpec((1, tr, W + 2, cin_p), lambda n, r: (n, r, 0, 0)),
            pl.BlockSpec((1, 2, W + 2, cin_p),
                         lambda n, r: (n, r * half + half, 0, 0)),
            pl.BlockSpec((9, cin_p, Cout), lambda n, r: (0, 0, 0)),
            pl.BlockSpec((1, Cout), lambda n, r: (0, 0)),
        ],
        out_specs=pl.BlockSpec((1, tr, W, Cout), lambda n, r: (n, r, 0, 0)),
        compiler_params=_compiler_params(("parallel", "parallel")),
        cost_estimate=pl.CostEstimate(flops=flops, transcendentals=0,
                                      bytes_accessed=bytes_accessed),
    )(xpad, xpad, wp, b2)
    return out


def _apply_affine(y, scale, shift):
    """out = y * scale[n] + shift[n]; per-sample scalars in SMEM.

    Runs on a lane-dense (N, Ho, Wo*Cout) view so loads/stores are full-width
    (free reshape at the XLA level — the array is row-major contiguous)."""
    N, Ho, Wo, Cout = y.shape
    WC = Wo * Cout
    y2 = y.reshape(N, Ho, WC)
    tr = _pick_apply_rows(Ho, WC)
    R = Ho // tr
    out = pl.pallas_call(
        _instnorm_apply_kernel,
        out_shape=jax.ShapeDtypeStruct((N, Ho, WC), jnp.float32),
        grid=(N, R),
        in_specs=[
            pl.BlockSpec(memory_space=pltpu.MemorySpace.SMEM),
            pl.BlockSpec(memory_space=pltpu.MemorySpace.SMEM),
            pl.BlockSpec((1, tr, WC), lambda n, r: (n, r, 0)),
        ],
        out_specs=pl.BlockSpec((1, tr, WC), lambda n, r: (n, r, 0)),
        compiler_params=_compiler_params(("parallel", "parallel")),
        cost_estimate=pl.CostEstimate(flops=2 * y.size, transcendentals=0,
                                      bytes_accessed=4 * (2 * y.size + 2 * N)),
    )(scale, shift, y2)
    return out.reshape(N, Ho, Wo, Cout)


def block_down(x, w, gamma=None, beta=None, bn=True):
    """LeakyReLU(0.2) -> Conv2d(k=4, s=2, p=1, bias=False) [-> InstanceNorm3d(1)]."""
    N, H, W, Cin = x.shape
    Cout = w.shape[-1]
    assert H % 2 == 0 and W % 2 == 0, "encoder assumes even spatial dims"
    Ho, Wo = H // 2, W // 2
    K = 4 * Cin

    # space-to-depth of the zero-padded input: 4x4/s2 conv -> 2x2/s1 conv on S
    xpad = jnp.pad(x, ((0, 0), (1, 1), (1, 1), (0, 0)))            # (N, H+2, W+2, Cin)
    S = xpad.reshape(N, Ho + 1, 2, Wo + 1, 2, Cin)
    S = S.transpose(0, 1, 3, 2, 4, 5).reshape(N, Ho + 1, Wo + 1, K)
    w2 = w.reshape(2, 2, 2, 2, Cin, Cout).transpose(0, 2, 1, 3, 4, 5)
    w2 = w2.reshape(4, K, Cout)                                     # w2[sh*2+sw]

    row_bytes = 4 * ((Wo + 1) * K + Wo * Cout) * 3
    tr = _pick_row_tile(Ho, row_bytes, multiple=1)
    R = Ho // tr

    s_spec = pl.BlockSpec((1, tr, Wo + 1, K), lambda n, r: (n, r, 0, 0))
    halo_spec = pl.BlockSpec((1, 1, Wo + 1, K), lambda n, r: (n, r * tr + tr, 0, 0))
    w_spec = pl.BlockSpec((4, K, Cout), lambda n, r: (0, 0, 0))
    y_spec = pl.BlockSpec((1, tr, Wo, Cout), lambda n, r: (n, r, 0, 0))

    flops = 2 * N * Ho * Wo * Cout * 16 * Cin
    bytes_accessed = 4 * (S.size + w2.size + N * Ho * Wo * Cout)

    if not bn:
        return pl.pallas_call(
            _down_plain_kernel,
            out_shape=jax.ShapeDtypeStruct((N, Ho, Wo, Cout), jnp.float32),
            grid=(N, R),
            in_specs=[s_spec, halo_spec, w_spec],
            out_specs=y_spec,
            compiler_params=_compiler_params(("parallel", "parallel")),
            cost_estimate=pl.CostEstimate(flops=flops, transcendentals=0,
                                          bytes_accessed=bytes_accessed),
        )(S, S, w2)

    stats_spec = pl.BlockSpec((1, 2, Cout), lambda n, r: (n, 0, 0))  # revisited over r
    y, stats = pl.pallas_call(
        _down_bn_kernel,
        out_shape=(jax.ShapeDtypeStruct((N, Ho, Wo, Cout), jnp.float32),
                   jax.ShapeDtypeStruct((N, 2, Cout), jnp.float32)),
        grid=(N, R),
        in_specs=[s_spec, halo_spec, w_spec],
        out_specs=(y_spec, stats_spec),
        compiler_params=_compiler_params(("parallel", "arbitrary")),
        cost_estimate=pl.CostEstimate(flops=flops, transcendentals=0,
                                      bytes_accessed=bytes_accessed + 8 * N * Cout),
    )(S, S, w2)

    # tiny per-sample finalize (O(N*Cout)) in plain JAX
    cnt = float(Ho * Wo * Cout)
    mean = jnp.sum(stats[:, 0, :], axis=-1) / cnt                   # (N,)
    var = jnp.sum(stats[:, 1, :], axis=-1) / cnt - mean * mean      # biased (PyTorch)
    var = jnp.maximum(var, 0.0)
    inv = jax.lax.rsqrt(var + 1e-3)
    scale = (gamma[0] * inv).astype(jnp.float32)                    # (N,)
    shift = (beta[0] - mean * scale).astype(jnp.float32)            # (N,)
    return _apply_affine(y, scale, shift)


def encoder_forward(x, params, nfilters_enc):
    outputs = []
    out = conv3x3_bias(x, params["w0"], params["b0"])
    outputs.append(out)
    L = len(nfilters_enc)
    for i in range(1, L):
        bn = i != L - 1
        out = block_down(out, params[f"w{i}"],
                         gamma=params.get(f"g{i}"), beta=params.get(f"be{i}"), bn=bn)
        outputs.append(out)
    return outputs


# ---------------------------------------------------------------------------
# Pure-JAX reference (for correctness check)
# ---------------------------------------------------------------------------
def _ref_forward(x, params, nfilters_enc):
    dn = ("NHWC", "HWIO", "NHWC")
    outs = []
    y = jax.lax.conv_general_dilated(
        x, params["w0"], (1, 1), ((1, 1), (1, 1)), dimension_numbers=dn)
    y = y + params["b0"][None, None, None, :]
    outs.append(y)
    L = len(nfilters_enc)
    for i in range(1, L):
        a = jnp.where(y >= 0, y, 0.2 * y)
        y = jax.lax.conv_general_dilated(
            a, params[f"w{i}"], (2, 2), ((1, 1), (1, 1)), dimension_numbers=dn)
        if i != L - 1:
            m = jnp.mean(y, axis=(1, 2, 3), keepdims=True)
            v = jnp.mean((y - m) ** 2, axis=(1, 2, 3), keepdims=True)
            y = (y - m) * jax.lax.rsqrt(v + 1e-3)
            y = y * params[f"g{i}"][0] + params[f"be{i}"][0]
        outs.append(y)
    return outs


# ---------------------------------------------------------------------------
# main
# ---------------------------------------------------------------------------
if __name__ == "__main__":
    key = jax.random.PRNGKey(0)
    N, Cin, H, W = 2, 3, 16, 16
    nfilters_enc = (8, 16, 32)

    # deterministic parameter init (synthetic, matches module shapes)
    params = {}
    k0, k1, key = jax.random.split(key, 3)
    params["w0"] = 0.1 * jax.random.normal(k0, (3, 3, Cin, nfilters_enc[0]), jnp.float32)
    params["b0"] = 0.1 * jax.random.normal(k1, (nfilters_enc[0],), jnp.float32)
    for i in range(1, len(nfilters_enc)):
        ki, key = jax.random.split(key)
        params[f"w{i}"] = 0.1 * jax.random.normal(
            ki, (4, 4, nfilters_enc[i - 1], nfilters_enc[i]), jnp.float32)
        if i != len(nfilters_enc) - 1:
            # InstanceNorm3d affine params (PyTorch default init: weight=1, bias=0)
            params[f"g{i}"] = jnp.ones((1,), jnp.float32)
            params[f"be{i}"] = jnp.zeros((1,), jnp.float32)

    # input in NCHW (PyTorch convention) -> transpose to NHWC kernel layout
    kx, key = jax.random.split(key)
    x_nchw = jax.random.normal(kx, (N, Cin, H, W), jnp.float32)
    x = jnp.transpose(x_nchw, (0, 2, 3, 1))

    fwd = jax.jit(functools.partial(encoder_forward, nfilters_enc=nfilters_enc))
    outs = fwd(x, params)
    outs = [jax.block_until_ready(o) for o in outs]

    refs = _ref_forward(x, params, nfilters_enc)
    for o, r in zip(outs, refs):
        assert o.shape == r.shape, (o.shape, r.shape)
        assert jnp.allclose(o, r, rtol=1e-3, atol=1e-3), float(jnp.max(jnp.abs(o - r)))

    print("KERNEL_OK")
</pallas_src>

<mosaic_0001>
module attributes {stable_mosaic.version = 11 : i64} {
  func.func @_conv3x3_bias_kernel(%arg0: i32, %arg1: i32, %arg2: memref<1x16x18x8xf32, #tpu.memory_space<vmem>>, %arg3: memref<1x2x18x8xf32, #tpu.memory_space<vmem>>, %arg4: memref<9x8x8xf32, #tpu.memory_space<vmem>>, %arg5: memref<1x8xf32, #tpu.memory_space<vmem>>, %arg6: memref<1x16x16x8xf32, #tpu.memory_space<vmem>>) attributes {dimension_semantics = [#tpu.dimension_semantics<parallel>, #tpu.dimension_semantics<parallel>], iteration_bounds = array<i64: 2, 1>, scalar_prefetch = 0 : i64, scratch_operands = 0 : i64, tpu.core_type = #tpu.core_type<tc>, window_params = [{transform_indices = @transform_0, window_bounds = array<i64: 1, 16, 18, 8>}, {transform_indices = @transform_1, window_bounds = array<i64: 1, 2, 18, 8>}, {pipeline_mode = #tpu.pipeline_mode<synchronous>, transform_indices = @transform_2, window_bounds = array<i64: 9, 8, 8>}, {pipeline_mode = #tpu.pipeline_mode<synchronous>, transform_indices = @transform_3, window_bounds = array<i64: 1, 8>}, {transform_indices = @transform_4, window_bounds = array<i64: 1, 16, 16, 8>}]} {
    %c0 = arith.constant 0 : index
    %c0_0 = arith.constant 0 : index
    %c0_1 = arith.constant 0 : index
    %c0_2 = arith.constant 0 : index
    %0 = vector.load %arg2[%c0, %c0_0, %c0_1, %c0_2] : memref<1x16x18x8xf32, #tpu.memory_space<vmem>>, vector<1x16x18x8xf32>
    %1 = vector.shape_cast %0 : vector<1x16x18x8xf32> to vector<16x18x8xf32>
    %c0_3 = arith.constant 0 : index
    %c0_4 = arith.constant 0 : index
    %c0_5 = arith.constant 0 : index
    %c0_6 = arith.constant 0 : index
    %2 = vector.load %arg3[%c0_3, %c0_4, %c0_5, %c0_6] : memref<1x2x18x8xf32, #tpu.memory_space<vmem>>, vector<1x2x18x8xf32>
    %3 = vector.shape_cast %2 : vector<1x2x18x8xf32> to vector<2x18x8xf32>
    %4 = tpu.concatenate %1, %3 in 0 : vector<16x18x8xf32>, vector<2x18x8xf32> -> vector<18x18x8xf32>
    %cst = arith.constant 0.000000e+00 : f32
    %5 = vector.broadcast %cst : f32 to vector<256x8xf32>
    %6 = vector.extract_strided_slice %4 {offsets = [0, 0, 0], sizes = [16, 16, 8], strides = [1, 1, 1]} : vector<18x18x8xf32> to vector<16x16x8xf32>
    %7 = vector.shape_cast %6 : vector<16x16x8xf32> to vector<256x8xf32>
    %c0_7 = arith.constant 0 : index
    %c0_8 = arith.constant 0 : index
    %c0_9 = arith.constant 0 : index
    %8 = vector.load %arg4[%c0_7, %c0_8, %c0_9] : memref<9x8x8xf32, #tpu.memory_space<vmem>>, vector<1x8x8xf32>
    %9 = vector.shape_cast %8 : vector<1x8x8xf32> to vector<8x8xf32>
    %cst_10 = arith.constant dense<0.000000e+00> : vector<256x8xf32>
    %10 = tpu.matmul %7, %9, %cst_10 {dimension_numbers = #tpu.dot_dimension_numbers<[1], [0], [0], [1], [0, 0, 1, 1], [], []>} : vector<256x8xf32>, vector<8x8xf32>, vector<256x8xf32> -> vector<256x8xf32>
    %11 = arith.addf %5, %10 : vector<256x8xf32>
    %12 = vector.extract_strided_slice %4 {offsets = [0, 1, 0], sizes = [16, 16, 8], strides = [1, 1, 1]} : vector<18x18x8xf32> to vector<16x16x8xf32>
    %13 = vector.shape_cast %12 : vector<16x16x8xf32> to vector<256x8xf32>
    %c1 = arith.constant 1 : index
    %c0_11 = arith.constant 0 : index
    %c0_12 = arith.constant 0 : index
    %14 = vector.load %arg4[%c1, %c0_11, %c0_12] : memref<9x8x8xf32, #tpu.memory_space<vmem>>, vector<1x8x8xf32>
    %15 = vector.shape_cast %14 : vector<1x8x8xf32> to vector<8x8xf32>
    %cst_13 = arith.constant dense<0.000000e+00> : vector<256x8xf32>
    %16 = tpu.matmul %13, %15, %cst_13 {dimension_numbers = #tpu.dot_dimension_numbers<[1], [0], [0], [1], [0, 0, 1, 1], [], []>} : vector<256x8xf32>, vector<8x8xf32>, vector<256x8xf32> -> vector<256x8xf32>
    %17 = arith.addf %11, %16 : vector<256x8xf32>
    %18 = vector.extract_strided_slice %4 {offsets = [0, 2, 0], sizes = [16, 16, 8], strides = [1, 1, 1]} : vector<18x18x8xf32> to vector<16x16x8xf32>
    %19 = vector.shape_cast %18 : vector<16x16x8xf32> to vector<256x8xf32>
    %c2 = arith.constant 2 : index
    %c0_14 = arith.constant 0 : index
    %c0_15 = arith.constant 0 : index
    %20 = vector.load %arg4[%c2, %c0_14, %c0_15] : memref<9x8x8xf32, #tpu.memory_space<vmem>>, vector<1x8x8xf32>
    %21 = vector.shape_cast %20 : vector<1x8x8xf32> to vector<8x8xf32>
    %cst_16 = arith.constant dense<0.000000e+00> : vector<256x8xf32>
    %22 = tpu.matmul %19, %21, %cst_16 {dimension_numbers = #tpu.dot_dimension_numbers<[1], [0], [0], [1], [0, 0, 1, 1], [], []>} : vector<256x8xf32>, vector<8x8xf32>, vector<256x8xf32> -> vector<256x8xf32>
    %23 = arith.addf %17, %22 : vector<256x8xf32>
    %24 = vector.extract_strided_slice %4 {offsets = [1, 0, 0], sizes = [16, 16, 8], strides = [1, 1, 1]} : vector<18x18x8xf32> to vector<16x16x8xf32>
    %25 = vector.shape_cast %24 : vector<16x16x8xf32> to vector<256x8xf32>
    %c3 = arith.constant 3 : index
    %c0_17 = arith.constant 0 : index
    %c0_18 = arith.constant 0 : index
    %26 = vector.load %arg4[%c3, %c0_17, %c0_18] : memref<9x8x8xf32, #tpu.memory_space<vmem>>, vector<1x8x8xf32>
    %27 = vector.shape_cast %26 : vector<1x8x8xf32> to vector<8x8xf32>
    %cst_19 = arith.constant dense<0.000000e+00> : vector<256x8xf32>
    %28 = tpu.matmul %25, %27, %cst_19 {dimension_numbers = #tpu.dot_dimension_numbers<[1], [0], [0], [1], [0, 0, 1, 1], [], []>} : vector<256x8xf32>, vector<8x8xf32>, vector<256x8xf32> -> vector<256x8xf32>
    %29 = arith.addf %23, %28 : vector<256x8xf32>
    %30 = vector.extract_strided_slice %4 {offsets = [1, 1, 0], sizes = [16, 16, 8], strides = [1, 1, 1]} : vector<18x18x8xf32> to vector<16x16x8xf32>
    %31 = vector.shape_cast %30 : vector<16x16x8xf32> to vector<256x8xf32>
    %c4 = arith.constant 4 : index
    %c0_20 = arith.constant 0 : index
    %c0_21 = arith.constant 0 : index
    %32 = vector.load %arg4[%c4, %c0_20, %c0_21] : memref<9x8x8xf32, #tpu.memory_space<vmem>>, vector<1x8x8xf32>
    %33 = vector.shape_cast %32 : vector<1x8x8xf32> to vector<8x8xf32>
    %cst_22 = arith.constant dense<0.000000e+00> : vector<256x8xf32>
    %34 = tpu.matmul %31, %33, %cst_22 {dimension_numbers = #tpu.dot_dimension_numbers<[1], [0], [0], [1], [0, 0, 1, 1], [], []>} : vector<256x8xf32>, vector<8x8xf32>, vector<256x8xf32> -> vector<256x8xf32>
    %35 = arith.addf %29, %34 : vector<256x8xf32>
    %36 = vector.extract_strided_slice %4 {offsets = [1, 2, 0], sizes = [16, 16, 8], strides = [1, 1, 1]} : vector<18x18x8xf32> to vector<16x16x8xf32>
    %37 = vector.shape_cast %36 : vector<16x16x8xf32> to vector<256x8xf32>
    %c5 = arith.constant 5 : index
    %c0_23 = arith.constant 0 : index
    %c0_24 = arith.constant 0 : index
    %38 = vector.load %arg4[%c5, %c0_23, %c0_24] : memref<9x8x8xf32, #tpu.memory_space<vmem>>, vector<1x8x8xf32>
    %39 = vector.shape_cast %38 : vector<1x8x8xf32> to vector<8x8xf32>
    %cst_25 = arith.constant dense<0.000000e+00> : vector<256x8xf32>
    %40 = tpu.matmul %37, %39, %cst_25 {dimension_numbers = #tpu.dot_dimension_numbers<[1], [0], [0], [1], [0, 0, 1, 1], [], []>} : vector<256x8xf32>, vector<8x8xf32>, vector<256x8xf32> -> vector<256x8xf32>
    %41 = arith.addf %35, %40 : vector<256x8xf32>
    %42 = vector.extract_strided_slice %4 {offsets = [2, 0, 0], sizes = [16, 16, 8], strides = [1, 1, 1]} : vector<18x18x8xf32> to vector<16x16x8xf32>
    %43 = vector.shape_cast %42 : vector<16x16x8xf32> to vector<256x8xf32>
    %c6 = arith.constant 6 : index
    %c0_26 = arith.constant 0 : index
    %c0_27 = arith.constant 0 : index
    %44 = vector.load %arg4[%c6, %c0_26, %c0_27] : memref<9x8x8xf32, #tpu.memory_space<vmem>>, vector<1x8x8xf32>
    %45 = vector.shape_cast %44 : vector<1x8x8xf32> to vector<8x8xf32>
    %cst_28 = arith.constant dense<0.000000e+00> : vector<256x8xf32>
    %46 = tpu.matmul %43, %45, %cst_28 {dimension_numbers = #tpu.dot_dimension_numbers<[1], [0], [0], [1], [0, 0, 1, 1], [], []>} : vector<256x8xf32>, vector<8x8xf32>, vector<256x8xf32> -> vector<256x8xf32>
    %47 = arith.addf %41, %46 : vector<256x8xf32>
    %48 = vector.extract_strided_slice %4 {offsets = [2, 1, 0], sizes = [16, 16, 8], strides = [1, 1, 1]} : vector<18x18x8xf32> to vector<16x16x8xf32>
    %49 = vector.shape_cast %48 : vector<16x16x8xf32> to vector<256x8xf32>
    %c7 = arith.constant 7 : index
    %c0_29 = arith.constant 0 : index
    %c0_30 = arith.constant 0 : index
    %50 = vector.load %arg4[%c7, %c0_29, %c0_30] : memref<9x8x8xf32, #tpu.memory_space<vmem>>, vector<1x8x8xf32>
    %51 = vector.shape_cast %50 : vector<1x8x8xf32> to vector<8x8xf32>
    %cst_31 = arith.constant dense<0.000000e+00> : vector<256x8xf32>
    %52 = tpu.matmul %49, %51, %cst_31 {dimension_numbers = #tpu.dot_dimension_numbers<[1], [0], [0], [1], [0, 0, 1, 1], [], []>} : vector<256x8xf32>, vector<8x8xf32>, vector<256x8xf32> -> vector<256x8xf32>
    %53 = arith.addf %47, %52 : vector<256x8xf32>
    %54 = vector.extract_strided_slice %4 {offsets = [2, 2, 0], sizes = [16, 16, 8], strides = [1, 1, 1]} : vector<18x18x8xf32> to vector<16x16x8xf32>
    %55 = vector.shape_cast %54 : vector<16x16x8xf32> to vector<256x8xf32>
    %c8 = arith.constant 8 : index
    %c0_32 = arith.constant 0 : index
    %c0_33 = arith.constant 0 : index
    %56 = vector.load %arg4[%c8, %c0_32, %c0_33] : memref<9x8x8xf32, #tpu.memory_space<vmem>>, vector<1x8x8xf32>
    %57 = vector.shape_cast %56 : vector<1x8x8xf32> to vector<8x8xf32>
    %cst_34 = arith.constant dense<0.000000e+00> : vector<256x8xf32>
    %58 = tpu.matmul %55, %57, %cst_34 {dimension_numbers = #tpu.dot_dimension_numbers<[1], [0], [0], [1], [0, 0, 1, 1], [], []>} : vector<256x8xf32>, vector<8x8xf32>, vector<256x8xf32> -> vector<256x8xf32>
    %59 = arith.addf %53, %58 : vector<256x8xf32>
    %c0_35 = arith.constant 0 : index
    %c0_36 = arith.constant 0 : index
    %60 = vector.load %arg5[%c0_35, %c0_36] : memref<1x8xf32, #tpu.memory_space<vmem>>, vector<1x8xf32>
    %61 = vector.broadcast %60 : vector<1x8xf32> to vector<256x8xf32>
    %62 = arith.addf %59, %61 : vector<256x8xf32>
    %63 = vector.shape_cast %62 : vector<256x8xf32> to vector<16x16x8xf32>
    %c0_37 = arith.constant 0 : index
    %c0_38 = arith.constant 0 : index
    %c0_39 = arith.constant 0 : index
    %c0_40 = arith.constant 0 : index
    %64 = vector.load %arg6[%c0_37, %c0_38, %c0_39, %c0_40] : memref<1x16x16x8xf32, #tpu.memory_space<vmem>>, vector<1x16x16x8xf32>
    %65 = vector.shape_cast %64 : vector<1x16x16x8xf32> to vector<16x16x8xf32>
    %66 = vector.shape_cast %63 : vector<16x16x8xf32> to vector<1x16x16x8xf32>
    tpu.vector_store %arg6[%c0_37, %c0_38, %c0_39, %c0_40], %66 {strides = array<i32>} : memref<1x16x16x8xf32, #tpu.memory_space<vmem>>, vector<1x16x16x8xf32>,
    return
  }
  func.func @transform_0(%arg0: i32, %arg1: i32) -> (i32, i32, i32, i32) {
    %c0_i32 = arith.constant 0 : i32
    %c0_i32_0 = arith.constant 0 : i32
    %c0_i32_1 = arith.constant 0 : i32
    return %arg0, %arg1, %c0_i32, %c0_i32_0 : i32, i32, i32, i32
  }
  func.func @transform_1(%arg0: i32, %arg1: i32) -> (i32, i32, i32, i32) {
    %c8_i32 = arith.constant 8 : i32
    %0 = arith.muli %arg1, %c8_i32 : i32
    %c8_i32_0 = arith.constant 8 : i32
    %1 = arith.addi %0, %c8_i32_0 : i32
    %c0_i32 = arith.constant 0 : i32
    %c0_i32_1 = arith.constant 0 : i32
    %c0_i32_2 = arith.constant 0 : i32
    return %arg0, %1, %c0_i32, %c0_i32_1 : i32, i32, i32, i32
  }
  func.func @transform_2(%arg0: i32, %arg1: i32) -> (i32, i32, i32) {
    %c0_i32 = arith.constant 0 : i32
    %c0_i32_0 = arith.constant 0 : i32
    %c0_i32_1 = arith.constant 0 : i32
    %c0_i32_2 = arith.constant 0 : i32
    return %c0_i32, %c0_i32_0, %c0_i32_1 : i32, i32, i32
  }
  func.func @transform_3(%arg0: i32, %arg1: i32) -> (i32, i32) {
    %c0_i32 = arith.constant 0 : i32
    %c0_i32_0 = arith.constant 0 : i32
    %c0_i32_1 = arith.constant 0 : i32
    return %c0_i32, %c0_i32_0 : i32, i32
  }
  func.func @transform_4(%arg0: i32, %arg1: i32) -> (i32, i32, i32, i32) {
    %c0_i32 = arith.constant 0 : i32
    %c0_i32_0 = arith.constant 0 : i32
    %c0_i32_1 = arith.constant 0 : i32
    return %arg0, %arg1, %c0_i32, %c0_i32_0 : i32, i32, i32, i32
  }
}

module attributes {stable_mosaic.version = 11 : i64} {
  func.func @_down_bn_kernel(%arg0: i32, %arg1: i32, %arg2: memref<1x8x9x32xf32, #tpu.memory_space<vmem>>, %arg3: memref<1x1x9x32xf32, #tpu.memory_space<vmem>>, %arg4: memref<4x32x16xf32, #tpu.memory_space<vmem>>, %arg5: memref<1x8x8x16xf32, #tpu.memory_space<vmem>>, %arg6: memref<1x2x16xf32, #tpu.memory_space<vmem>>) attributes {dimension_semantics = [#tpu.dimension_semantics<parallel>, #tpu.dimension_semantics<arbitrary>], iteration_bounds = array<i64: 2, 1>, scalar_prefetch = 0 : i64, scratch_operands = 0 : i64, tpu.core_type = #tpu.core_type<tc>, window_params = [{transform_indices = @transform_0, window_bounds = array<i64: 1, 8, 9, 32>}, {transform_indices = @transform_1, window_bounds = array<i64: 1, 1, 9, 32>}, {pipeline_mode = #tpu.pipeline_mode<synchronous>, transform_indices = @transform_2, window_bounds = array<i64: 4, 32, 16>}, {transform_indices = @transform_3, window_bounds = array<i64: 1, 8, 8, 16>}, {transform_indices = @transform_4, window_bounds = array<i64: 1, 2, 16>}]} {
    %c0_i32 = arith.constant 0 : i32
    %0 = arith.cmpi eq, %arg1, %c0_i32 : i32
    %1 = arith.extui %0 : i1 to i32
    %c0_i32_0 = arith.constant 0 : i32
    %2 = arith.cmpi ne, %1, %c0_i32_0 : i32
    scf.if %2 {
      %cst_41 = arith.constant 0.000000e+00 : f32
      %59 = vector.broadcast %cst_41 : f32 to vector<1x2x16xf32>
      %c0_42 = arith.constant 0 : index
      %c0_43 = arith.constant 0 : index
      %c0_44 = arith.constant 0 : index
      %60 = vector.load %arg6[%c0_42, %c0_43, %c0_44] : memref<1x2x16xf32, #tpu.memory_space<vmem>>, vector<1x2x16xf32>
      tpu.vector_store %arg6[%c0_42, %c0_43, %c0_44], %59 {strides = array<i32>} : memref<1x2x16xf32, #tpu.memory_space<vmem>>, vector<1x2x16xf32>,
    } else {
    }
    %c0 = arith.constant 0 : index
    %c0_1 = arith.constant 0 : index
    %c0_2 = arith.constant 0 : index
    %c0_3 = arith.constant 0 : index
    %3 = vector.load %arg2[%c0, %c0_1, %c0_2, %c0_3] : memref<1x8x9x32xf32, #tpu.memory_space<vmem>>, vector<1x8x9x32xf32>
    %4 = vector.shape_cast %3 : vector<1x8x9x32xf32> to vector<8x9x32xf32>
    %c0_4 = arith.constant 0 : index
    %c0_5 = arith.constant 0 : index
    %c0_6 = arith.constant 0 : index
    %c0_7 = arith.constant 0 : index
    %5 = vector.load %arg3[%c0_4, %c0_5, %c0_6, %c0_7] : memref<1x1x9x32xf32, #tpu.memory_space<vmem>>, vector<1x1x9x32xf32>
    %6 = vector.shape_cast %5 : vector<1x1x9x32xf32> to vector<1x9x32xf32>
    %7 = tpu.concatenate %4, %6 in 0 : vector<8x9x32xf32>, vector<1x9x32xf32> -> vector<9x9x32xf32>
    %cst = arith.constant 0.000000e+00 : f32
    %8 = vector.broadcast %cst : f32 to vector<9x9x32xf32>
    %9 = arith.cmpf oge, %7, %8 : vector<9x9x32xf32>
    %cst_8 = arith.constant 2.000000e-01 : f32
    %10 = vector.broadcast %cst_8 : f32 to vector<9x9x32xf32>
    %11 = arith.mulf %10, %7 : vector<9x9x32xf32>
    %12 = arith.select %9, %7, %11 : vector<9x9x32xi1>, vector<9x9x32xf32>
    %cst_9 = arith.constant 0.000000e+00 : f32
    %13 = vector.broadcast %cst_9 : f32 to vector<64x16xf32>
    %14 = vector.extract_strided_slice %12 {offsets = [0, 0, 0], sizes = [8, 8, 32], strides = [1, 1, 1]} : vector<9x9x32xf32> to vector<8x8x32xf32>
    %15 = vector.shape_cast %14 : vector<8x8x32xf32> to vector<64x32xf32>
    %c0_10 = arith.constant 0 : index
    %c0_11 = arith.constant 0 : index
    %c0_12 = arith.constant 0 : index
    %16 = vector.load %arg4[%c0_10, %c0_11, %c0_12] : memref<4x32x16xf32, #tpu.memory_space<vmem>>, vector<1x32x16xf32>
    %17 = vector.shape_cast %16 : vector<1x32x16xf32> to vector<32x16xf32>
    %cst_13 = arith.constant dense<0.000000e+00> : vector<64x16xf32>
    %18 = tpu.matmul %15, %17, %cst_13 {dimension_numbers = #tpu.dot_dimension_numbers<[1], [0], [0], [1], [0, 0, 1, 1], [], []>} : vector<64x32xf32>, vector<32x16xf32>, vector<64x16xf32> -> vector<64x16xf32>
    %19 = arith.addf %13, %18 : vector<64x16xf32>
    %20 = vector.extract_strided_slice %12 {offsets = [0, 1, 0], sizes = [8, 8, 32], strides = [1, 1, 1]} : vector<9x9x32xf32> to vector<8x8x32xf32>
    %21 = vector.shape_cast %20 : vector<8x8x32xf32> to vector<64x32xf32>
    %c1 = arith.constant 1 : index
    %c0_14 = arith.constant 0 : index
    %c0_15 = arith.constant 0 : index
    %22 = vector.load %arg4[%c1, %c0_14, %c0_15] : memref<4x32x16xf32, #tpu.memory_space<vmem>>, vector<1x32x16xf32>
    %23 = vector.shape_cast %22 : vector<1x32x16xf32> to vector<32x16xf32>
    %cst_16 = arith.constant dense<0.000000e+00> : vector<64x16xf32>
    %24 = tpu.matmul %21, %23, %cst_16 {dimension_numbers = #tpu.dot_dimension_numbers<[1], [0], [0], [1], [0, 0, 1, 1], [], []>} : vector<64x32xf32>, vector<32x16xf32>, vector<64x16xf32> -> vector<64x16xf32>
    %25 = arith.addf %19, %24 : vector<64x16xf32>
    %26 = vector.extract_strided_slice %12 {offsets = [1, 0, 0], sizes = [8, 8, 32], strides = [1, 1, 1]} : vector<9x9x32xf32> to vector<8x8x32xf32>
    %27 = vector.shape_cast %26 : vector<8x8x32xf32> to vector<64x32xf32>
    %c2 = arith.constant 2 : index
    %c0_17 = arith.constant 0 : index
    %c0_18 = arith.constant 0 : index
    %28 = vector.load %arg4[%c2, %c0_17, %c0_18] : memref<4x32x16xf32, #tpu.memory_space<vmem>>, vector<1x32x16xf32>
    %29 = vector.shape_cast %28 : vector<1x32x16xf32> to vector<32x16xf32>
    %cst_19 = arith.constant dense<0.000000e+00> : vector<64x16xf32>
    %30 = tpu.matmul %27, %29, %cst_19 {dimension_numbers = #tpu.dot_dimension_numbers<[1], [0], [0], [1], [0, 0, 1, 1], [], []>} : vector<64x32xf32>, vector<32x16xf32>, vector<64x16xf32> -> vector<64x16xf32>
    %31 = arith.addf %25, %30 : vector<64x16xf32>
    %32 = vector.extract_strided_slice %12 {offsets = [1, 1, 0], sizes = [8, 8, 32], strides = [1, 1, 1]} : vector<9x9x32xf32> to vector<8x8x32xf32>
    %33 = vector.shape_cast %32 : vector<8x8x32xf32> to vector<64x32xf32>
    %c3 = arith.constant 3 : index
    %c0_20 = arith.constant 0 : index
    %c0_21 = arith.constant 0 : index
    %34 = vector.load %arg4[%c3, %c0_20, %c0_21] : memref<4x32x16xf32, #tpu.memory_space<vmem>>, vector<1x32x16xf32>
    %35 = vector.shape_cast %34 : vector<1x32x16xf32> to vector<32x16xf32>
    %cst_22 = arith.constant dense<0.000000e+00> : vector<64x16xf32>
    %36 = tpu.matmul %33, %35, %cst_22 {dimension_numbers = #tpu.dot_dimension_numbers<[1], [0], [0], [1], [0, 0, 1, 1], [], []>} : vector<64x32xf32>, vector<32x16xf32>, vector<64x16xf32> -> vector<64x16xf32>
    %37 = arith.addf %31, %36 : vector<64x16xf32>
    %38 = vector.shape_cast %37 : vector<64x16xf32> to vector<8x8x16xf32>
    %c0_23 = arith.constant 0 : index
    %c0_24 = arith.constant 0 : index
    %c0_25 = arith.constant 0 : index
    %c0_26 = arith.constant 0 : index
    %39 = vector.load %arg5[%c0_23, %c0_24, %c0_25, %c0_26] : memref<1x8x8x16xf32, #tpu.memory_space<vmem>>, vector<1x8x8x16xf32>
    %40 = vector.shape_cast %39 : vector<1x8x8x16xf32> to vector<8x8x16xf32>
    %41 = vector.shape_cast %38 : vector<8x8x16xf32> to vector<1x8x8x16xf32>
    tpu.vector_store %arg5[%c0_23, %c0_24, %c0_25, %c0_26], %41 {strides = array<i32>} : memref<1x8x8x16xf32, #tpu.memory_space<vmem>>, vector<1x8x8x16xf32>,
    %c0_27 = arith.constant 0 : index
    %c0_28 = arith.constant 0 : index
    %c0_29 = arith.constant 0 : index
    %42 = vector.load %arg6[%c0_27, %c0_28, %c0_29] : memref<1x2x16xf32, #tpu.memory_space<vmem>>, vector<1x1x16xf32>
    %43 = vector.shape_cast %42 : vector<1x1x16xf32> to vector<1x16xf32>
    %cst_30 = arith.constant dense<0.000000e+00> : vector<16xf32>
    %44 = vector.multi_reduction <add>, %37, %cst_30 [0] : vector<64x16xf32> to vector<16xf32>
    %45 = vector.shape_cast %44 : vector<16xf32> to vector<1x16xf32>
    %46 = arith.addf %43, %45 : vector<1x16xf32>
    %c0_31 = arith.constant 0 : index
    %c0_32 = arith.constant 0 : index
    %c0_33 = arith.constant 0 : index
    %47 = vector.load %arg6[%c0_31, %c0_32, %c0_33] : memref<1x2x16xf32, #tpu.memory_space<vmem>>, vector<1x1x16xf32>
    %48 = vector.shape_cast %47 : vector<1x1x16xf32> to vector<1x16xf32>
    %49 = vector.shape_cast %46 : vector<1x16xf32> to vector<1x1x16xf32>
    tpu.vector_store %arg6[%c0_31, %c0_32, %c0_33], %49 {strides = array<i32>} : memref<1x2x16xf32, #tpu.memory_space<vmem>>, vector<1x1x16xf32>,
    %c0_34 = arith.constant 0 : index
    %c1_35 = arith.constant 1 : index
    %c0_36 = arith.constant 0 : index
    %50 = vector.load %arg6[%c0_34, %c1_35, %c0_36] : memref<1x2x16xf32, #tpu.memory_space<vmem>>, vector<1x1x16xf32>
    %51 = vector.shape_cast %50 : vector<1x1x16xf32> to vector<1x16xf32>
    %52 = arith.mulf %37, %37 : vector<64x16xf32>
    %cst_37 = arith.constant dense<0.000000e+00> : vector<16xf32>
    %53 = vector.multi_reduction <add>, %52, %cst_37 [0] : vector<64x16xf32> to vector<16xf32>
    %54 = vector.shape_cast %53 : vector<16xf32> to vector<1x16xf32>
    %55 = arith.addf %51, %54 : vector<1x16xf32>
    %c0_38 = arith.constant 0 : index
    %c1_39 = arith.constant 1 : index
    %c0_40 = arith.constant 0 : index
    %56 = vector.load %arg6[%c0_38, %c1_39, %c0_40] : memref<1x2x16xf32, #tpu.memory_space<vmem>>, vector<1x1x16xf32>
    %57 = vector.shape_cast %56 : vector<1x1x16xf32> to vector<1x16xf32>
    %58 = vector.shape_cast %55 : vector<1x16xf32> to vector<1x1x16xf32>
    tpu.vector_store %arg6[%c0_38, %c1_39, %c0_40], %58 {strides = array<i32>} : memref<1x2x16xf32, #tpu.memory_space<vmem>>, vector<1x1x16xf32>,
    return
  }
  func.func @transform_0(%arg0: i32, %arg1: i32) -> (i32, i32, i32, i32) {
    %c0_i32 = arith.constant 0 : i32
    %c0_i32_0 = arith.constant 0 : i32
    %c0_i32_1 = arith.constant 0 : i32
    return %arg0, %arg1, %c0_i32, %c0_i32_0 : i32, i32, i32, i32
  }
  func.func @transform_1(%arg0: i32, %arg1: i32) -> (i32, i32, i32, i32) {
    %c8_i32 = arith.constant 8 : i32
    %0 = arith.muli %arg1, %c8_i32 : i32
    %c8_i32_0 = arith.constant 8 : i32
    %1 = arith.addi %0, %c8_i32_0 : i32
    %c0_i32 = arith.constant 0 : i32
    %c0_i32_1 = arith.constant 0 : i32
    %c0_i32_2 = arith.constant 0 : i32
    return %arg0, %1, %c0_i32, %c0_i32_1 : i32, i32, i32, i32
  }
  func.func @transform_2(%arg0: i32, %arg1: i32) -> (i32, i32, i32) {
    %c0_i32 = arith.constant 0 : i32
    %c0_i32_0 = arith.constant 0 : i32
    %c0_i32_1 = arith.constant 0 : i32
    %c0_i32_2 = arith.constant 0 : i32
    return %c0_i32, %c0_i32_0, %c0_i32_1 : i32, i32, i32
  }
  func.func @transform_3(%arg0: i32, %arg1: i32) -> (i32, i32, i32, i32) {
    %c0_i32 = arith.constant 0 : i32
    %c0_i32_0 = arith.constant 0 : i32
    %c0_i32_1 = arith.constant 0 : i32
    return %arg0, %arg1, %c0_i32, %c0_i32_0 : i32, i32, i32, i32
  }
  func.func @transform_4(%arg0: i32, %arg1: i32) -> (i32, i32, i32) {
    %c0_i32 = arith.constant 0 : i32
    %c0_i32_0 = arith.constant 0 : i32
    %c0_i32_1 = arith.constant 0 : i32
    return %arg0, %c0_i32, %c0_i32_0 : i32, i32, i32
  }
}

module attributes {stable_mosaic.version = 11 : i64} {
  func.func @_instnorm_apply_kernel(%arg0: i32, %arg1: i32, %arg2: memref<2xf32, #tpu.memory_space<smem>>, %arg3: memref<2xf32, #tpu.memory_space<smem>>, %arg4: memref<1x8x128xf32, #tpu.memory_space<vmem>>, %arg5: memref<1x8x128xf32, #tpu.memory_space<vmem>>) attributes {dimension_semantics = [#tpu.dimension_semantics<parallel>, #tpu.dimension_semantics<parallel>], iteration_bounds = array<i64: 2, 1>, scalar_prefetch = 0 : i64, scratch_operands = 0 : i64, tpu.core_type = #tpu.core_type<tc>, window_params = [{transform_indices = @transform_0, window_bounds = array<i64: 2>}, {transform_indices = @transform_1, window_bounds = array<i64: 2>}, {transform_indices = @transform_2, window_bounds = array<i64: 1, 8, 128>}, {transform_indices = @transform_3, window_bounds = array<i64: 1, 8, 128>}]} {
    %c0 = arith.constant 0 : index
    %c0_0 = arith.constant 0 : index
    %c0_1 = arith.constant 0 : index
    %0 = vector.load %arg4[%c0, %c0_0, %c0_1] : memref<1x8x128xf32, #tpu.memory_space<vmem>>, vector<1x8x128xf32>
    %1 = arith.index_cast %arg0 : i32 to index
    %2 = memref.load %arg2[%1] : memref<2xf32, #tpu.memory_space<smem>>
    %3 = vector.broadcast %2 : f32 to vector<1x8x128xf32>
    %4 = arith.mulf %0, %3 : vector<1x8x128xf32>
    %5 = arith.index_cast %arg0 : i32 to index
    %6 = memref.load %arg3[%5] : memref<2xf32, #tpu.memory_space<smem>>
    %7 = vector.broadcast %6 : f32 to vector<1x8x128xf32>
    %8 = arith.addf %4, %7 : vector<1x8x128xf32>
    %c0_2 = arith.constant 0 : index
    %c0_3 = arith.constant 0 : index
    %c0_4 = arith.constant 0 : index
    %9 = vector.load %arg5[%c0_2, %c0_3, %c0_4] : memref<1x8x128xf32, #tpu.memory_space<vmem>>, vector<1x8x128xf32>
    tpu.vector_store %arg5[%c0_2, %c0_3, %c0_4], %8 {strides = array<i32>} : memref<1x8x128xf32, #tpu.memory_space<vmem>>, vector<1x8x128xf32>,
    return
  }
  func.func @transform_0(%arg0: i32, %arg1: i32) -> i32 {
    %c0_i32 = arith.constant 0 : i32
    %c0_i32_0 = arith.constant 0 : i32
    return %c0_i32 : i32
  }
  func.func @transform_1(%arg0: i32, %arg1: i32) -> i32 {
    %c0_i32 = arith.constant 0 : i32
    %c0_i32_0 = arith.constant 0 : i32
    return %c0_i32 : i32
  }
  func.func @transform_2(%arg0: i32, %arg1: i32) -> (i32, i32, i32) {
    %c0_i32 = arith.constant 0 : i32
    %c0_i32_0 = arith.constant 0 : i32
    return %arg0, %arg1, %c0_i32 : i32, i32, i32
  }
  func.func @transform_3(%arg0: i32, %arg1: i32) -> (i32, i32, i32) {
    %c0_i32 = arith.constant 0 : i32
    %c0_i32_0 = arith.constant 0 : i32
    return %arg0, %arg1, %c0_i32 : i32, i32, i32
  }
}

module attributes {stable_mosaic.version = 11 : i64} {
  func.func @_down_plain_kernel(%arg0: i32, %arg1: i32, %arg2: memref<1x4x5x64xf32, #tpu.memory_space<vmem>>, %arg3: memref<1x1x5x64xf32, #tpu.memory_space<vmem>>, %arg4: memref<4x64x32xf32, #tpu.memory_space<vmem>>, %arg5: memref<1x4x4x32xf32, #tpu.memory_space<vmem>>) attributes {dimension_semantics = [#tpu.dimension_semantics<parallel>, #tpu.dimension_semantics<parallel>], iteration_bounds = array<i64: 2, 1>, scalar_prefetch = 0 : i64, scratch_operands = 0 : i64, tpu.core_type = #tpu.core_type<tc>, window_params = [{transform_indices = @transform_0, window_bounds = array<i64: 1, 4, 5, 64>}, {transform_indices = @transform_1, window_bounds = array<i64: 1, 1, 5, 64>}, {pipeline_mode = #tpu.pipeline_mode<synchronous>, transform_indices = @transform_2, window_bounds = array<i64: 4, 64, 32>}, {transform_indices = @transform_3, window_bounds = array<i64: 1, 4, 4, 32>}]} {
    %c0 = arith.constant 0 : index
    %c0_0 = arith.constant 0 : index
    %c0_1 = arith.constant 0 : index
    %c0_2 = arith.constant 0 : index
    %0 = vector.load %arg2[%c0, %c0_0, %c0_1, %c0_2] : memref<1x4x5x64xf32, #tpu.memory_space<vmem>>, vector<1x4x5x64xf32>
    %1 = vector.shape_cast %0 : vector<1x4x5x64xf32> to vector<4x5x64xf32>
    %c0_3 = arith.constant 0 : index
    %c0_4 = arith.constant 0 : index
    %c0_5 = arith.constant 0 : index
    %c0_6 = arith.constant 0 : index
    %2 = vector.load %arg3[%c0_3, %c0_4, %c0_5, %c0_6] : memref<1x1x5x64xf32, #tpu.memory_space<vmem>>, vector<1x1x5x64xf32>
    %3 = vector.shape_cast %2 : vector<1x1x5x64xf32> to vector<1x5x64xf32>
    %4 = tpu.concatenate %1, %3 in 0 : vector<4x5x64xf32>, vector<1x5x64xf32> -> vector<5x5x64xf32>
    %cst = arith.constant 0.000000e+00 : f32
    %5 = vector.broadcast %cst : f32 to vector<5x5x64xf32>
    %6 = arith.cmpf oge, %4, %5 : vector<5x5x64xf32>
    %cst_7 = arith.constant 2.000000e-01 : f32
    %7 = vector.broadcast %cst_7 : f32 to vector<5x5x64xf32>
    %8 = arith.mulf %7, %4 : vector<5x5x64xf32>
    %9 = arith.select %6, %4, %8 : vector<5x5x64xi1>, vector<5x5x64xf32>
    %cst_8 = arith.constant 0.000000e+00 : f32
    %10 = vector.broadcast %cst_8 : f32 to vector<16x32xf32>
    %11 = vector.extract_strided_slice %9 {offsets = [0, 0, 0], sizes = [4, 4, 64], strides = [1, 1, 1]} : vector<5x5x64xf32> to vector<4x4x64xf32>
    %12 = vector.shape_cast %11 : vector<4x4x64xf32> to vector<16x64xf32>
    %c0_9 = arith.constant 0 : index
    %c0_10 = arith.constant 0 : index
    %c0_11 = arith.constant 0 : index
    %13 = vector.load %arg4[%c0_9, %c0_10, %c0_11] : memref<4x64x32xf32, #tpu.memory_space<vmem>>, vector<1x64x32xf32>
    %14 = vector.shape_cast %13 : vector<1x64x32xf32> to vector<64x32xf32>
    %cst_12 = arith.constant dense<0.000000e+00> : vector<16x32xf32>
    %15 = tpu.matmul %12, %14, %cst_12 {dimension_numbers = #tpu.dot_dimension_numbers<[1], [0], [0], [1], [0, 0, 1, 1], [], []>} : vector<16x64xf32>, vector<64x32xf32>, vector<16x32xf32> -> vector<16x32xf32>
    %16 = arith.addf %10, %15 : vector<16x32xf32>
    %17 = vector.extract_strided_slice %9 {offsets = [0, 1, 0], sizes = [4, 4, 64], strides = [1, 1, 1]} : vector<5x5x64xf32> to vector<4x4x64xf32>
    %18 = vector.shape_cast %17 : vector<4x4x64xf32> to vector<16x64xf32>
    %c1 = arith.constant 1 : index
    %c0_13 = arith.constant 0 : index
    %c0_14 = arith.constant 0 : index
    %19 = vector.load %arg4[%c1, %c0_13, %c0_14] : memref<4x64x32xf32, #tpu.memory_space<vmem>>, vector<1x64x32xf32>
    %20 = vector.shape_cast %19 : vector<1x64x32xf32> to vector<64x32xf32>
    %cst_15 = arith.constant dense<0.000000e+00> : vector<16x32xf32>
    %21 = tpu.matmul %18, %20, %cst_15 {dimension_numbers = #tpu.dot_dimension_numbers<[1], [0], [0], [1], [0, 0, 1, 1], [], []>} : vector<16x64xf32>, vector<64x32xf32>, vector<16x32xf32> -> vector<16x32xf32>
    %22 = arith.addf %16, %21 : vector<16x32xf32>
    %23 = vector.extract_strided_slice %9 {offsets = [1, 0, 0], sizes = [4, 4, 64], strides = [1, 1, 1]} : vector<5x5x64xf32> to vector<4x4x64xf32>
    %24 = vector.shape_cast %23 : vector<4x4x64xf32> to vector<16x64xf32>
    %c2 = arith.constant 2 : index
    %c0_16 = arith.constant 0 : index
    %c0_17 = arith.constant 0 : index
    %25 = vector.load %arg4[%c2, %c0_16, %c0_17] : memref<4x64x32xf32, #tpu.memory_space<vmem>>, vector<1x64x32xf32>
    %26 = vector.shape_cast %25 : vector<1x64x32xf32> to vector<64x32xf32>
    %cst_18 = arith.constant dense<0.000000e+00> : vector<16x32xf32>
    %27 = tpu.matmul %24, %26, %cst_18 {dimension_numbers = #tpu.dot_dimension_numbers<[1], [0], [0], [1], [0, 0, 1, 1], [], []>} : vector<16x64xf32>, vector<64x32xf32>, vector<16x32xf32> -> vector<16x32xf32>
    %28 = arith.addf %22, %27 : vector<16x32xf32>
    %29 = vector.extract_strided_slice %9 {offsets = [1, 1, 0], sizes = [4, 4, 64], strides = [1, 1, 1]} : vector<5x5x64xf32> to vector<4x4x64xf32>
    %30 = vector.shape_cast %29 : vector<4x4x64xf32> to vector<16x64xf32>
    %c3 = arith.constant 3 : index
    %c0_19 = arith.constant 0 : index
    %c0_20 = arith.constant 0 : index
    %31 = vector.load %arg4[%c3, %c0_19, %c0_20] : memref<4x64x32xf32, #tpu.memory_space<vmem>>, vector<1x64x32xf32>
    %32 = vector.shape_cast %31 : vector<1x64x32xf32> to vector<64x32xf32>
    %cst_21 = arith.constant dense<0.000000e+00> : vector<16x32xf32>
    %33 = tpu.matmul %30, %32, %cst_21 {dimension_numbers = #tpu.dot_dimension_numbers<[1], [0], [0], [1], [0, 0, 1, 1], [], []>} : vector<16x64xf32>, vector<64x32xf32>, vector<16x32xf32> -> vector<16x32xf32>
    %34 = arith.addf %28, %33 : vector<16x32xf32>
    %35 = vector.shape_cast %34 : vector<16x32xf32> to vector<4x4x32xf32>
    %c0_22 = arith.constant 0 : index
    %c0_23 = arith.constant 0 : index
    %c0_24 = arith.constant 0 : index
    %c0_25 = arith.constant 0 : index
    %36 = vector.load %arg5[%c0_22, %c0_23, %c0_24, %c0_25] : memref<1x4x4x32xf32, #tpu.memory_space<vmem>>, vector<1x4x4x32xf32>
    %37 = vector.shape_cast %36 : vector<1x4x4x32xf32> to vector<4x4x32xf32>
    %38 = vector.shape_cast %35 : vector<4x4x32xf32> to vector<1x4x4x32xf32>
    tpu.vector_store %arg5[%c0_22, %c0_23, %c0_24, %c0_25], %38 {strides = array<i32>} : memref<1x4x4x32xf32, #tpu.memory_space<vmem>>, vector<1x4x4x32xf32>,
    return
  }
  func.func @transform_0(%arg0: i32, %arg1: i32) -> (i32, i32, i32, i32) {
    %c0_i32 = arith.constant 0 : i32
    %c0_i32_0 = arith.constant 0 : i32
    %c0_i32_1 = arith.constant 0 : i32
    return %arg0, %arg1, %c0_i32, %c0_i32_0 : i32, i32, i32, i32
  }
  func.func @transform_1(%arg0: i32, %arg1: i32) -> (i32, i32, i32, i32) {
    %c4_i32 = arith.constant 4 : i32
    %0 = arith.muli %arg1, %c4_i32 : i32
    %c4_i32_0 = arith.constant 4 : i32
    %1 = arith.addi %0, %c4_i32_0 : i32
    %c0_i32 = arith.constant 0 : i32
    %c0_i32_1 = arith.constant 0 : i32
    %c0_i32_2 = arith.constant 0 : i32
    return %arg0, %1, %c0_i32, %c0_i32_1 : i32, i32, i32, i32
  }
  func.func @transform_2(%arg0: i32, %arg1: i32) -> (i32, i32, i32) {
    %c0_i32 = arith.constant 0 : i32
    %c0_i32_0 = arith.constant 0 : i32
    %c0_i32_1 = arith.constant 0 : i32
    %c0_i32_2 = arith.constant 0 : i32
    return %c0_i32, %c0_i32_0, %c0_i32_1 : i32, i32, i32
  }
  func.func @transform_3(%arg0: i32, %arg1: i32) -> (i32, i32, i32, i32) {
    %c0_i32 = arith.constant 0 : i32
    %c0_i32_0 = arith.constant 0 : i32
    %c0_i32_1 = arith.constant 0 : i32
    return %arg0, %arg1, %c0_i32, %c0_i32_0 : i32, i32, i32, i32
  }
}

</mosaic_0001>

<llo_original>
// kernel: encoder_forward.5
$region0: #{encoder_forward.5}
  #allocation0 [shape = 'u32[]', space=smem, size = 0x4, offset = 0x4, fixed_abs, tag = 'smem constant byte address 0x4 - core index']
  #allocation1 [shape = 'u32[144,128]{1,0:T(1,128)}', space=vmem, size = 0x12000, scoped, tag = 'internal scratch']
  %s0 = inlined_call_operand.vmem [shape: f32[2,9,9,32], index: 0, kind: input, shape index: {}, may-alias: {0,1}]
  %s1 = inlined_call_operand.vmem [shape: f32[2,9,9,32], index: 1, kind: input, shape index: {}, may-alias: {0,1}]
  %s2 = inlined_call_operand.vmem [shape: f32[4,32,16], index: 2, kind: input, shape index: {}]
  %s3 = inlined_call_operand.vmem [shape: f32[2,8,8,16], index: 3, kind: output, shape index: {0}]
  %s4 = inlined_call_operand.vmem [shape: f32[2,2,16], index: 4, kind: output, shape index: {1}]
  %5 = xla_tuple %s3, %s4
  %s6 = sld [smem:[#allocation0]]
  $region57: #{encoder_forward.5} parent=0
    _
  %s8 = ssub.s32 1, %s6
  %s9 = scalar_select 0, %s8, %s6
  loop: start=0, step=1, limit=4
  $region2: #{encoder_forward.5} parent=0 // loop_pre_header
    _
  $region3: #{encoder_forward.5} parent=0 // loop_header
    %s11 = sphi 0, %s15
    %p12 = scmp.ge.s32.totalorder %s11, 4
    %s18 = sphi 0, %s30
    %s19 = sphi 0, %s26
    %s20 = sphi 0, %s18
    %s21 = sphi 0, %s19
    %s22 = sphi 0, %s20
    %s23 = sphi 0, %s21
    %s35 = sphi 0, %s37
    %s38 = sphi 0, %s35
    %s39 = sphi 0, %s38
    %s55 = sphi 0, %s39
    %s67 = sphi 0, %s69
    %s70 = sphi 0, %s67
    %s71 = sphi 0, %s70
    %s87 = sphi 0, %s71
    %s91 = sphi 0, %s91
    %s93 = sphi 0, %s91
    %s94 = sphi 0, %s93
    %s108 = sphi 0, %s94
    %s116 = sphi 0, %s118
    %s119 = sphi 0, %s116
    %s120 = sphi 0, %s119
    %s136 = sphi 0, %s120
    %s142 = sphi 0, %s144
    %s145 = sphi 0, %s142
    %s146 = sphi 0, %s145
    %s162 = sphi 0, %s146
  $region4: #{encoder_forward.5} parent=0 // loop_header_branch
    %14 = sbr.rel (%p12) target = $region8
  $region5: #{encoder_forward.5} parent=0 // loop_body
    %s16 = ssub.s32 %s11, 1
    %s17 = ssub.s32 %s11, 2
    %s24 = sadd.s32 1, %s19
    %p25 = scmp.ge.s32.totalorder %s24, 1
    %s26 = scalar_select %p25, 0, %s24
    %s27 = sadd.s32 1, %s18
    %s28 = scalar_select %p25, %s27, %s18
    %p29 = scmp.ge.s32.totalorder %s28, 2
    %s30 = scalar_select %p29, 0, %s28
    %s31 = ssub.s32 %s18, %s30
    %s32 = ssub.s32 %s19, %s26
    %s33 = sor.u32 %s31, %s32
    %p34 = scmp.eq.s32.totalorder %s33, 0
    %s36 = sadd.s32 %s35, 1
    %s37 = scalar_select %p34, %s35, %s36
    %p40 = pneg %p34
    %p41 = scmp.eq.s32.totalorder %s11, 1
    %p42 = por %p40, %p41
    %p43 = scmp.ne.s32.totalorder %s35, %s38
    %p44 = scmp.eq.s32.totalorder %s11, 0
    %p45 = por %p43, %p44
    %p46 = scmp.ne.s32.totalorder %s35, %s38
    %p47 = scmp.eq.s32.totalorder %s16, 1
    %p48 = por %p46, %p47
    %p49 = scmp.ne.s32.totalorder %s38, %s39
    %p50 = scmp.eq.s32.totalorder %s16, 0
    %p51 = por %p49, %p50
    %p52 = scmp.ne.s32.totalorder %s38, %s39
    %p53 = scmp.eq.s32.totalorder %s17, 1
    %p54 = por %p52, %p53
    %p56 = scmp.ne.s32.totalorder %s39, %s55
    %p57 = scmp.eq.s32.totalorder %s17, 0
    %p58 = por %p56, %p57
    %s59 = smul.u32 %s19, 8
    %s60 = sadd.s32 %s59, 8
    %s61 = smul.u32 %s26, 8
    %s62 = sadd.s32 %s61, 8
    %s63 = ssub.s32 %s18, %s30
    %s64 = ssub.s32 %s60, %s62
    %s65 = sor.u32 %s63, %s64
    %p66 = scmp.eq.s32.totalorder %s65, 0
    %s68 = sadd.s32 %s67, 1
    %s69 = scalar_select %p66, %s67, %s68
    %p72 = pneg %p66
    %p73 = scmp.eq.s32.totalorder %s11, 1
    %p74 = por %p72, %p73
    %p75 = scmp.ne.s32.totalorder %s67, %s70
    %p76 = scmp.eq.s32.totalorder %s11, 0
    %p77 = por %p75, %p76
    %p78 = scmp.ne.s32.totalorder %s67, %s70
    %p79 = scmp.eq.s32.totalorder %s16, 1
    %p80 = por %p78, %p79
    %p81 = scmp.ne.s32.totalorder %s70, %s71
    %p82 = scmp.eq.s32.totalorder %s16, 0
    %p83 = por %p81, %p82
    %p84 = scmp.ne.s32.totalorder %s70, %s71
    %p85 = scmp.eq.s32.totalorder %s17, 1
    %p86 = por %p84, %p85
    %p88 = scmp.ne.s32.totalorder %s71, %s87
    %p89 = scmp.eq.s32.totalorder %s17, 0
    %p90 = por %p88, %p89
    %s92 = sadd.s32 %s91, 1
    %p95 = scmp.eq.s32.totalorder %s11, 1
    %p96 = scmp.ne.s32.totalorder %s91, %s93
    %p97 = scmp.eq.s32.totalorder %s11, 0
    %p98 = por %p96, %p97
    %p99 = scmp.ne.s32.totalorder %s91, %s93
    %p100 = scmp.eq.s32.totalorder %s16, 1
    %p101 = por %p99, %p100
    %p102 = scmp.ne.s32.totalorder %s93, %s94
    %p103 = scmp.eq.s32.totalorder %s16, 0
    %p104 = por %p102, %p103
    %p105 = scmp.ne.s32.totalorder %s93, %s94
    %p106 = scmp.eq.s32.totalorder %s17, 1
    %p107 = por %p105, %p106
    %p109 = scmp.ne.s32.totalorder %s94, %s108
    %p110 = scmp.eq.s32.totalorder %s17, 0
    %p111 = por %p109, %p110
    %s112 = ssub.s32 %s18, %s30
    %s113 = ssub.s32 %s19, %s26
    %s114 = sor.u32 %s112, %s113
    %p115 = scmp.eq.s32.totalorder %s114, 0
    %s117 = sadd.s32 %s116, 1
    %s118 = scalar_select %p115, %s116, %s117
    %p121 = pneg %p115
    %p122 = scmp.eq.s32.totalorder %s11, 1
    %p123 = por %p121, %p122
    %p124 = scmp.ne.s32.totalorder %s116, %s119
    %p125 = scmp.eq.s32.totalorder %s11, 0
    %p126 = por %p124, %p125
    %p127 = scmp.ne.s32.totalorder %s116, %s119
    %p128 = scmp.eq.s32.totalorder %s16, 1
    %p129 = por %p127, %p128
    %p130 = scmp.ne.s32.totalorder %s119, %s120
    %p131 = scmp.eq.s32.totalorder %s16, 0
    %p132 = por %p130, %p131
    %p133 = scmp.ne.s32.totalorder %s119, %s120
    %p134 = scmp.eq.s32.totalorder %s17, 1
    %p135 = por %p133, %p134
    %p137 = scmp.ne.s32.totalorder %s120, %s136
    %p138 = scmp.eq.s32.totalorder %s17, 0
    %p139 = por %p137, %p138
    %s140 = ssub.s32 %s18, %s30
    %p141 = scmp.eq.s32.totalorder %s140, 0
    %s143 = sadd.s32 %s142, 1
    %s144 = scalar_select %p141, %s142, %s143
    %p147 = pneg %p141
    %p148 = scmp.eq.s32.totalorder %s11, 1
    %p149 = por %p147, %p148
    %p150 = scmp.ne.s32.totalorder %s142, %s145
    %p151 = scmp.eq.s32.totalorder %s11, 0
    %p152 = por %p150, %p151
    %p153 = scmp.ne.s32.totalorder %s142, %s145
    %p154 = scmp.eq.s32.totalorder %s16, 1
    %p155 = por %p153, %p154
    %p156 = scmp.ne.s32.totalorder %s145, %s146
    %p157 = scmp.eq.s32.totalorder %s16, 0
    %p158 = por %p156, %p157
    %p159 = scmp.ne.s32.totalorder %s145, %s146
    %p160 = scmp.eq.s32.totalorder %s17, 1
    %p161 = por %p159, %p160
    %p163 = scmp.ne.s32.totalorder %s146, %s162
    %p164 = scmp.eq.s32.totalorder %s17, 0
    %p165 = por %p163, %p164
    %p166 = scmp.le.s32.totalorder 1, %s11
    %p167 = scmp.lt.s32.totalorder %s11, 3
    %p168 = pnand %p166, %p167
    %p169 = pneg %p168
    // Predicated region
    $region9: #{encoder_forward.5} parent=5 // pred_check
      _
    $region10: #{encoder_forward.5} parent=5 // pred_check_branch
      %171 = sbr.rel (%p168) target = $region12
    $region11: #{encoder_forward.5} parent=5 // pred_region
      %s172 = ssub.s32 %s11, 1
      // Predicated region
      $region13: #{encoder_forward.5} parent=11 // pred_check
        %p173 = pneg %p104
      $region14: #{encoder_forward.5} parent=11 // pred_check_branch
        %175 = sbr.rel (%p173) target = $region16
      $region15: #{encoder_forward.5} parent=11 // pred_region
        _
      $region16: #{encoder_forward.5} parent=11 // pred_fallthru
        _
    $region12: #{encoder_forward.5} parent=5 // pred_fallthru
      _
    %p176 = scmp.lt.s32.totalorder %s11, 2
    // Predicated region
    $region17: #{encoder_forward.5} parent=5 // pred_check
      %p177 = pneg %p176
    $region18: #{encoder_forward.5} parent=5 // pred_check_branch
      %179 = sbr.rel (%p177) target = $region20
    $region19: #{encoder_forward.5} parent=5 // pred_region
      // Predicated region
      $region21: #{encoder_forward.5} parent=19 // pred_check
        %p180 = pneg %p45
      $region22: #{encoder_forward.5} parent=19 // pred_check_branch
        %182 = sbr.rel (%p180) target = $region24
      $region23: #{encoder_forward.5} parent=19 // pred_region
        %s183 = smul.u32 8, %s19
        %s184 = ssub.s32 9, %s183
        %p185 = scmp.lt.s32.totalorder %s184, 8
        %s186 = scalar_select %p185, %s184, 8
        %s187 = smul.u32 128, %s186
        %s188 = smul.u32 %s187, 2
        %p189 = scmp.lt.s32.totalorder %s18, 1
        %s190 = scalar_select %p189, %s18, 1
        %p191 = scmp.lt.s32.totalorder %s183, 8
        %s192 = scalar_select %p191, %s183, 8
        %s193 = smul.addr %s192, 2
        %s194 = smul.addr %s190, 18
        %s195 = sadd.s32 %s193, %s194
        %s196 = smul.addr %s195, 8
        %s197 = scalar_lea.vmem %s0, %s196
        %s198 = smul.u32 8, %s19
        %s199 = ssub.s32 9, %s198
        %p200 = scmp.lt.s32.totalorder %s199, 8
        %s201 = scalar_select %p200, %s199, 8
        %s202 = smul.u32 128, %s201
        %s203 = smul.u32 %s202, 2
      $region24: #{encoder_forward.5} parent=19 // pred_fallthru
        _
      // Predicated region
      $region25: #{encoder_forward.5} parent=19 // pred_check
        %p204 = pneg %p77
      $region26: #{encoder_forward.5} parent=19 // pred_check_branch
        %206 = sbr.rel (%p204) target = $region28
      $region27: #{encoder_forward.5} parent=19 // pred_region
        %s207 = smul.u32 %s19, 8
        %s208 = sadd.s32 %s207, 8
        %p209 = scmp.lt.s32.totalorder %s18, 1
        %s210 = scalar_select %p209, %s18, 1
        %p211 = scmp.lt.s32.totalorder %s208, 8
        %s212 = scalar_select %p211, %s208, 8
        %s213 = smul.addr %s212, 2
        %s214 = smul.addr %s210, 18
        %s215 = sadd.s32 %s213, %s214
        %s216 = smul.addr %s215, 8
        %s217 = scalar_lea.vmem %s1, %s216
        %s218 = smul.u32 %s19, 8
        %s219 = sadd.s32 %s218, 8
      $region28: #{encoder_forward.5} parent=19 // pred_fallthru
        _
    $region20: #{encoder_forward.5} parent=5 // pred_fallthru
      _
    %p220 = scmp.le.s32.totalorder 1, %s11
    %p221 = scmp.lt.s32.totalorder %s11, 3
    %p222 = pnand %p220, %p221
    %p223 = pneg %p222
    // Predicated region
    $region29: #{encoder_forward.5} parent=5 // pred_check
      _
    $region30: #{encoder_forward.5} parent=5 // pred_check_branch
      %225 = sbr.rel (%p222) target = $region32
    $region31: #{encoder_forward.5} parent=5 // pred_region
      %s226 = ssub.s32 %s11, 1
      %s227 = smul.u32 8, %s21
      %s228 = ssub.s32 9, %s227
      %p229 = scmp.lt.s32.totalorder %s228, 8
      %s230 = scalar_select %p229, %s228, 8
      %s231 = smul.u32 128, %s230
      %s232 = smul.u32 %s231, 2
      %p233 = scmp.lt.s32.totalorder %s20, 1
      %s234 = scalar_select %p233, %s20, 1
      %p235 = scmp.lt.s32.totalorder %s227, 8
      %s236 = scalar_select %p235, %s227, 8
      %s237 = smul.addr %s236, 2
      %s238 = smul.addr %s234, 18
      %s239 = sadd.s32 %s237, %s238
      %s240 = smul.addr %s239, 8
      %s241 = scalar_lea.vmem %s0, %s240
      %p242 = pneg %p51
      %p243 = pneg %p48
      %s244 = smul.u32 %s21, 8
      %s245 = sadd.s32 %s244, 8
      %p246 = scmp.lt.s32.totalorder %s20, 1
      %s247 = scalar_select %p246, %s20, 1
      %p248 = scmp.lt.s32.totalorder %s245, 8
      %s249 = scalar_select %p248, %s245, 8
      %s250 = smul.addr %s249, 2
      %s251 = smul.addr %s247, 18
      %s252 = sadd.s32 %s250, %s251
      %s253 = smul.addr %s252, 8
      %s254 = scalar_lea.vmem %s1, %s253
      %p255 = pneg %p83
      %p256 = pneg %p80
      %p257 = pneg %p104
      %p258 = pneg %p101
      %p259 = pneg %p132
      %p260 = pneg %p129
      %s261 = smul.u32 8, %s21
      %p262 = scmp.lt.s32.totalorder %s20, 1
      %s263 = scalar_select %p262, %s20, 1
      %p264 = scmp.lt.s32.totalorder %s261, 7
      %s265 = scalar_select %p264, %s261, 7
      %s266 = smul.addr %s263, 8
      %s267 = sadd.s32 %s265, %s266
      %s268 = smul.addr %s267, 8
      %s269 = scalar_lea.vmem %s3, %s268
      %p270 = pneg %p158
      %p271 = pneg %p155
      %p272 = scmp.lt.s32.totalorder %s20, 1
      %s273 = scalar_select %p272, %s20, 1
      %s274 = smul.addr %s273, 2
      %s275 = scalar_lea.vmem %s4, %s274
      %s276 = smul.u32 8, %s21
      %s277 = ssub.s32 9, %s276
      %p278 = scmp.lt.s32.totalorder %s277, 8
      %s279 = scalar_select %p278, %s277, 8
      %s280 = smul.u32 128, %s279
      %s281 = smul.u32 %s280, 2
      %p282 = scmp.lt.s32.totalorder %s20, 1
      %s283 = scalar_select %p282, %s20, 1
      %p284 = scmp.lt.s32.totalorder %s276, 8
      %s285 = scalar_select %p284, %s276, 8
      %s286 = smul.addr %s285, 2
      %s287 = smul.addr %s283, 18
      %s288 = sadd.s32 %s286, %s287
      %s289 = smul.addr %s288, 8
      %s290 = scalar_lea.vmem %s0, %s289
      %s291 = smul.u32 8, %s21
      %s292 = ssub.s32 9, %s291
      %p293 = scmp.lt.s32.totalorder %s292, 8
      %s294 = scalar_select %p293, %s292, 8
      %s295 = smul.u32 128, %s294
      %s296 = smul.u32 %s295, 2
      %s297 = smul.u32 %s21, 8
      %s298 = sadd.s32 %s297, 8
      %p299 = scmp.lt.s32.totalorder %s20, 1
      %s300 = scalar_select %p299, %s20, 1
      %p301 = scmp.lt.s32.totalorder %s298, 8
      %s302 = scalar_select %p301, %s298, 8
      %s303 = smul.addr %s302, 2
      %s304 = smul.addr %s300, 18
      %s305 = sadd.s32 %s303, %s304
      %s306 = smul.addr %s305, 8
      %s307 = scalar_lea.vmem %s1, %s306
      %s308 = smul.u32 %s21, 8
      %s309 = sadd.s32 %s308, 8
      %s310 = smul.u32 8, %s21
      %p311 = scmp.lt.s32.totalorder %s20, 1
      %s312 = scalar_select %p311, %s20, 1
      %p313 = scmp.lt.s32.totalorder %s310, 7
      %s314 = scalar_select %p313, %s310, 7
      %s315 = smul.addr %s312, 8
      %s316 = sadd.s32 %s314, %s315
      %s317 = smul.addr %s316, 8
      %s318 = scalar_lea.vmem %s3, %s317
      %s319 = smul.u32 8, %s21
      %p320 = scmp.lt.s32.totalorder %s20, 1
      %s321 = scalar_select %p320, %s20, 1
      %s322 = smul.addr %s321, 2
      %s323 = scalar_lea.vmem %s4, %s322
      %p324 = scmp.eq.s32.totalorder %s21, 0
      // Predicated region
      $region33: #{encoder_forward.5} parent=31 // pred_check
        %p325 = pneg %p324
      $region34: #{encoder_forward.5} parent=31 // pred_check_branch
        %327 = sbr.rel (%p325) target = $region36
      $region35: #{encoder_forward.5} parent=31 // pred_region
        %vm328 = vcmask 123904
        %329 = vst.msk [vmem:[%s323] sm:$0x3] %vm328, 0.0
      $region36: #{encoder_forward.5} parent=31 // pred_fallthru
        _
      %v330 = vld [vmem:[%s290] sm:$0xff]
      %v331 = vld [vmem:[%s290 + $0x8] sm:$0x1]
      %v332 = vld [vmem:[%s290 + $0x10] sm:$0xff]
      %v333 = vld [vmem:[%s290 + $0x18] sm:$0x1]
      %v334 = vld [vmem:[%s290 + $0x20] sm:$0xff]
      %v335 = vld [vmem:[%s290 + $0x28] sm:$0x1]
      %v336 = vld [vmem:[%s290 + $0x30] sm:$0xff]
      %v337 = vld [vmem:[%s290 + $0x38] sm:$0x1]
      %v338 = vld [vmem:[%s290 + $0x40] sm:$0xff]
      %v339 = vld [vmem:[%s290 + $0x48] sm:$0x1]
      %v340 = vld [vmem:[%s290 + $0x50] sm:$0xff]
      %v341 = vld [vmem:[%s290 + $0x58] sm:$0x1]
      %v342 = vld [vmem:[%s290 + $0x60] sm:$0xff]
      %v343 = vld [vmem:[%s290 + $0x68] sm:$0x1]
      %v344 = vld [vmem:[%s290 + $0x70] sm:$0xff]
      %v345 = vld [vmem:[%s290 + $0x78] sm:$0x1]
      %v346 = vld [vmem:[%s307] sm:$0xff]
      %v347 = vld [vmem:[%s307 + $0x8] sm:$0x1]
      %vm348 = vcmp.ge.f32.partialorder %v330, 0.0
      %vm349 = vcmp.ge.f32.partialorder %v331, 0.0
      %vm350 = vcmp.ge.f32.partialorder %v332, 0.0
      %vm351 = vcmp.ge.f32.partialorder %v333, 0.0
      %vm352 = vcmp.ge.f32.partialorder %v334, 0.0
      %vm353 = vcmp.ge.f32.partialorder %v335, 0.0
      %vm354 = vcmp.ge.f32.partialorder %v336, 0.0
      %vm355 = vcmp.ge.f32.partialorder %v337, 0.0
      %vm356 = vcmp.ge.f32.partialorder %v338, 0.0
      %vm357 = vcmp.ge.f32.partialorder %v339, 0.0
      %vm358 = vcmp.ge.f32.partialorder %v340, 0.0
      %vm359 = vcmp.ge.f32.partialorder %v341, 0.0
      %vm360 = vcmp.ge.f32.partialorder %v342, 0.0
      %vm361 = vcmp.ge.f32.partialorder %v343, 0.0
      %vm362 = vcmp.ge.f32.partialorder %v344, 0.0
      %vm363 = vcmp.ge.f32.partialorder %v345, 0.0
      %vm364 = vcmp.ge.f32.partialorder %v346, 0.0
      %vm365 = vcmp.ge.f32.partialorder %v347, 0.0
      %v366 = vmul.f32 %v330, 0.2
      %v367 = vmul.f32 %v331, 0.2
      %v368 = vmul.f32 %v332, 0.2
      %v369 = vmul.f32 %v333, 0.2
      %v370 = vmul.f32 %v334, 0.2
      %v371 = vmul.f32 %v335, 0.2
      %v372 = vmul.f32 %v336, 0.2
      %v373 = vmul.f32 %v337, 0.2
      %v374 = vmul.f32 %v338, 0.2
      %v375 = vmul.f32 %v339, 0.2
      %v376 = vmul.f32 %v340, 0.2
      %v377 = vmul.f32 %v341, 0.2
      %v378 = vmul.f32 %v342, 0.2
      %v379 = vmul.f32 %v343, 0.2
      %v380 = vmul.f32 %v344, 0.2
      %v381 = vmul.f32 %v345, 0.2
      %v382 = vmul.f32 %v346, 0.2
      %v383 = vmul.f32 %v347, 0.2
      %v384 = vsel %vm348, %v330, %v366
      %v385 = vsel %vm349, %v331, %v367
      %v386 = vsel %vm350, %v332, %v368
      %v387 = vsel %vm351, %v333, %v369
      %v388 = vsel %vm352, %v334, %v370
      %v389 = vsel %vm353, %v335, %v371
      %v390 = vsel %vm354, %v336, %v372
      %v391 = vsel %vm355, %v337, %v373
      %v392 = vsel %vm356, %v338, %v374
      %v393 = vsel %vm357, %v339, %v375
      %v394 = vsel %vm358, %v340, %v376
      %v395 = vsel %vm359, %v341, %v377
      %v396 = vsel %vm360, %v342, %v378
      %v397 = vsel %vm361, %v343, %v379
      %v398 = vsel %vm362, %v344, %v380
      %v399 = vsel %vm363, %v345, %v381
      %v400 = vsel %vm364, %v346, %v382
      %v401 = vsel %vm365, %v347, %v383
      %v402 = vld [vmem:[%s2] sm:$0xff]
      %v403 = vld [vmem:[%s2 + $0x8] sm:$0xff]
      %v404 = vld [vmem:[%s2 + $0x10] sm:$0xff]
      %v405 = vld [vmem:[%s2 + $0x18] sm:$0xff]
      %vm422 = vcmask 1046528
      %v423 = vrot.slane %v384, 1
      %v424 = vrot.slane %v385, 1
      %v425 = vsel %vm422, %v423, %v424
      %v426 = vrot.slane %v386, 1
      %v427 = vrot.slane %v387, 1
      %v428 = vsel %vm422, %v426, %v427
      %v429 = vrot.slane %v388, 1
      %v430 = vrot.slane %v389, 1
      %v431 = vsel %vm422, %v429, %v430
      %v432 = vrot.slane %v390, 1
      %v433 = vrot.slane %v391, 1
      %v434 = vsel %vm422, %v432, %v433
      %v435 = vrot.slane %v392, 1
      %v436 = vrot.slane %v393, 1
      %v437 = vsel %vm422, %v435, %v436
      %v438 = vrot.slane %v394, 1
      %v439 = vrot.slane %v395, 1
      %v440 = vsel %vm422, %v438, %v439
      %v441 = vrot.slane %v396, 1
      %v442 = vrot.slane %v397, 1
      %v443 = vsel %vm422, %v441, %v442
      %v444 = vrot.slane %v398, 1
      %v445 = vrot.slane %v399, 1
      %v446 = vsel %vm422, %v444, %v445
      %s447 = scalar_lea.vmem %s2, 32
      %v448 = vld [vmem:[%s447] sm:$0xff]
      %v449 = vld [vmem:[%s447 + $0x8] sm:$0xff]
      %v450 = vld [vmem:[%s447 + $0x10] sm:$0xff]
      %v451 = vld [vmem:[%s447 + $0x18] sm:$0xff]
      %vm452 = vcmask 261120
      %v453 = vsel %vm452, %v425, 0
      %v455 = vsel %vm452, %v428, 0
      %v457 = vsel %vm452, %v431, 0
      %v459 = vsel %vm452, %v434, 0
      %v461 = vsel %vm452, %v437, 0
      %v463 = vsel %vm452, %v440, 0
      %v465 = vsel %vm452, %v443, 0
      %v467 = vsel %vm452, %v446, 0
      %469 = vmatprep.subr.mxu0 0.0
      %470 = vmatpush1.msra.mxu0 %v448
      %471 = vmatprep.subr.mxu0 0.0
      %472 = vmatpush1.msra.mxu0 %v449
      %473 = vmatprep.subr.mxu0 0.0
      %474 = vmatpush1.msra.mxu0 %v450
      %475 = vmatprep.subr.mxu0 0.0
      %476 = vmatpush1.msra.mxu0 %v451
      %477 = vmatprep.subr.mxu0 0.0
      %478 = vmatpush1.msra.mxu0 0.0
      %479 = vmatprep.subr.mxu0 0.0
      %480 = vmatpush1.msra.mxu0 0.0
      %481 = vmatprep.subr.mxu0 0.0
      %482 = vmatpush1.msra.mxu0 0.0
      %483 = vmatprep.subr.mxu0 0.0
      %484 = vmatpush1.msra.mxu0 0.0
      %485 = vmatprep.subr.mxu0 0.0
      %486 = vmatpush1.msra.mxu0 0.0
      %487 = vmatprep.subr.mxu0 0.0
      %488 = vmatpush1.msra.mxu0 0.0
      %489 = vmatprep.subr.mxu0 0.0
      %490 = vmatpush1.msra.mxu0 0.0
      %491 = vmatprep.subr.mxu0 0.0
      %492 = vmatpush1.msra.mxu0 0.0
      %493 = vmatprep.subr.mxu0 0.0
      %494 = vmatpush1.msra.mxu0 0.0
      %495 = vmatprep.subr.mxu0 0.0
      %496 = vmatpush1.msra.mxu0 0.0
      %497 = vmatprep.subr.mxu0 0.0
      %498 = vmatpush1.msra.mxu0 0.0
      %499 = vmatprep.subr.mxu0 0.0
      %500 = vmatpush1.msra.mxu0 0.0
      %501 = vmatprep.subr.mxu0 0.0
      %502 = vmatpush1.msra.mxu0 0.0
      %503 = vmatprep.subr.mxu0 0.0
      %504 = vmatpush1.msra.mxu0 0.0
      %505 = vmatprep.subr.mxu0 0.0
      %506 = vmatpush1.msra.mxu0 0.0
      %507 = vmatprep.subr.mxu0 0.0
      %508 = vmatpush1.msra.mxu0 0.0
      %509 = vmatprep.subr.mxu0 0.0
      %510 = vmatpush1.msra.mxu0 0.0
      %511 = vmatprep.subr.mxu0 0.0
      %512 = vmatpush1.msra.mxu0 0.0
      %513 = vmatprep.subr.mxu0 0.0
      %514 = vmatpush1.msra.mxu0 0.0
      %515 = vmatprep.subr.mxu0 0.0
      %516 = vmatpush1.msra.mxu0 0.0
      %517 = vmatprep.subr.mxu0 0.0
      %518 = vmatpush1.msra.mxu0 0.0
      %519 = vmatprep.subr.mxu0 0.0
      %520 = vmatpush1.msra.mxu0 0.0
      %521 = vmatprep.subr.mxu0 0.0
      %522 = vmatpush1.msra.mxu0 0.0
      %523 = vmatprep.subr.mxu0 0.0
      %524 = vmatpush1.msra.mxu0 0.0
      %525 = vmatprep.subr.mxu0 0.0
      %526 = vmatpush1.msra.mxu0 0.0
      %527 = vmatprep.subr.mxu0 0.0
      %528 = vmatpush1.msra.mxu0 0.0
      %529 = vmatprep.subr.mxu0 0.0
      %530 = vmatpush1.msra.mxu0 0.0
      %531 = vmatprep.subr.mxu0 0.0
      %532 = vmatpush1.msra.mxu0 0.0
      %533 = vmatprep.mubr.f32.mxu0 0.0
      %534 = vmatmul.mubr.f32.gmra.mrb[0].mxu0 %v453
      %v535 = vpop.f32.mrb[0].mxu0
      %v536 = vadd.f32 0.0, %v535
      %v537 = vpop.f32.mrb[0].mxu0
      %538 = vmatprep.mubr.f32.mxu0 0.0
      %539 = vmatmul.mubr.f32.gmra.mrb[0].mxu0 %v455
      %v540 = vpop.f32.mrb[0].mxu0
      %v541 = vadd.f32 0.0, %v540
      %v542 = vpop.f32.mrb[0].mxu0
      %543 = vmatprep.mubr.f32.mxu0 0.0
      %544 = vmatmul.mubr.f32.gmra.mrb[0].mxu0 %v457
      %v545 = vpop.f32.mrb[0].mxu0
      %v546 = vadd.f32 0.0, %v545
      %v547 = vpop.f32.mrb[0].mxu0
      %548 = vmatprep.mubr.f32.mxu0 0.0
      %549 = vmatmul.mubr.f32.gmra.mrb[0].mxu0 %v459
      %v550 = vpop.f32.mrb[0].mxu0
      %v551 = vadd.f32 0.0, %v550
      %v552 = vpop.f32.mrb[0].mxu0
      %553 = vmatprep.mubr.f32.mxu0 0.0
      %554 = vmatmul.mubr.f32.gmra.mrb[0].mxu0 %v461
      %v555 = vpop.f32.mrb[0].mxu0
      %v556 = vadd.f32 0.0, %v555
      %v557 = vpop.f32.mrb[0].mxu0
      %558 = vmatprep.mubr.f32.mxu0 0.0
      %559 = vmatmul.mubr.f32.gmra.mrb[0].mxu0 %v463
      %v560 = vpop.f32.mrb[0].mxu0
      %v561 = vadd.f32 0.0, %v560
      %v562 = vpop.f32.mrb[0].mxu0
      %563 = vmatprep.mubr.f32.mxu0 0.0
      %564 = vmatmul.mubr.f32.gmra.mrb[0].mxu0 %v465
      %v565 = vpop.f32.mrb[0].mxu0
      %v566 = vadd.f32 0.0, %v565
      %v567 = vpop.f32.mrb[0].mxu0
      %568 = vmatprep.mubr.f32.mxu0 0.0
      %569 = vmatmul.mubr.f32.gmra.mrb[0].mxu0 %v467
      %v570 = vpop.f32.mrb[0].mxu0
      %v571 = vadd.f32 0.0, %v570
      %v572 = vpop.f32.mrb[0].mxu0
      %573 = vdwg.mxu0
      %v574 = vsel %vm452, %v384, 0
      %v576 = vsel %vm452, %v386, 0
      %v578 = vsel %vm452, %v388, 0
      %v580 = vsel %vm452, %v390, 0
      %v582 = vsel %vm452, %v392, 0
      %v584 = vsel %vm452, %v394, 0
      %v586 = vsel %vm452, %v396, 0
      %v588 = vsel %vm452, %v398, 0
      %590 = vmatprep.subr.mxu0 0.0
      %591 = vmatpush1.msra.mxu0 %v402
      %592 = vmatprep.subr.mxu0 0.0
      %593 = vmatpush1.msra.mxu0 %v403
      %594 = vmatprep.subr.mxu0 0.0
      %595 = vmatpush1.msra.mxu0 %v404
      %596 = vmatprep.subr.mxu0 0.0
      %597 = vmatpush1.msra.mxu0 %v405
      %598 = vmatprep.subr.mxu0 0.0
      %599 = vmatpush1.msra.mxu0 0.0
      %600 = vmatprep.subr.mxu0 0.0
      %601 = vmatpush1.msra.mxu0 0.0
      %602 = vmatprep.subr.mxu0 0.0
      %603 = vmatpush1.msra.mxu0 0.0
      %604 = vmatprep.subr.mxu0 0.0
      %605 = vmatpush1.msra.mxu0 0.0
      %606 = vmatprep.subr.mxu0 0.0
      %607 = vmatpush1.msra.mxu0 0.0
      %608 = vmatprep.subr.mxu0 0.0
      %609 = vmatpush1.msra.mxu0 0.0
      %610 = vmatprep.subr.mxu0 0.0
      %611 = vmatpush1.msra.mxu0 0.0
      %612 = vmatprep.subr.mxu0 0.0
      %613 = vmatpush1.msra.mxu0 0.0
      %614 = vmatprep.subr.mxu0 0.0
      %615 = vmatpush1.msra.mxu0 0.0
      %616 = vmatprep.subr.mxu0 0.0
      %617 = vmatpush1.msra.mxu0 0.0
      %618 = vmatprep.subr.mxu0 0.0
      %619 = vmatpush1.msra.mxu0 0.0
      %620 = vmatprep.subr.mxu0 0.0
      %621 = vmatpush1.msra.mxu0 0.0
      %622 = vmatprep.subr.mxu0 0.0
      %623 = vmatpush1.msra.mxu0 0.0
      %624 = vmatprep.subr.mxu0 0.0
      %625 = vmatpush1.msra.mxu0 0.0
      %626 = vmatprep.subr.mxu0 0.0
      %627 = vmatpush1.msra.mxu0 0.0
      %628 = vmatprep.subr.mxu0 0.0
      %629 = vmatpush1.msra.mxu0 0.0
      %630 = vmatprep.subr.mxu0 0.0
      %631 = vmatpush1.msra.mxu0 0.0
      %632 = vmatprep.subr.mxu0 0.0
      %633 = vmatpush1.msra.mxu0 0.0
      %634 = vmatprep.subr.mxu0 0.0
      %635 = vmatpush1.msra.mxu0 0.0
      %636 = vmatprep.subr.mxu0 0.0
      %637 = vmatpush1.msra.mxu0 0.0
      %638 = vmatprep.subr.mxu0 0.0
      %639 = vmatpush1.msra.mxu0 0.0
      %640 = vmatprep.subr.mxu0 0.0
      %641 = vmatpush1.msra.mxu0 0.0
      %642 = vmatprep.subr.mxu0 0.0
      %643 = vmatpush1.msra.mxu0 0.0
      %644 = vmatprep.subr.mxu0 0.0
      %645 = vmatpush1.msra.mxu0 0.0
      %646 = vmatprep.subr.mxu0 0.0
      %647 = vmatpush1.msra.mxu0 0.0
      %648 = vmatprep.subr.mxu0 0.0
      %649 = vmatpush1.msra.mxu0 0.0
      %650 = vmatprep.subr.mxu0 0.0
      %651 = vmatpush1.msra.mxu0 0.0
      %652 = vmatprep.subr.mxu0 0.0
      %653 = vmatpush1.msra.mxu0 0.0
      %654 = vmatprep.mubr.f32.mxu0 0.0
      %655 = vmatmul.mubr.f32.gmra.mrb[0].mxu0 %v574
      %v656 = vpop.f32.mrb[0].mxu0
      %v657 = vadd.f32 %v536, %v656
      %v658 = vpop.f32.mrb[0].mxu0
      %659 = vmatprep.mubr.f32.mxu0 0.0
      %660 = vmatmul.mubr.f32.gmra.mrb[0].mxu0 %v576
      %v661 = vpop.f32.mrb[0].mxu0
      %v662 = vadd.f32 %v541, %v661
      %v663 = vpop.f32.mrb[0].mxu0
      %664 = vmatprep.mubr.f32.mxu0 0.0
      %665 = vmatmul.mubr.f32.gmra.mrb[0].mxu0 %v578
      %v666 = vpop.f32.mrb[0].mxu0
      %v667 = vadd.f32 %v546, %v666
      %v668 = vpop.f32.mrb[0].mxu0
      %669 = vmatprep.mubr.f32.mxu0 0.0
      %670 = vmatmul.mubr.f32.gmra.mrb[0].mxu0 %v580
      %v671 = vpop.f32.mrb[0].mxu0
      %v672 = vadd.f32 %v551, %v671
      %v673 = vpop.f32.mrb[0].mxu0
      %674 = vmatprep.mubr.f32.mxu0 0.0
      %675 = vmatmul.mubr.f32.gmra.mrb[0].mxu0 %v582
      %v676 = vpop.f32.mrb[0].mxu0
      %v677 = vadd.f32 %v556, %v676
      %v678 = vpop.f32.mrb[0].mxu0
      %679 = vmatprep.mubr.f32.mxu0 0.0
      %680 = vmatmul.mubr.f32.gmra.mrb[0].mxu0 %v584
      %v681 = vpop.f32.mrb[0].mxu0
      %v682 = vadd.f32 %v561, %v681
      %v683 = vpop.f32.mrb[0].mxu0
      %684 = vmatprep.mubr.f32.mxu0 0.0
      %685 = vmatmul.mubr.f32.gmra.mrb[0].mxu0 %v586
      %v686 = vpop.f32.mrb[0].mxu0
      %v687 = vadd.f32 %v566, %v686
      %v688 = vpop.f32.mrb[0].mxu0
      %689 = vmatprep.mubr.f32.mxu0 0.0
      %690 = vmatmul.mubr.f32.gmra.mrb[0].mxu0 %v588
      %v691 = vpop.f32.mrb[0].mxu0
      %v692 = vadd.f32 %v571, %v691
      %v693 = vpop.f32.mrb[0].mxu0
      %694 = vdwg.mxu0
      %s695 = scalar_lea.vmem %s2, 64
      %v696 = vld [vmem:[%s695] sm:$0xff]
      %v697 = vld [vmem:[%s695 + $0x8] sm:$0xff]
      %v698 = vld [vmem:[%s695 + $0x10] sm:$0xff]
      %v699 = vld [vmem:[%s695 + $0x18] sm:$0xff]
      %v701 = vsel %vm452, %v400, 0
      %703 = vmatprep.subr.mxu0 0.0
      %704 = vmatpush1.msra.mxu0 %v696
      %705 = vmatprep.subr.mxu0 0.0
      %706 = vmatpush1.msra.mxu0 %v697
      %707 = vmatprep.subr.mxu0 0.0
      %708 = vmatpush1.msra.mxu0 %v698
      %709 = vmatprep.subr.mxu0 0.0
      %710 = vmatpush1.msra.mxu0 %v699
      %711 = vmatprep.subr.mxu0 0.0
      %712 = vmatpush1.msra.mxu0 0.0
      %713 = vmatprep.subr.mxu0 0.0
      %714 = vmatpush1.msra.mxu0 0.0
      %715 = vmatprep.subr.mxu0 0.0
      %716 = vmatpush1.msra.mxu0 0.0
      %717 = vmatprep.subr.mxu0 0.0
      %718 = vmatpush1.msra.mxu0 0.0
      %719 = vmatprep.subr.mxu0 0.0
      %720 = vmatpush1.msra.mxu0 0.0
      %721 = vmatprep.subr.mxu0 0.0
      %722 = vmatpush1.msra.mxu0 0.0
      %723 = vmatprep.subr.mxu0 0.0
      %724 = vmatpush1.msra.mxu0 0.0
      %725 = vmatprep.subr.mxu0 0.0
      %726 = vmatpush1.msra.mxu0 0.0
      %727 = vmatprep.subr.mxu0 0.0
      %728 = vmatpush1.msra.mxu0 0.0
      %729 = vmatprep.subr.mxu0 0.0
      %730 = vmatpush1.msra.mxu0 0.0
      %731 = vmatprep.subr.mxu0 0.0
      %732 = vmatpush1.msra.mxu0 0.0
      %733 = vmatprep.subr.mxu0 0.0
      %734 = vmatpush1.msra.mxu0 0.0
      %735 = vmatprep.subr.mxu0 0.0
      %736 = vmatpush1.msra.mxu0 0.0
      %737 = vmatprep.subr.mxu0 0.0
      %738 = vmatpush1.msra.mxu0 0.0
      %739 = vmatprep.subr.mxu0 0.0
      %740 = vmatpush1.msra.mxu0 0.0
      %741 = vmatprep.subr.mxu0 0.0
      %742 = vmatpush1.msra.mxu0 0.0
      %743 = vmatprep.subr.mxu0 0.0
      %744 = vmatpush1.msra.mxu0 0.0
      %745 = vmatprep.subr.mxu0 0.0
      %746 = vmatpush1.msra.mxu0 0.0
      %747 = vmatprep.subr.mxu0 0.0
      %748 = vmatpush1.msra.mxu0 0.0
      %749 = vmatprep.subr.mxu0 0.0
      %750 = vmatpush1.msra.mxu0 0.0
      %751 = vmatprep.subr.mxu0 0.0
      %752 = vmatpush1.msra.mxu0 0.0
      %753 = vmatprep.subr.mxu0 0.0
      %754 = vmatpush1.msra.mxu0 0.0
      %755 = vmatprep.subr.mxu0 0.0
      %756 = vmatpush1.msra.mxu0 0.0
      %757 = vmatprep.subr.mxu0 0.0
      %758 = vmatpush1.msra.mxu0 0.0
      %759 = vmatprep.subr.mxu0 0.0
      %760 = vmatpush1.msra.mxu0 0.0
      %761 = vmatprep.subr.mxu0 0.0
      %762 = vmatpush1.msra.mxu0 0.0
      %763 = vmatprep.subr.mxu0 0.0
      %764 = vmatpush1.msra.mxu0 0.0
      %765 = vmatprep.subr.mxu0 0.0
      %766 = vmatpush1.msra.mxu0 0.0
      %767 = vmatprep.mubr.f32.mxu0 0.0
      %768 = vmatmul.mubr.f32.gmra.mrb[0].mxu0 %v576
      %v769 = vpop.f32.mrb[0].mxu0
      %v770 = vadd.f32 0.0, %v769
      %v771 = vpop.f32.mrb[0].mxu0
      %772 = vmatprep.mubr.f32.mxu0 0.0
      %773 = vmatmul.mubr.f32.gmra.mrb[0].mxu0 %v578
      %v774 = vpop.f32.mrb[0].mxu0
      %v775 = vadd.f32 0.0, %v774
      %v776 = vpop.f32.mrb[0].mxu0
      %777 = vmatprep.mubr.f32.mxu0 0.0
      %778 = vmatmul.mubr.f32.gmra.mrb[0].mxu0 %v580
      %v779 = vpop.f32.mrb[0].mxu0
      %v780 = vadd.f32 0.0, %v779
      %v781 = vpop.f32.mrb[0].mxu0
      %782 = vmatprep.mubr.f32.mxu0 0.0
      %783 = vmatmul.mubr.f32.gmra.mrb[0].mxu0 %v582
      %v784 = vpop.f32.mrb[0].mxu0
      %v785 = vadd.f32 0.0, %v784
      %v786 = vpop.f32.mrb[0].mxu0
      %787 = vmatprep.mubr.f32.mxu0 0.0
      %788 = vmatmul.mubr.f32.gmra.mrb[0].mxu0 %v584
      %v789 = vpop.f32.mrb[0].mxu0
      %v790 = vadd.f32 0.0, %v789
      %v791 = vpop.f32.mrb[0].mxu0
      %792 = vmatprep.mubr.f32.mxu0 0.0
      %793 = vmatmul.mubr.f32.gmra.mrb[0].mxu0 %v586
      %v794 = vpop.f32.mrb[0].mxu0
      %v795 = vadd.f32 0.0, %v794
      %v796 = vpop.f32.mrb[0].mxu0
      %797 = vmatprep.mubr.f32.mxu0 0.0
      %798 = vmatmul.mubr.f32.gmra.mrb[0].mxu0 %v588
      %v799 = vpop.f32.mrb[0].mxu0
      %v800 = vadd.f32 0.0, %v799
      %v801 = vpop.f32.mrb[0].mxu0
      %802 = vmatprep.mubr.f32.mxu0 0.0
      %803 = vmatmul.mubr.f32.gmra.mrb[0].mxu0 %v701
      %v804 = vpop.f32.mrb[0].mxu0
      %v805 = vadd.f32 0.0, %v804
      %v806 = vpop.f32.mrb[0].mxu0
      %807 = vdwg.mxu0
      %v808 = vadd.f32 %v657, %v770
      %v809 = vadd.f32 %v662, %v775
      %v810 = vadd.f32 %v667, %v780
      %v811 = vadd.f32 %v672, %v785
      %v812 = vadd.f32 %v677, %v790
      %v813 = vadd.f32 %v682, %v795
      %v814 = vadd.f32 %v687, %v800
      %v815 = vadd.f32 %v692, %v805
      %v817 = vrot.slane %v400, 1
      %v818 = vrot.slane %v401, 1
      %v819 = vsel %vm422, %v817, %v818
      %s820 = scalar_lea.vmem %s2, 96
      %v821 = vld [vmem:[%s820] sm:$0xff]
      %v822 = vld [vmem:[%s820 + $0x8] sm:$0xff]
      %v823 = vld [vmem:[%s820 + $0x10] sm:$0xff]
      %v824 = vld [vmem:[%s820 + $0x18] sm:$0xff]
      %v825 = vsel %vm452, %v819, 0
      %827 = vmatprep.subr.mxu0 0.0
      %828 = vmatpush1.msra.mxu0 %v821
      %829 = vmatprep.subr.mxu0 0.0
      %830 = vmatpush1.msra.mxu0 %v822
      %831 = vmatprep.subr.mxu0 0.0
      %832 = vmatpush1.msra.mxu0 %v823
      %833 = vmatprep.subr.mxu0 0.0
      %834 = vmatpush1.msra.mxu0 %v824
      %835 = vmatprep.subr.mxu0 0.0
      %836 = vmatpush1.msra.mxu0 0.0
      %837 = vmatprep.subr.mxu0 0.0
      %838 = vmatpush1.msra.mxu0 0.0
      %839 = vmatprep.subr.mxu0 0.0
      %840 = vmatpush1.msra.mxu0 0.0
      %841 = vmatprep.subr.mxu0 0.0
      %842 = vmatpush1.msra.mxu0 0.0
      %843 = vmatprep.subr.mxu0 0.0
      %844 = vmatpush1.msra.mxu0 0.0
      %845 = vmatprep.subr.mxu0 0.0
      %846 = vmatpush1.msra.mxu0 0.0
      %847 = vmatprep.subr.mxu0 0.0
      %848 = vmatpush1.msra.mxu0 0.0
      %849 = vmatprep.subr.mxu0 0.0
      %850 = vmatpush1.msra.mxu0 0.0
      %851 = vmatprep.subr.mxu0 0.0
      %852 = vmatpush1.msra.mxu0 0.0
      %853 = vmatprep.subr.mxu0 0.0
      %854 = vmatpush1.msra.mxu0 0.0
      %855 = vmatprep.subr.mxu0 0.0
      %856 = vmatpush1.msra.mxu0 0.0
      %857 = vmatprep.subr.mxu0 0.0
      %858 = vmatpush1.msra.mxu0 0.0
      %859 = vmatprep.subr.mxu0 0.0
      %860 = vmatpush1.msra.mxu0 0.0
      %861 = vmatprep.subr.mxu0 0.0
      %862 = vmatpush1.msra.mxu0 0.0
      %863 = vmatprep.subr.mxu0 0.0
      %864 = vmatpush1.msra.mxu0 0.0
      %865 = vmatprep.subr.mxu0 0.0
      %866 = vmatpush1.msra.mxu0 0.0
      %867 = vmatprep.subr.mxu0 0.0
      %868 = vmatpush1.msra.mxu0 0.0
      %869 = vmatprep.subr.mxu0 0.0
      %870 = vmatpush1.msra.mxu0 0.0
      %871 = vmatprep.subr.mxu0 0.0
      %872 = vmatpush1.msra.mxu0 0.0
      %873 = vmatprep.subr.mxu0 0.0
      %874 = vmatpush1.msra.mxu0 0.0
      %875 = vmatprep.subr.mxu0 0.0
      %876 = vmatpush1.msra.mxu0 0.0
      %877 = vmatprep.subr.mxu0 0.0
      %878 = vmatpush1.msra.mxu0 0.0
      %879 = vmatprep.subr.mxu0 0.0
      %880 = vmatpush1.msra.mxu0 0.0
      %881 = vmatprep.subr.mxu0 0.0
      %882 = vmatpush1.msra.mxu0 0.0
      %883 = vmatprep.subr.mxu0 0.0
      %884 = vmatpush1.msra.mxu0 0.0
      %885 = vmatprep.subr.mxu0 0.0
      %886 = vmatpush1.msra.mxu0 0.0
      %887 = vmatprep.subr.mxu0 0.0
      %888 = vmatpush1.msra.mxu0 0.0
      %889 = vmatprep.subr.mxu0 0.0
      %890 = vmatpush1.msra.mxu0 0.0
      %891 = vmatprep.mubr.f32.mxu0 0.0
      %892 = vmatmul.mubr.f32.gmra.mrb[0].mxu0 %v455
      %v893 = vpop.f32.mrb[0].mxu0
      %v894 = vadd.f32 0.0, %v893
      %v895 = vpop.f32.mrb[0].mxu0
      %896 = vmatprep.mubr.f32.mxu0 0.0
      %897 = vmatmul.mubr.f32.gmra.mrb[0].mxu0 %v457
      %v898 = vpop.f32.mrb[0].mxu0
      %v899 = vadd.f32 0.0, %v898
      %v900 = vpop.f32.mrb[0].mxu0
      %901 = vmatprep.mubr.f32.mxu0 0.0
      %902 = vmatmul.mubr.f32.gmra.mrb[0].mxu0 %v459
      %v903 = vpop.f32.mrb[0].mxu0
      %v904 = vadd.f32 0.0, %v903
      %v905 = vpop.f32.mrb[0].mxu0
      %906 = vmatprep.mubr.f32.mxu0 0.0
      %907 = vmatmul.mubr.f32.gmra.mrb[0].mxu0 %v461
      %v908 = vpop.f32.mrb[0].mxu0
      %v909 = vadd.f32 0.0, %v908
      %v910 = vpop.f32.mrb[0].mxu0
      %911 = vmatprep.mubr.f32.mxu0 0.0
      %912 = vmatmul.mubr.f32.gmra.mrb[0].mxu0 %v463
      %v913 = vpop.f32.mrb[0].mxu0
      %v914 = vadd.f32 0.0, %v913
      %v915 = vpop.f32.mrb[0].mxu0
      %916 = vmatprep.mubr.f32.mxu0 0.0
      %917 = vmatmul.mubr.f32.gmra.mrb[0].mxu0 %v465
      %v918 = vpop.f32.mrb[0].mxu0
      %v919 = vadd.f32 0.0, %v918
      %v920 = vpop.f32.mrb[0].mxu0
      %921 = vmatprep.mubr.f32.mxu0 0.0
      %922 = vmatmul.mubr.f32.gmra.mrb[0].mxu0 %v467
      %v923 = vpop.f32.mrb[0].mxu0
      %v924 = vadd.f32 0.0, %v923
      %v925 = vpop.f32.mrb[0].mxu0
      %926 = vmatprep.mubr.f32.mxu0 0.0
      %927 = vmatmul.mubr.f32.gmra.mrb[0].mxu0 %v825
      %v928 = vpop.f32.mrb[0].mxu0
      %v929 = vadd.f32 0.0, %v928
      %v930 = vpop.f32.mrb[0].mxu0
      %931 = vdwg.mxu0
      %v932 = vadd.f32 %v808, %v894
      %v933 = vadd.f32 %v809, %v899
      %v934 = vadd.f32 %v810, %v904
      %v935 = vadd.f32 %v811, %v909
      %v936 = vadd.f32 %v812, %v914
      %v937 = vadd.f32 %v813, %v919
      %v938 = vadd.f32 %v814, %v924
      %v939 = vadd.f32 %v815, %v929
      %vm940 = vcmask 130048
      %941 = vst.msk [vmem:[%s318] sm:$0xff] %vm940, %v932
      %942 = vst.msk [vmem:[%s318 + $0x8] sm:$0xff] %vm940, %v933
      %943 = vst.msk [vmem:[%s318 + $0x10] sm:$0xff] %vm940, %v934
      %944 = vst.msk [vmem:[%s318 + $0x18] sm:$0xff] %vm940, %v935
      %945 = vst.msk [vmem:[%s318 + $0x20] sm:$0xff] %vm940, %v936
      %946 = vst.msk [vmem:[%s318 + $0x28] sm:$0xff] %vm940, %v937
      %947 = vst.msk [vmem:[%s318 + $0x30] sm:$0xff] %vm940, %v938
      %948 = vst.msk [vmem:[%s318 + $0x38] sm:$0xff] %vm940, %v939
      %v949 = vld [vmem:[%s323] sm:$0x1]
      %v950 = vsel %vm940, %v932, 0.0
      %v951 = vsel %vm940, %v933, 0.0
      %v952 = vadd.f32 %v950, %v951
      %v953 = vsel %vm940, %v934, 0.0
      %v954 = vadd.f32 %v952, %v953
      %v955 = vsel %vm940, %v935, 0.0
      %v956 = vadd.f32 %v954, %v955
      %v957 = vsel %vm940, %v936, 0.0
      %v958 = vadd.f32 %v956, %v957
      %v959 = vsel %vm940, %v937, 0.0
      %v960 = vadd.f32 %v958, %v959
      %v961 = vsel %vm940, %v938, 0.0
      %v962 = vadd.f32 %v960, %v961
      %v963 = vsel %vm940, %v939, 0.0
      %v964 = vadd.f32 %v962, %v963
      %v965 = vrot.slane %v964, 4
      %v966 = vadd.f32 %v964, %v965
      %v967 = vrot.slane %v966, 2
      %v968 = vadd.f32 %v966, %v967
      %v969 = vrot.slane %v968, 1
      %v970 = vadd.f32 %v968, %v969
      %v971 = vadd.f32 %v949, %v970
      %vm972 = vcmask 122880
      %973 = vst.msk [vmem:[%s323] sm:$0x1] %vm972, %v971
      %v974 = vld [vmem:[%s323 + $0x1] sm:$0x1]
      %v975 = vmul.f32 %v932, %v932
      %v976 = vmul.f32 %v933, %v933
      %v977 = vmul.f32 %v934, %v934
      %v978 = vmul.f32 %v935, %v935
      %v979 = vmul.f32 %v936, %v936
      %v980 = vmul.f32 %v937, %v937
      %v981 = vmul.f32 %v938, %v938
      %v982 = vmul.f32 %v939, %v939
      %v983 = vsel %vm940, %v975, 0.0
      %v984 = vsel %vm940, %v976, 0.0
      %v985 = vadd.f32 %v983, %v984
      %v986 = vsel %vm940, %v977, 0.0
      %v987 = vadd.f32 %v985, %v986
      %v988 = vsel %vm940, %v978, 0.0
      %v989 = vadd.f32 %v987, %v988
      %v990 = vsel %vm940, %v979, 0.0
      %v991 = vadd.f32 %v989, %v990
      %v992 = vsel %vm940, %v980, 0.0
      %v993 = vadd.f32 %v991, %v992
      %v994 = vsel %vm940, %v981, 0.0
      %v995 = vadd.f32 %v993, %v994
      %v996 = vsel %vm940, %v982, 0.0
      %v997 = vadd.f32 %v995, %v996
      %v998 = vrot.slane %v997, 4
      %v999 = vadd.f32 %v997, %v998
      %v1000 = vrot.slane %v999, 2
      %v1001 = vadd.f32 %v999, %v1000
      %v1002 = vrot.slane %v1001, 1
      %v1003 = vadd.f32 %v1001, %v1002
      %v1004 = vadd.f32 %v974, %v1003
      %1005 = vst.msk [vmem:[%s323 + $0x1] sm:$0x1] %vm972, %v1004
      %s1006 = smul.u32 8, %s21
      %p1007 = scmp.lt.s32.totalorder %s20, 1
      %s1008 = scalar_select %p1007, %s20, 1
      %p1009 = scmp.lt.s32.totalorder %s1006, 7
      %s1010 = scalar_select %p1009, %s1006, 7
      %s1011 = smul.addr %s1008, 8
      %s1012 = sadd.s32 %s1010, %s1011
      %s1013 = smul.addr %s1012, 8
      %s1014 = scalar_lea.vmem %s3, %s1013
      %p1015 = scmp.lt.s32.totalorder %s20, 1
      %s1016 = scalar_select %p1015, %s20, 1
      %s1017 = smul.addr %s1016, 2
      %s1018 = scalar_lea.vmem %s4, %s1017
      // Predicated region
      $region37: #{encoder_forward.5} parent=31 // pred_check
        %p1019 = pneg %p129
      $region38: #{encoder_forward.5} parent=31 // pred_check_branch
        %1021 = sbr.rel (%p1019) target = $region40
      $region39: #{encoder_forward.5} parent=31 // pred_region
        %s1022 = smul.u32 8, %s21
      $region40: #{encoder_forward.5} parent=31 // pred_fallthru
        _
      // Predicated region
      $region41: #{encoder_forward.5} parent=31 // pred_check
        %p1023 = pneg %p155
      $region42: #{encoder_forward.5} parent=31 // pred_check_branch
        %1025 = sbr.rel (%p1023) target = $region44
      $region43: #{encoder_forward.5} parent=31 // pred_region
        _
      $region44: #{encoder_forward.5} parent=31 // pred_fallthru
        _
    $region32: #{encoder_forward.5} parent=5 // pred_fallthru
      _
    %p1026 = scmp.le.s32.totalorder 2, %s11
    // Predicated region
    $region45: #{encoder_forward.5} parent=5 // pred_check
      %p1027 = pneg %p1026
    $region46: #{encoder_forward.5} parent=5 // pred_check_branch
      %1029 = sbr.rel (%p1027) target = $region48
    $region47: #{encoder_forward.5} parent=5 // pred_region
      %s1030 = ssub.s32 %s11, 2
      // Predicated region
      $region49: #{encoder_forward.5} parent=47 // pred_check
        %p1031 = pneg %p135
      $region50: #{encoder_forward.5} parent=47 // pred_check_branch
        %1033 = sbr.rel (%p1031) target = $region52
      $region51: #{encoder_forward.5} parent=47 // pred_region
        %s1034 = smul.u32 8, %s23
        %p1035 = scmp.lt.s32.totalorder %s22, 1
        %s1036 = scalar_select %p1035, %s22, 1
        %p1037 = scmp.lt.s32.totalorder %s1034, 7
        %s1038 = scalar_select %p1037, %s1034, 7
        %s1039 = smul.addr %s1036, 8
        %s1040 = sadd.s32 %s1038, %s1039
        %s1041 = smul.addr %s1040, 8
        %s1042 = scalar_lea.vmem %s3, %s1041
      $region52: #{encoder_forward.5} parent=47 // pred_fallthru
        _
      // Predicated region
      $region53: #{encoder_forward.5} parent=47 // pred_check
        %p1043 = pneg %p161
      $region54: #{encoder_forward.5} parent=47 // pred_check_branch
        %1045 = sbr.rel (%p1043) target = $region56
      $region55: #{encoder_forward.5} parent=47 // pred_region
        %p1046 = scmp.lt.s32.totalorder %s22, 1
        %s1047 = scalar_select %p1046, %s22, 1
        %s1048 = smul.addr %s1047, 2
        %s1049 = scalar_lea.vmem %s4, %s1048
      $region56: #{encoder_forward.5} parent=47 // pred_fallthru
        _
    $region48: #{encoder_forward.5} parent=5 // pred_fallthru
      _
  $region6: #{encoder_forward.5} parent=0 // loop_footer
    %s15 = sadd.s32 1, %s11
  $region7: #{encoder_forward.5} parent=0 // loop_footer_branch
    %10 = sbr.rel target = $region3
  $region8: #{encoder_forward.5} parent=0 // loop_exit
    _

// kernel: encoder_forward.6
$region0: #{encoder_forward.6}
  #allocation0 [shape = 'u32[]', space=smem, size = 0x4, offset = 0x4, fixed_abs, tag = 'smem constant byte address 0x4 - core index']
  #allocation1 [shape = 'u32[144,128]{1,0:T(1,128)}', space=vmem, size = 0x12000, scoped, tag = 'internal scratch']
  %s0 = inlined_call_operand.vmem [shape: f32[2], index: 0, kind: input, shape index: {}]
  %s1 = inlined_call_operand.vmem [shape: f32[2], index: 1, kind: input, shape index: {}]
  %s2 = inlined_call_operand.vmem [shape: f32[2,8,128], index: 2, kind: input, shape index: {}]
  %s3 = inlined_call_operand.vmem [shape: f32[2,8,128], index: 3, kind: output, shape index: {}]
  %s4 = sld [smem:[#allocation0]]
  $region53: #{encoder_forward.6} parent=0
    _
  %s6 = ssub.s32 1, %s4
  %s7 = scalar_select 0, %s6, %s4
  $region1: #{encoder_forward.6} parent=0
    #allocation2 [shape = 'u8[512]{0}', space=smem, size = 0x200, scoped, tag = 'input window, operand 0, single buffered']
    #allocation3 [shape = 's32[2]{0}', space=sflag, size = 0x8, scoped, tag = 'scoped memory for encoder_forward.6']
    #allocation4 [shape = 'u8[512]{0}', space=smem, size = 0x200, scoped, tag = 'input window, operand 1, single buffered']
    #allocation5 [shape = 's32[1]{0}', space=sflag, size = 0x4, scoped, tag = 'scoped memory for encoder_forward.6']
    %8 = vsyncpa [#allocation3], 0
    %9 = vsyncpa [#allocation5], 0
    loop: start=0, step=1, limit=4
    $region2: #{encoder_forward.6} parent=1 // loop_pre_header
      _
    $region3: #{encoder_forward.6} parent=1 // loop_header
      %s11 = sphi 0, %s15
      %p12 = scmp.ge.s32.totalorder %s11, 4
      %s18 = sphi 0, %s30
      %s19 = sphi 0, %s26
      %s20 = sphi 0, %s18
      %s21 = sphi 0, %s19
      %s22 = sphi 0, %s20
      %s23 = sphi 0, %s21
      %s31 = sphi 0, %s31
      %s33 = sphi 0, %s31
      %s34 = sphi 0, %s33
      %s48 = sphi 0, %s34
      %s52 = sphi 0, %s52
      %s54 = sphi 0, %s52
      %s55 = sphi 0, %s54
      %s69 = sphi 0, %s55
      %s77 = sphi 0, %s79
      %s80 = sphi 0, %s77
      %s81 = sphi 0, %s80
      %s97 = sphi 0, %s81
      %s105 = sphi 0, %s107
      %s108 = sphi 0, %s105
      %s109 = sphi 0, %s108
      %s125 = sphi 0, %s109
    $region4: #{encoder_forward.6} parent=1 // loop_header_branch
      %14 = sbr.rel (%p12) target = $region8
    $region5: #{encoder_forward.6} parent=1 // loop_body
      %s16 = ssub.s32 %s11, 1
      %s17 = ssub.s32 %s11, 2
      %s24 = sadd.s32 1, %s19
      %p25 = scmp.ge.s32.totalorder %s24, 1
      %s26 = scalar_select %p25, 0, %s24
      %s27 = sadd.s32 1, %s18
      %s28 = scalar_select %p25, %s27, %s18
      %p29 = scmp.ge.s32.totalorder %s28, 2
      %s30 = scalar_select %p29, 0, %s28
      %s32 = sadd.s32 %s31, 1
      %p35 = scmp.eq.s32.totalorder %s11, 1
      %p36 = scmp.ne.s32.totalorder %s31, %s33
      %p37 = scmp.eq.s32.totalorder %s11, 0
      %p38 = por %p36, %p37
      %p39 = scmp.ne.s32.totalorder %s31, %s33
      %p40 = scmp.eq.s32.totalorder %s16, 1
      %p41 = por %p39, %p40
      %p42 = scmp.ne.s32.totalorder %s33, %s34
      %p43 = scmp.eq.s32.totalorder %s16, 0
      %p44 = por %p42, %p43
      %p45 = scmp.ne.s32.totalorder %s33, %s34
      %p46 = scmp.eq.s32.totalorder %s17, 1
      %p47 = por %p45, %p46
      %p49 = scmp.ne.s32.totalorder %s34, %s48
      %p50 = scmp.eq.s32.totalorder %s17, 0
      %p51 = por %p49, %p50
      %s53 = sadd.s32 %s52, 1
      %p56 = scmp.eq.s32.totalorder %s11, 1
      %p57 = scmp.ne.s32.totalorder %s52, %s54
      %p58 = scmp.eq.s32.totalorder %s11, 0
      %p59 = por %p57, %p58
      %p60 = scmp.ne.s32.totalorder %s52, %s54
      %p61 = scmp.eq.s32.totalorder %s16, 1
      %p62 = por %p60, %p61
      %p63 = scmp.ne.s32.totalorder %s54, %s55
      %p64 = scmp.eq.s32.totalorder %s16, 0
      %p65 = por %p63, %p64
      %p66 = scmp.ne.s32.totalorder %s54, %s55
      %p67 = scmp.eq.s32.totalorder %s17, 1
      %p68 = por %p66, %p67
      %p70 = scmp.ne.s32.totalorder %s55, %s69
      %p71 = scmp.eq.s32.totalorder %s17, 0
      %p72 = por %p70, %p71
      %s73 = ssub.s32 %s18, %s30
      %s74 = ssub.s32 %s19, %s26
      %s75 = sor.u32 %s73, %s74
      %p76 = scmp.eq.s32.totalorder %s75, 0
      %s78 = sadd.s32 %s77, 1
      %s79 = scalar_select %p76, %s77, %s78
      %p82 = pneg %p76
      %p83 = scmp.eq.s32.totalorder %s11, 1
      %p84 = por %p82, %p83
      %p85 = scmp.ne.s32.totalorder %s77, %s80
      %p86 = scmp.eq.s32.totalorder %s11, 0
      %p87 = por %p85, %p86
      %p88 = scmp.ne.s32.totalorder %s77, %s80
      %p89 = scmp.eq.s32.totalorder %s16, 1
      %p90 = por %p88, %p89
      %p91 = scmp.ne.s32.totalorder %s80, %s81
      %p92 = scmp.eq.s32.totalorder %s16, 0
      %p93 = por %p91, %p92
      %p94 = scmp.ne.s32.totalorder %s80, %s81
      %p95 = scmp.eq.s32.totalorder %s17, 1
      %p96 = por %p94, %p95
      %p98 = scmp.ne.s32.totalorder %s81, %s97
      %p99 = scmp.eq.s32.totalorder %s17, 0
      %p100 = por %p98, %p99
      %s101 = ssub.s32 %s18, %s30
      %s102 = ssub.s32 %s19, %s26
      %s103 = sor.u32 %s101, %s102
      %p104 = scmp.eq.s32.totalorder %s103, 0
      %s106 = sadd.s32 %s105, 1
      %s107 = scalar_select %p104, %s105, %s106
      %p110 = pneg %p104
      %p111 = scmp.eq.s32.totalorder %s11, 1
      %p112 = por %p110, %p111
      %p113 = scmp.ne.s32.totalorder %s105, %s108
      %p114 = scmp.eq.s32.totalorder %s11, 0
      %p115 = por %p113, %p114
      %p116 = scmp.ne.s32.totalorder %s105, %s108
      %p117 = scmp.eq.s32.totalorder %s16, 1
      %p118 = por %p116, %p117
      %p119 = scmp.ne.s32.totalorder %s108, %s109
      %p120 = scmp.eq.s32.totalorder %s16, 0
      %p121 = por %p119, %p120
      %p122 = scmp.ne.s32.totalorder %s108, %s109
      %p123 = scmp.eq.s32.totalorder %s17, 1
      %p124 = por %p122, %p123
      %p126 = scmp.ne.s32.totalorder %s109, %s125
      %p127 = scmp.eq.s32.totalorder %s17, 0
      %p128 = por %p126, %p127
      %p129 = scmp.le.s32.totalorder 1, %s11
      %p130 = scmp.lt.s32.totalorder %s11, 3
      %p131 = pnand %p129, %p130
      %p132 = pneg %p131
      // Predicated region
      $region9: #{encoder_forward.6} parent=5 // pred_check
        _
      $region10: #{encoder_forward.6} parent=5 // pred_check_branch
        %134 = sbr.rel (%p131) target = $region12
      $region11: #{encoder_forward.6} parent=5 // pred_region
        %s135 = ssub.s32 %s11, 1
        // Predicated region
        $region13: #{encoder_forward.6} parent=11 // pred_check
          %p136 = pneg %p44
        $region14: #{encoder_forward.6} parent=11 // pred_check_branch
          %138 = sbr.rel (%p136) target = $region16
        $region15: #{encoder_forward.6} parent=11 // pred_region
          %s140 = ssub.s32 16, 16
          %141 = vsyncadd [#allocation3], %s140
          %s143 = sshll.u32 %s0, 4
          %s144 = int_to_ptr.vmem [resolvable:$true] %s143
          %146 = dma.vmem_to_smem %s144, 16, [#allocation2], [#allocation3]
        $region16: #{encoder_forward.6} parent=11 // pred_fallthru
          _
        // Predicated region
        $region17: #{encoder_forward.6} parent=11 // pred_check
          %p147 = pneg %p65
        $region18: #{encoder_forward.6} parent=11 // pred_check_branch
          %149 = sbr.rel (%p147) target = $region20
        $region19: #{encoder_forward.6} parent=11 // pred_region
          %s151 = ssub.s32 16, 16
          %152 = vsyncadd [#allocation5], %s151
          %s154 = sshll.u32 %s1, 4
          %s155 = int_to_ptr.vmem [resolvable:$true] %s154
          %157 = dma.vmem_to_smem %s155, 16, [#allocation4], [#allocation5]
        $region20: #{encoder_forward.6} parent=11 // pred_fallthru
          _
      $region12: #{encoder_forward.6} parent=5 // pred_fallthru
        _
      %p158 = scmp.lt.s32.totalorder %s11, 2
      // Predicated region
      $region21: #{encoder_forward.6} parent=5 // pred_check
        %p159 = pneg %p158
      $region22: #{encoder_forward.6} parent=5 // pred_check_branch
        %161 = sbr.rel (%p159) target = $region24
      $region23: #{encoder_forward.6} parent=5 // pred_region
        // Predicated region
        $region25: #{encoder_forward.6} parent=23 // pred_check
          %p162 = pneg %p87
        $region26: #{encoder_forward.6} parent=23 // pred_check_branch
          %164 = sbr.rel (%p162) target = $region28
        $region27: #{encoder_forward.6} parent=23 // pred_region
          %p165 = scmp.lt.s32.totalorder %s18, 1
          %s166 = scalar_select %p165, %s18, 1
          %p167 = scmp.lt.s32.totalorder %s19, 0
          %s168 = scalar_select %p167, %s19, 0
          %s169 = sadd.s32 %s168, %s166
          %s170 = smul.addr %s169, 8
          %s171 = scalar_lea.vmem %s2, %s170
        $region28: #{encoder_forward.6} parent=23 // pred_fallthru
          _
      $region24: #{encoder_forward.6} parent=5 // pred_fallthru
        _
      %p172 = scmp.le.s32.totalorder 1, %s11
      %p173 = scmp.lt.s32.totalorder %s11, 3
      %p174 = pnand %p172, %p173
      %p175 = pneg %p174
      // Predicated region
      $region29: #{encoder_forward.6} parent=5 // pred_check
        _
      $region30: #{encoder_forward.6} parent=5 // pred_check_branch
        %177 = sbr.rel (%p174) target = $region32
      $region31: #{encoder_forward.6} parent=5 // pred_region
        %s178 = ssub.s32 %s11, 1
        // Predicated region
        $region33: #{encoder_forward.6} parent=31 // pred_check
          %p179 = pneg %p44
        $region34: #{encoder_forward.6} parent=31 // pred_check_branch
          %181 = sbr.rel (%p179) target = $region36
        $region35: #{encoder_forward.6} parent=31 // pred_region
          %182 = dma.done [#allocation3], 16
        $region36: #{encoder_forward.6} parent=31 // pred_fallthru
          _
        // Predicated region
        $region37: #{encoder_forward.6} parent=31 // pred_check
          %p183 = pneg %p65
        $region38: #{encoder_forward.6} parent=31 // pred_check_branch
          %185 = sbr.rel (%p183) target = $region40
        $region39: #{encoder_forward.6} parent=31 // pred_region
          %186 = dma.done [#allocation5], 16
        $region40: #{encoder_forward.6} parent=31 // pred_fallthru
          _
        %187 = sfence
        %p188 = pneg %p44
        %p189 = pneg %p41
        %p190 = pneg %p65
        %p191 = pneg %p62
        %p192 = scmp.lt.s32.totalorder %s20, 1
        %s193 = scalar_select %p192, %s20, 1
        %p194 = scmp.lt.s32.totalorder %s21, 0
        %s195 = scalar_select %p194, %s21, 0
        %s196 = sadd.s32 %s195, %s193
        %s197 = smul.addr %s196, 8
        %s198 = scalar_lea.vmem %s2, %s197
        %p199 = pneg %p93
        %p200 = pneg %p90
        %p201 = pneg %p121
        %p202 = pneg %p118
        %p203 = scmp.lt.s32.totalorder %s20, 1
        %s204 = scalar_select %p203, %s20, 1
        %p205 = scmp.lt.s32.totalorder %s21, 0
        %s206 = scalar_select %p205, %s21, 0
        %s207 = sadd.s32 %s206, %s204
        %s208 = smul.addr %s207, 8
        %s209 = scalar_lea.vmem %s3, %s208
        %p210 = scmp.lt.s32.totalorder %s20, 1
        %s211 = scalar_select %p210, %s20, 1
        %p212 = scmp.lt.s32.totalorder %s21, 0
        %s213 = scalar_select %p212, %s21, 0
        %s214 = sadd.s32 %s213, %s211
        %s215 = smul.addr %s214, 8
        %s216 = scalar_lea.vmem %s2, %s215
        %p217 = scmp.lt.s32.totalorder %s20, 1
        %s218 = scalar_select %p217, %s20, 1
        %p219 = scmp.lt.s32.totalorder %s21, 0
        %s220 = scalar_select %p219, %s21, 0
        %s221 = sadd.s32 %s220, %s218
        %s222 = smul.addr %s221, 8
        %s223 = scalar_lea.vmem %s3, %s222
        %v224 = vld [vmem:[%s216] sm:$0xff]
        %s225 = sld [smem:[#allocation2 + %s20]]
        %v226 = vstv %s225
        %v227 = vmul.f32 %v224, %v226
        %s228 = sld [smem:[#allocation4 + %s20]]
        %v229 = vstv %s228
        %v230 = vadd.f32 %v227, %v229
        %231 = vst [vmem:[%s223] sm:$0xff] %v230
        %p232 = scmp.lt.s32.totalorder %s20, 1
        %s233 = scalar_select %p232, %s20, 1
        %p234 = scmp.lt.s32.totalorder %s21, 0
        %s235 = scalar_select %p234, %s21, 0
        %s236 = sadd.s32 %s235, %s233
        %s237 = smul.addr %s236, 8
        %s238 = scalar_lea.vmem %s3, %s237
        // Predicated region
        $region41: #{encoder_forward.6} parent=31 // pred_check
          %p239 = pneg %p118
        $region42: #{encoder_forward.6} parent=31 // pred_check_branch
          %241 = sbr.rel (%p239) target = $region44
        $region43: #{encoder_forward.6} parent=31 // pred_region
          _
        $region44: #{encoder_forward.6} parent=31 // pred_fallthru
          _
      $region32: #{encoder_forward.6} parent=5 // pred_fallthru
        _
      %p242 = scmp.le.s32.totalorder 2, %s11
      // Predicated region
      $region45: #{encoder_forward.6} parent=5 // pred_check
        %p243 = pneg %p242
      $region46: #{encoder_forward.6} parent=5 // pred_check_branch
        %245 = sbr.rel (%p243) target = $region48
      $region47: #{encoder_forward.6} parent=5 // pred_region
        %s246 = ssub.s32 %s11, 2
        // Predicated region
        $region49: #{encoder_forward.6} parent=47 // pred_check
          %p247 = pneg %p124
        $region50: #{encoder_forward.6} parent=47 // pred_check_branch
          %249 = sbr.rel (%p247) target = $region52
        $region51: #{encoder_forward.6} parent=47 // pred_region
          %p250 = scmp.lt.s32.totalorder %s22, 1
          %s251 = scalar_select %p250, %s22, 1
          %p252 = scmp.lt.s32.totalorder %s23, 0
          %s253 = scalar_select %p252, %s23, 0
          %s254 = sadd.s32 %s253, %s251
          %s255 = smul.addr %s254, 8
          %s256 = scalar_lea.vmem %s3, %s255
        $region52: #{encoder_forward.6} parent=47 // pred_fallthru
          _
      $region48: #{encoder_forward.6} parent=5 // pred_fallthru
        _
    $region6: #{encoder_forward.6} parent=1 // loop_footer
      %s15 = sadd.s32 1, %s11
    $region7: #{encoder_forward.6} parent=1 // loop_footer_branch
      %10 = sbr.rel target = $region3
    $region8: #{encoder_forward.6} parent=1 // loop_exit
      _
    %257 = vsyncpa [#allocation3], 1
    %s258 = scalar_lea.sflag [#allocation3], 1
    %259 = vsyncpa %s258, 1
    %260 = vsyncpa [#allocation5], 1

// kernel: encoder_forward.4
$region0: #{encoder_forward.4}
  #allocation0 [shape = 'u32[]', space=smem, size = 0x4, offset = 0x4, fixed_abs, tag = 'smem constant byte address 0x4 - core index']
  #allocation1 [shape = 'u32[144,128]{1,0:T(1,128)}', space=vmem, size = 0x12000, scoped, tag = 'internal scratch']
  %s0 = inlined_call_operand.vmem [shape: f32[2,18,18,8], index: 0, kind: input, shape index: {}, may-alias: {0,1}]
  %s1 = inlined_call_operand.vmem [shape: f32[2,18,18,8], index: 1, kind: input, shape index: {}, may-alias: {0,1}]
  %s2 = inlined_call_operand.vmem [shape: f32[9,8,8], index: 2, kind: input, shape index: {}]
  %s3 = inlined_call_operand.vmem [shape: f32[1,8], index: 3, kind: input, shape index: {}]
  %s4 = inlined_call_operand.vmem [shape: f32[2,16,16,8], index: 4, kind: output, shape index: {}]
  %s5 = sld [smem:[#allocation0]]
  $region49: #{encoder_forward.4} parent=0
    _
  %s7 = ssub.s32 1, %s5
  %s8 = scalar_select 0, %s7, %s5
  loop: start=0, step=1, limit=4
  $region2: #{encoder_forward.4} parent=0 // loop_pre_header
    _
  $region3: #{encoder_forward.4} parent=0 // loop_header
    %s10 = sphi 0, %s14
    %p11 = scmp.ge.s32.totalorder %s10, 4
    %s17 = sphi 0, %s29
    %s18 = sphi 0, %s25
    %s19 = sphi 0, %s17
    %s20 = sphi 0, %s18
    %s21 = sphi 0, %s19
    %s22 = sphi 0, %s20
    %s34 = sphi 0, %s36
    %s37 = sphi 0, %s34
    %s38 = sphi 0, %s37
    %s54 = sphi 0, %s38
    %s66 = sphi 0, %s68
    %s69 = sphi 0, %s66
    %s70 = sphi 0, %s69
    %s86 = sphi 0, %s70
    %s90 = sphi 0, %s90
    %s92 = sphi 0, %s90
    %s93 = sphi 0, %s92
    %s107 = sphi 0, %s93
    %s111 = sphi 0, %s111
    %s113 = sphi 0, %s111
    %s114 = sphi 0, %s113
    %s128 = sphi 0, %s114
    %s136 = sphi 0, %s138
    %s139 = sphi 0, %s136
    %s140 = sphi 0, %s139
    %s156 = sphi 0, %s140
  $region4: #{encoder_forward.4} parent=0 // loop_header_branch
    %13 = sbr.rel (%p11) target = $region8
  $region5: #{encoder_forward.4} parent=0 // loop_body
    %s15 = ssub.s32 %s10, 1
    %s16 = ssub.s32 %s10, 2
    %s23 = sadd.s32 1, %s18
    %p24 = scmp.ge.s32.totalorder %s23, 1
    %s25 = scalar_select %p24, 0, %s23
    %s26 = sadd.s32 1, %s17
    %s27 = scalar_select %p24, %s26, %s17
    %p28 = scmp.ge.s32.totalorder %s27, 2
    %s29 = scalar_select %p28, 0, %s27
    %s30 = ssub.s32 %s17, %s29
    %s31 = ssub.s32 %s18, %s25
    %s32 = sor.u32 %s30, %s31
    %p33 = scmp.eq.s32.totalorder %s32, 0
    %s35 = sadd.s32 %s34, 1
    %s36 = scalar_select %p33, %s34, %s35
    %p39 = pneg %p33
    %p40 = scmp.eq.s32.totalorder %s10, 1
    %p41 = por %p39, %p40
    %p42 = scmp.ne.s32.totalorder %s34, %s37
    %p43 = scmp.eq.s32.totalorder %s10, 0
    %p44 = por %p42, %p43
    %p45 = scmp.ne.s32.totalorder %s34, %s37
    %p46 = scmp.eq.s32.totalorder %s15, 1
    %p47 = por %p45, %p46
    %p48 = scmp.ne.s32.totalorder %s37, %s38
    %p49 = scmp.eq.s32.totalorder %s15, 0
    %p50 = por %p48, %p49
    %p51 = scmp.ne.s32.totalorder %s37, %s38
    %p52 = scmp.eq.s32.totalorder %s16, 1
    %p53 = por %p51, %p52
    %p55 = scmp.ne.s32.totalorder %s38, %s54
    %p56 = scmp.eq.s32.totalorder %s16, 0
    %p57 = por %p55, %p56
    %s58 = smul.u32 %s18, 8
    %s59 = sadd.s32 %s58, 8
    %s60 = smul.u32 %s25, 8
    %s61 = sadd.s32 %s60, 8
    %s62 = ssub.s32 %s17, %s29
    %s63 = ssub.s32 %s59, %s61
    %s64 = sor.u32 %s62, %s63
    %p65 = scmp.eq.s32.totalorder %s64, 0
    %s67 = sadd.s32 %s66, 1
    %s68 = scalar_select %p65, %s66, %s67
    %p71 = pneg %p65
    %p72 = scmp.eq.s32.totalorder %s10, 1
    %p73 = por %p71, %p72
    %p74 = scmp.ne.s32.totalorder %s66, %s69
    %p75 = scmp.eq.s32.totalorder %s10, 0
    %p76 = por %p74, %p75
    %p77 = scmp.ne.s32.totalorder %s66, %s69
    %p78 = scmp.eq.s32.totalorder %s15, 1
    %p79 = por %p77, %p78
    %p80 = scmp.ne.s32.totalorder %s69, %s70
    %p81 = scmp.eq.s32.totalorder %s15, 0
    %p82 = por %p80, %p81
    %p83 = scmp.ne.s32.totalorder %s69, %s70
    %p84 = scmp.eq.s32.totalorder %s16, 1
    %p85 = por %p83, %p84
    %p87 = scmp.ne.s32.totalorder %s70, %s86
    %p88 = scmp.eq.s32.totalorder %s16, 0
    %p89 = por %p87, %p88
    %s91 = sadd.s32 %s90, 1
    %p94 = scmp.eq.s32.totalorder %s10, 1
    %p95 = scmp.ne.s32.totalorder %s90, %s92
    %p96 = scmp.eq.s32.totalorder %s10, 0
    %p97 = por %p95, %p96
    %p98 = scmp.ne.s32.totalorder %s90, %s92
    %p99 = scmp.eq.s32.totalorder %s15, 1
    %p100 = por %p98, %p99
    %p101 = scmp.ne.s32.totalorder %s92, %s93
    %p102 = scmp.eq.s32.totalorder %s15, 0
    %p103 = por %p101, %p102
    %p104 = scmp.ne.s32.totalorder %s92, %s93
    %p105 = scmp.eq.s32.totalorder %s16, 1
    %p106 = por %p104, %p105
    %p108 = scmp.ne.s32.totalorder %s93, %s107
    %p109 = scmp.eq.s32.totalorder %s16, 0
    %p110 = por %p108, %p109
    %s112 = sadd.s32 %s111, 1
    %p115 = scmp.eq.s32.totalorder %s10, 1
    %p116 = scmp.ne.s32.totalorder %s111, %s113
    %p117 = scmp.eq.s32.totalorder %s10, 0
    %p118 = por %p116, %p117
    %p119 = scmp.ne.s32.totalorder %s111, %s113
    %p120 = scmp.eq.s32.totalorder %s15, 1
    %p121 = por %p119, %p120
    %p122 = scmp.ne.s32.totalorder %s113, %s114
    %p123 = scmp.eq.s32.totalorder %s15, 0
    %p124 = por %p122, %p123
    %p125 = scmp.ne.s32.totalorder %s113, %s114
    %p126 = scmp.eq.s32.totalorder %s16, 1
    %p127 = por %p125, %p126
    %p129 = scmp.ne.s32.totalorder %s114, %s128
    %p130 = scmp.eq.s32.totalorder %s16, 0
    %p131 = por %p129, %p130
    %s132 = ssub.s32 %s17, %s29
    %s133 = ssub.s32 %s18, %s25
    %s134 = sor.u32 %s132, %s133
    %p135 = scmp.eq.s32.totalorder %s134, 0
    %s137 = sadd.s32 %s136, 1
    %s138 = scalar_select %p135, %s136, %s137
    %p141 = pneg %p135
    %p142 = scmp.eq.s32.totalorder %s10, 1
    %p143 = por %p141, %p142
    %p144 = scmp.ne.s32.totalorder %s136, %s139
    %p145 = scmp.eq.s32.totalorder %s10, 0
    %p146 = por %p144, %p145
    %p147 = scmp.ne.s32.totalorder %s136, %s139
    %p148 = scmp.eq.s32.totalorder %s15, 1
    %p149 = por %p147, %p148
    %p150 = scmp.ne.s32.totalorder %s139, %s140
    %p151 = scmp.eq.s32.totalorder %s15, 0
    %p152 = por %p150, %p151
    %p153 = scmp.ne.s32.totalorder %s139, %s140
    %p154 = scmp.eq.s32.totalorder %s16, 1
    %p155 = por %p153, %p154
    %p157 = scmp.ne.s32.totalorder %s140, %s156
    %p158 = scmp.eq.s32.totalorder %s16, 0
    %p159 = por %p157, %p158
    %p160 = scmp.le.s32.totalorder 1, %s10
    %p161 = scmp.lt.s32.totalorder %s10, 3
    %p162 = pnand %p160, %p161
    %p163 = pneg %p162
    // Predicated region
    $region9: #{encoder_forward.4} parent=5 // pred_check
      _
    $region10: #{encoder_forward.4} parent=5 // pred_check_branch
      %165 = sbr.rel (%p162) target = $region12
    $region11: #{encoder_forward.4} parent=5 // pred_region
      %s166 = ssub.s32 %s10, 1
      // Predicated region
      $region13: #{encoder_forward.4} parent=11 // pred_check
        %p167 = pneg %p103
      $region14: #{encoder_forward.4} parent=11 // pred_check_branch
        %169 = sbr.rel (%p167) target = $region16
      $region15: #{encoder_forward.4} parent=11 // pred_region
        _
      $region16: #{encoder_forward.4} parent=11 // pred_fallthru
        _
      // Predicated region
      $region17: #{encoder_forward.4} parent=11 // pred_check
        %p170 = pneg %p124
      $region18: #{encoder_forward.4} parent=11 // pred_check_branch
        %172 = sbr.rel (%p170) target = $region20
      $region19: #{encoder_forward.4} parent=11 // pred_region
        _
      $region20: #{encoder_forward.4} parent=11 // pred_fallthru
        _
    $region12: #{encoder_forward.4} parent=5 // pred_fallthru
      _
    %p173 = scmp.lt.s32.totalorder %s10, 2
    // Predicated region
    $region21: #{encoder_forward.4} parent=5 // pred_check
      %p174 = pneg %p173
    $region22: #{encoder_forward.4} parent=5 // pred_check_branch
      %176 = sbr.rel (%p174) target = $region24
    $region23: #{encoder_forward.4} parent=5 // pred_region
      // Predicated region
      $region25: #{encoder_forward.4} parent=23 // pred_check
        %p177 = pneg %p44
      $region26: #{encoder_forward.4} parent=23 // pred_check_branch
        %179 = sbr.rel (%p177) target = $region28
      $region27: #{encoder_forward.4} parent=23 // pred_region
        %s180 = smul.u32 16, %s18
        %s181 = ssub.s32 18, %s180
        %p182 = scmp.lt.s32.totalorder %s181, 16
        %s183 = scalar_select %p182, %s181, 16
        %s184 = smul.u32 128, %s183
        %s185 = smul.u32 %s184, 3
        %p186 = scmp.lt.s32.totalorder %s17, 1
        %s187 = scalar_select %p186, %s17, 1
        %p188 = scmp.lt.s32.totalorder %s180, 17
        %s189 = scalar_select %p188, %s180, 17
        %s190 = smul.addr %s189, 3
        %s191 = smul.addr %s187, 54
        %s192 = sadd.s32 %s190, %s191
        %s193 = smul.addr %s192, 8
        %s194 = scalar_lea.vmem %s0, %s193
        %s195 = smul.u32 16, %s18
        %s196 = ssub.s32 18, %s195
        %p197 = scmp.lt.s32.totalorder %s196, 16
        %s198 = scalar_select %p197, %s196, 16
        %s199 = smul.u32 128, %s198
        %s200 = smul.u32 %s199, 3
      $region28: #{encoder_forward.4} parent=23 // pred_fallthru
        _
      // Predicated region
      $region29: #{encoder_forward.4} parent=23 // pred_check
        %p201 = pneg %p76
      $region30: #{encoder_forward.4} parent=23 // pred_check_branch
        %203 = sbr.rel (%p201) target = $region32
      $region31: #{encoder_forward.4} parent=23 // pred_region
        %s204 = smul.u32 %s18, 8
        %s205 = sadd.s32 %s204, 8
        %s206 = smul.u32 2, %s205
        %p207 = scmp.lt.s32.totalorder %s17, 1
        %s208 = scalar_select %p207, %s17, 1
        %p209 = scmp.lt.s32.totalorder %s206, 17
        %s210 = scalar_select %p209, %s206, 17
        %s211 = smul.addr %s210, 3
        %s212 = smul.addr %s208, 54
        %s213 = sadd.s32 %s211, %s212
        %s214 = smul.addr %s213, 8
        %s215 = scalar_lea.vmem %s1, %s214
        %s216 = smul.u32 %s18, 8
        %s217 = sadd.s32 %s216, 8
        %s218 = smul.u32 2, %s217
      $region32: #{encoder_forward.4} parent=23 // pred_fallthru
        _
    $region24: #{encoder_forward.4} parent=5 // pred_fallthru
      _
    %p219 = scmp.le.s32.totalorder 1, %s10
    %p220 = scmp.lt.s32.totalorder %s10, 3
    %p221 = pnand %p219, %p220
    %p222 = pneg %p221
    // Predicated region
    $region33: #{encoder_forward.4} parent=5 // pred_check
      _
    $region34: #{encoder_forward.4} parent=5 // pred_check_branch
      %224 = sbr.rel (%p221) target = $region36
    $region35: #{encoder_forward.4} parent=5 // pred_region
      %s225 = ssub.s32 %s10, 1
      %s226 = smul.u32 16, %s20
      %s227 = ssub.s32 18, %s226
      %p228 = scmp.lt.s32.totalorder %s227, 16
      %s229 = scalar_select %p228, %s227, 16
      %s230 = smul.u32 128, %s229
      %s231 = smul.u32 %s230, 3
      %p232 = scmp.lt.s32.totalorder %s19, 1
      %s233 = scalar_select %p232, %s19, 1
      %p234 = scmp.lt.s32.totalorder %s226, 17
      %s235 = scalar_select %p234, %s226, 17
      %s236 = smul.addr %s235, 3
      %s237 = smul.addr %s233, 54
      %s238 = sadd.s32 %s236, %s237
      %s239 = smul.addr %s238, 8
      %s240 = scalar_lea.vmem %s0, %s239
      %p241 = pneg %p50
      %p242 = pneg %p47
      %s243 = smul.u32 %s20, 8
      %s244 = sadd.s32 %s243, 8
      %s245 = smul.u32 2, %s244
      %p246 = scmp.lt.s32.totalorder %s19, 1
      %s247 = scalar_select %p246, %s19, 1
      %p248 = scmp.lt.s32.totalorder %s245, 17
      %s249 = scalar_select %p248, %s245, 17
      %s250 = smul.addr %s249, 3
      %s251 = smul.addr %s247, 54
      %s252 = sadd.s32 %s250, %s251
      %s253 = smul.addr %s252, 8
      %s254 = scalar_lea.vmem %s1, %s253
      %p255 = pneg %p82
      %p256 = pneg %p79
      %p257 = pneg %p103
      %p258 = pneg %p100
      %p259 = pneg %p124
      %p260 = pneg %p121
      %p261 = pneg %p152
      %p262 = pneg %p149
      %s263 = smul.u32 16, %s20
      %p264 = scmp.lt.s32.totalorder %s19, 1
      %s265 = scalar_select %p264, %s19, 1
      %p266 = scmp.lt.s32.totalorder %s263, 15
      %s267 = scalar_select %p266, %s263, 15
      %s268 = smul.addr %s267, 2
      %s269 = smul.addr %s265, 32
      %s270 = sadd.s32 %s268, %s269
      %s271 = smul.addr %s270, 8
      %s272 = scalar_lea.vmem %s4, %s271
      %s273 = smul.u32 16, %s20
      %s274 = ssub.s32 18, %s273
      %p275 = scmp.lt.s32.totalorder %s274, 16
      %s276 = scalar_select %p275, %s274, 16
      %s277 = smul.u32 128, %s276
      %s278 = smul.u32 %s277, 3
      %p279 = scmp.lt.s32.totalorder %s19, 1
      %s280 = scalar_select %p279, %s19, 1
      %p281 = scmp.lt.s32.totalorder %s273, 17
      %s282 = scalar_select %p281, %s273, 17
      %s283 = smul.addr %s282, 3
      %s284 = smul.addr %s280, 54
      %s285 = sadd.s32 %s283, %s284
      %s286 = smul.addr %s285, 8
      %s287 = scalar_lea.vmem %s0, %s286
      %s288 = smul.u32 16, %s20
      %s289 = ssub.s32 18, %s288
      %p290 = scmp.lt.s32.totalorder %s289, 16
      %s291 = scalar_select %p290, %s289, 16
      %s292 = smul.u32 128, %s291
      %s293 = smul.u32 %s292, 3
      %s294 = smul.u32 %s20, 8
      %s295 = sadd.s32 %s294, 8
      %s296 = smul.u32 2, %s295
      %p297 = scmp.lt.s32.totalorder %s19, 1
      %s298 = scalar_select %p297, %s19, 1
      %p299 = scmp.lt.s32.totalorder %s296, 17
      %s300 = scalar_select %p299, %s296, 17
      %s301 = smul.addr %s300, 3
      %s302 = smul.addr %s298, 54
      %s303 = sadd.s32 %s301, %s302
      %s304 = smul.addr %s303, 8
      %s305 = scalar_lea.vmem %s1, %s304
      %s306 = smul.u32 %s20, 8
      %s307 = sadd.s32 %s306, 8
      %s308 = smul.u32 2, %s307
      %s309 = smul.u32 16, %s20
      %p310 = scmp.lt.s32.totalorder %s19, 1
      %s311 = scalar_select %p310, %s19, 1
      %p312 = scmp.lt.s32.totalorder %s309, 15
      %s313 = scalar_select %p312, %s309, 15
      %s314 = smul.addr %s313, 2
      %s315 = smul.addr %s311, 32
      %s316 = sadd.s32 %s314, %s315
      %s317 = smul.addr %s316, 8
      %s318 = scalar_lea.vmem %s4, %s317
      %s319 = smul.u32 16, %s20
      %v320 = vld [vmem:[%s287] sm:$0xff]
      %v321 = vld [vmem:[%s287 + $0x8] sm:$0xff]
      %v322 = vld [vmem:[%s287 + $0x10] sm:$0x3]
      %v323 = vld [vmem:[%s287 + $0x18] sm:$0xff]
      %v324 = vld [vmem:[%s287 + $0x20] sm:$0xff]
      %v325 = vld [vmem:[%s287 + $0x28] sm:$0x3]
      %v326 = vld [vmem:[%s287 + $0x30] sm:$0xff]
      %v327 = vld [vmem:[%s287 + $0x38] sm:$0xff]
      %v328 = vld [vmem:[%s287 + $0x40] sm:$0x3]
      %v329 = vld [vmem:[%s287 + $0x48] sm:$0xff]
      %v330 = vld [vmem:[%s287 + $0x50] sm:$0xff]
      %v331 = vld [vmem:[%s287 + $0x58] sm:$0x3]
      %v332 = vld [vmem:[%s287 + $0x60] sm:$0xff]
      %v333 = vld [vmem:[%s287 + $0x68] sm:$0xff]
      %v334 = vld [vmem:[%s287 + $0x70] sm:$0x3]
      %v335 = vld [vmem:[%s287 + $0x78] sm:$0xff]
      %v336 = vld [vmem:[%s287 + $0x80] sm:$0xff]
      %v337 = vld [vmem:[%s287 + $0x88] sm:$0x3]
      %v338 = vld [vmem:[%s287 + $0x90] sm:$0xff]
      %v339 = vld [vmem:[%s287 + $0x98] sm:$0xff]
      %v340 = vld [vmem:[%s287 + $0xa0] sm:$0x3]
      %v341 = vld [vmem:[%s287 + $0xa8] sm:$0xff]
      %v342 = vld [vmem:[%s287 + $0xb0] sm:$0xff]
      %v343 = vld [vmem:[%s287 + $0xb8] sm:$0x3]
      %v344 = vld [vmem:[%s287 + $0xc0] sm:$0xff]
      %v345 = vld [vmem:[%s287 + $0xc8] sm:$0xff]
      %v346 = vld [vmem:[%s287 + $0xd0] sm:$0x3]
      %v347 = vld [vmem:[%s287 + $0xd8] sm:$0xff]
      %v348 = vld [vmem:[%s287 + $0xe0] sm:$0xff]
      %v349 = vld [vmem:[%s287 + $0xe8] sm:$0x3]
      %v350 = vld [vmem:[%s287 + $0xf0] sm:$0xff]
      %v351 = vld [vmem:[%s287 + $0xf8] sm:$0xff]
      %v352 = vld [vmem:[%s287 + $0x100] sm:$0x3]
      %v353 = vld [vmem:[%s287 + $0x108] sm:$0xff]
      %v354 = vld [vmem:[%s287 + $0x110] sm:$0xff]
      %v355 = vld [vmem:[%s287 + $0x118] sm:$0x3]
      %v356 = vld [vmem:[%s287 + $0x120] sm:$0xff]
      %v357 = vld [vmem:[%s287 + $0x128] sm:$0xff]
      %v358 = vld [vmem:[%s287 + $0x130] sm:$0x3]
      %v359 = vld [vmem:[%s287 + $0x138] sm:$0xff]
      %v360 = vld [vmem:[%s287 + $0x140] sm:$0xff]
      %v361 = vld [vmem:[%s287 + $0x148] sm:$0x3]
      %v362 = vld [vmem:[%s287 + $0x150] sm:$0xff]
      %v363 = vld [vmem:[%s287 + $0x158] sm:$0xff]
      %v364 = vld [vmem:[%s287 + $0x160] sm:$0x3]
      %v365 = vld [vmem:[%s287 + $0x168] sm:$0xff]
      %v366 = vld [vmem:[%s287 + $0x170] sm:$0xff]
      %v367 = vld [vmem:[%s287 + $0x178] sm:$0x3]
      %v368 = vld [vmem:[%s305] sm:$0xff]
      %v369 = vld [vmem:[%s305 + $0x8] sm:$0xff]
      %v370 = vld [vmem:[%s305 + $0x10] sm:$0x3]
      %v371 = vld [vmem:[%s305 + $0x18] sm:$0xff]
      %v372 = vld [vmem:[%s305 + $0x20] sm:$0xff]
      %v373 = vld [vmem:[%s305 + $0x28] sm:$0x3]
      %v374 = vld [vmem:[%s2] sm:$0xff]
      %vm423 = vcmask 1046528
      %v424 = vrot.slane %v320, 1
      %v425 = vrot.slane %v321, 1
      %v426 = vsel %vm423, %v424, %v425
      %v427 = vrot.slane %v322, 1
      %v428 = vsel %vm423, %v425, %v427
      %v429 = vrot.slane %v323, 1
      %v430 = vrot.slane %v324, 1
      %v431 = vsel %vm423, %v429, %v430
      %v432 = vrot.slane %v325, 1
      %v433 = vsel %vm423, %v430, %v432
      %v434 = vrot.slane %v326, 1
      %v435 = vrot.slane %v327, 1
      %v436 = vsel %vm423, %v434, %v435
      %v437 = vrot.slane %v328, 1
      %v438 = vsel %vm423, %v435, %v437
      %v439 = vrot.slane %v329, 1
      %v440 = vrot.slane %v330, 1
      %v441 = vsel %vm423, %v439, %v440
      %v442 = vrot.slane %v331, 1
      %v443 = vsel %vm423, %v440, %v442
      %v444 = vrot.slane %v332, 1
      %v445 = vrot.slane %v333, 1
      %v446 = vsel %vm423, %v444, %v445
      %v447 = vrot.slane %v334, 1
      %v448 = vsel %vm423, %v445, %v447
      %v449 = vrot.slane %v335, 1
      %v450 = vrot.slane %v336, 1
      %v451 = vsel %vm423, %v449, %v450
      %v452 = vrot.slane %v337, 1
      %v453 = vsel %vm423, %v450, %v452
      %v454 = vrot.slane %v338, 1
      %v455 = vrot.slane %v339, 1
      %v456 = vsel %vm423, %v454, %v455
      %v457 = vrot.slane %v340, 1
      %v458 = vsel %vm423, %v455, %v457
      %v459 = vrot.slane %v341, 1
      %v460 = vrot.slane %v342, 1
      %v461 = vsel %vm423, %v459, %v460
      %v462 = vrot.slane %v343, 1
      %v463 = vsel %vm423, %v460, %v462
      %v464 = vrot.slane %v344, 1
      %v465 = vrot.slane %v345, 1
      %v466 = vsel %vm423, %v464, %v465
      %v467 = vrot.slane %v346, 1
      %v468 = vsel %vm423, %v465, %v467
      %v469 = vrot.slane %v347, 1
      %v470 = vrot.slane %v348, 1
      %v471 = vsel %vm423, %v469, %v470
      %v472 = vrot.slane %v349, 1
      %v473 = vsel %vm423, %v470, %v472
      %v474 = vrot.slane %v350, 1
      %v475 = vrot.slane %v351, 1
      %v476 = vsel %vm423, %v474, %v475
      %v477 = vrot.slane %v352, 1
      %v478 = vsel %vm423, %v475, %v477
      %v479 = vrot.slane %v353, 1
      %v480 = vrot.slane %v354, 1
      %v481 = vsel %vm423, %v479, %v480
      %v482 = vrot.slane %v355, 1
      %v483 = vsel %vm423, %v480, %v482
      %v484 = vrot.slane %v356, 1
      %v485 = vrot.slane %v357, 1
      %v486 = vsel %vm423, %v484, %v485
      %v487 = vrot.slane %v358, 1
      %v488 = vsel %vm423, %v485, %v487
      %v489 = vrot.slane %v359, 1
      %v490 = vrot.slane %v360, 1
      %v491 = vsel %vm423, %v489, %v490
      %v492 = vrot.slane %v361, 1
      %v493 = vsel %vm423, %v490, %v492
      %v494 = vrot.slane %v362, 1
      %v495 = vrot.slane %v363, 1
      %v496 = vsel %vm423, %v494, %v495
      %v497 = vrot.slane %v364, 1
      %v498 = vsel %vm423, %v495, %v497
      %v499 = vrot.slane %v365, 1
      %v500 = vrot.slane %v366, 1
      %v501 = vsel %vm423, %v499, %v500
      %v502 = vrot.slane %v367, 1
      %v503 = vsel %vm423, %v500, %v502
      %s504 = scalar_lea.vmem %s2, 8
      %v505 = vld [vmem:[%s504] sm:$0xff]
      %vm506 = vcmask 64512
      %v507 = vsel %vm506, %v426, 0
      %v509 = vsel %vm506, %v428, 0
      %v511 = vsel %vm506, %v431, 0
      %v513 = vsel %vm506, %v433, 0
      %v515 = vsel %vm506, %v436, 0
      %v517 = vsel %vm506, %v438, 0
      %v519 = vsel %vm506, %v441, 0
      %v521 = vsel %vm506, %v443, 0
      %v523 = vsel %vm506, %v446, 0
      %v525 = vsel %vm506, %v448, 0
      %v527 = vsel %vm506, %v451, 0
      %v529 = vsel %vm506, %v453, 0
      %v531 = vsel %vm506, %v456, 0
      %v533 = vsel %vm506, %v458, 0
      %v535 = vsel %vm506, %v461, 0
      %v537 = vsel %vm506, %v463, 0
      %v539 = vsel %vm506, %v466, 0
      %v541 = vsel %vm506, %v468, 0
      %v543 = vsel %vm506, %v471, 0
      %v545 = vsel %vm506, %v473, 0
      %v547 = vsel %vm506, %v476, 0
      %v549 = vsel %vm506, %v478, 0
      %v551 = vsel %vm506, %v481, 0
      %v553 = vsel %vm506, %v483, 0
      %v555 = vsel %vm506, %v486, 0
      %v557 = vsel %vm506, %v488, 0
      %v559 = vsel %vm506, %v491, 0
      %v561 = vsel %vm506, %v493, 0
      %v563 = vsel %vm506, %v496, 0
      %v565 = vsel %vm506, %v498, 0
      %v567 = vsel %vm506, %v501, 0
      %v569 = vsel %vm506, %v503, 0
      %571 = vmatprep.subr.mxu0 0.0
      %572 = vmatpush1.msra.mxu0 %v505
      %573 = vmatprep.subr.mxu0 0.0
      %574 = vmatpush1.msra.mxu0 0.0
      %575 = vmatprep.subr.mxu0 0.0
      %576 = vmatpush1.msra.mxu0 0.0
      %577 = vmatprep.subr.mxu0 0.0
      %578 = vmatpush1.msra.mxu0 0.0
      %579 = vmatprep.subr.mxu0 0.0
      %580 = vmatpush1.msra.mxu0 0.0
      %581 = vmatprep.subr.mxu0 0.0
      %582 = vmatpush1.msra.mxu0 0.0
      %583 = vmatprep.subr.mxu0 0.0
      %584 = vmatpush1.msra.mxu0 0.0
      %585 = vmatprep.subr.mxu0 0.0
      %586 = vmatpush1.msra.mxu0 0.0
      %587 = vmatprep.subr.mxu0 0.0
      %588 = vmatpush1.msra.mxu0 0.0
      %589 = vmatprep.subr.mxu0 0.0
      %590 = vmatpush1.msra.mxu0 0.0
      %591 = vmatprep.subr.mxu0 0.0
      %592 = vmatpush1.msra.mxu0 0.0
      %593 = vmatprep.subr.mxu0 0.0
      %594 = vmatpush1.msra.mxu0 0.0
      %595 = vmatprep.subr.mxu0 0.0
      %596 = vmatpush1.msra.mxu0 0.0
      %597 = vmatprep.subr.mxu0 0.0
      %598 = vmatpush1.msra.mxu0 0.0
      %599 = vmatprep.subr.mxu0 0.0
      %600 = vmatpush1.msra.mxu0 0.0
      %601 = vmatprep.subr.mxu0 0.0
      %602 = vmatpush1.msra.mxu0 0.0
      %603 = vmatprep.subr.mxu0 0.0
      %604 = vmatpush1.msra.mxu0 0.0
      %605 = vmatprep.subr.mxu0 0.0
      %606 = vmatpush1.msra.mxu0 0.0
      %607 = vmatprep.subr.mxu0 0.0
      %608 = vmatpush1.msra.mxu0 0.0
      %609 = vmatprep.subr.mxu0 0.0
      %610 = vmatpush1.msra.mxu0 0.0
      %611 = vmatprep.subr.mxu0 0.0
      %612 = vmatpush1.msra.mxu0 0.0
      %613 = vmatprep.subr.mxu0 0.0
      %614 = vmatpush1.msra.mxu0 0.0
      %615 = vmatprep.subr.mxu0 0.0
      %616 = vmatpush1.msra.mxu0 0.0
      %617 = vmatprep.subr.mxu0 0.0
      %618 = vmatpush1.msra.mxu0 0.0
      %619 = vmatprep.subr.mxu0 0.0
      %620 = vmatpush1.msra.mxu0 0.0
      %621 = vmatprep.subr.mxu0 0.0
      %622 = vmatpush1.msra.mxu0 0.0
      %623 = vmatprep.subr.mxu0 0.0
      %624 = vmatpush1.msra.mxu0 0.0
      %625 = vmatprep.subr.mxu0 0.0
      %626 = vmatpush1.msra.mxu0 0.0
      %627 = vmatprep.subr.mxu0 0.0
      %628 = vmatpush1.msra.mxu0 0.0
      %629 = vmatprep.subr.mxu0 0.0
      %630 = vmatpush1.msra.mxu0 0.0
      %631 = vmatprep.subr.mxu0 0.0
      %632 = vmatpush1.msra.mxu0 0.0
      %633 = vmatprep.subr.mxu0 0.0
      %634 = vmatpush1.msra.mxu0 0.0
      %635 = vmatprep.mubr.f32.mxu0 0.0
      %636 = vmatmul.mubr.f32.gmra.mrb[0].mxu0 %v507
      %v637 = vpop.f32.mrb[0].mxu0
      %v638 = vadd.f32 0.0, %v637
      %v639 = vpop.f32.mrb[0].mxu0
      %640 = vmatprep.mubr.f32.mxu0 0.0
      %641 = vmatmul.mubr.f32.gmra.mrb[0].mxu0 %v509
      %v642 = vpop.f32.mrb[0].mxu0
      %v643 = vadd.f32 0.0, %v642
      %v644 = vpop.f32.mrb[0].mxu0
      %645 = vmatprep.mubr.f32.mxu0 0.0
      %646 = vmatmul.mubr.f32.gmra.mrb[0].mxu0 %v511
      %v647 = vpop.f32.mrb[0].mxu0
      %v648 = vadd.f32 0.0, %v647
      %v649 = vpop.f32.mrb[0].mxu0
      %650 = vmatprep.mubr.f32.mxu0 0.0
      %651 = vmatmul.mubr.f32.gmra.mrb[0].mxu0 %v513
      %v652 = vpop.f32.mrb[0].mxu0
      %v653 = vadd.f32 0.0, %v652
      %v654 = vpop.f32.mrb[0].mxu0
      %655 = vmatprep.mubr.f32.mxu0 0.0
      %656 = vmatmul.mubr.f32.gmra.mrb[0].mxu0 %v515
      %v657 = vpop.f32.mrb[0].mxu0
      %v658 = vadd.f32 0.0, %v657
      %v659 = vpop.f32.mrb[0].mxu0
      %660 = vmatprep.mubr.f32.mxu0 0.0
      %661 = vmatmul.mubr.f32.gmra.mrb[0].mxu0 %v517
      %v662 = vpop.f32.mrb[0].mxu0
      %v663 = vadd.f32 0.0, %v662
      %v664 = vpop.f32.mrb[0].mxu0
      %665 = vmatprep.mubr.f32.mxu0 0.0
      %666 = vmatmul.mubr.f32.gmra.mrb[0].mxu0 %v519
      %v667 = vpop.f32.mrb[0].mxu0
      %v668 = vadd.f32 0.0, %v667
      %v669 = vpop.f32.mrb[0].mxu0
      %670 = vmatprep.mubr.f32.mxu0 0.0
      %671 = vmatmul.mubr.f32.gmra.mrb[0].mxu0 %v521
      %v672 = vpop.f32.mrb[0].mxu0
      %v673 = vadd.f32 0.0, %v672
      %v674 = vpop.f32.mrb[0].mxu0
      %675 = vmatprep.mubr.f32.mxu0 0.0
      %676 = vmatmul.mubr.f32.gmra.mrb[0].mxu0 %v523
      %v677 = vpop.f32.mrb[0].mxu0
      %v678 = vadd.f32 0.0, %v677
      %v679 = vpop.f32.mrb[0].mxu0
      %680 = vmatprep.mubr.f32.mxu0 0.0
      %681 = vmatmul.mubr.f32.gmra.mrb[0].mxu0 %v525
      %v682 = vpop.f32.mrb[0].mxu0
      %v683 = vadd.f32 0.0, %v682
      %v684 = vpop.f32.mrb[0].mxu0
      %685 = vmatprep.mubr.f32.mxu0 0.0
      %686 = vmatmul.mubr.f32.gmra.mrb[0].mxu0 %v527
      %v687 = vpop.f32.mrb[0].mxu0
      %v688 = vadd.f32 0.0, %v687
      %v689 = vpop.f32.mrb[0].mxu0
      %690 = vmatprep.mubr.f32.mxu0 0.0
      %691 = vmatmul.mubr.f32.gmra.mrb[0].mxu0 %v529
      %v692 = vpop.f32.mrb[0].mxu0
      %v693 = vadd.f32 0.0, %v692
      %v694 = vpop.f32.mrb[0].mxu0
      %695 = vmatprep.mubr.f32.mxu0 0.0
      %696 = vmatmul.mubr.f32.gmra.mrb[0].mxu0 %v531
      %v697 = vpop.f32.mrb[0].mxu0
      %v698 = vadd.f32 0.0, %v697
      %v699 = vpop.f32.mrb[0].mxu0
      %700 = vmatprep.mubr.f32.mxu0 0.0
      %701 = vmatmul.mubr.f32.gmra.mrb[0].mxu0 %v533
      %v702 = vpop.f32.mrb[0].mxu0
      %v703 = vadd.f32 0.0, %v702
      %v704 = vpop.f32.mrb[0].mxu0
      %705 = vmatprep.mubr.f32.mxu0 0.0
      %706 = vmatmul.mubr.f32.gmra.mrb[0].mxu0 %v535
      %v707 = vpop.f32.mrb[0].mxu0
      %v708 = vadd.f32 0.0, %v707
      %v709 = vpop.f32.mrb[0].mxu0
      %710 = vmatprep.mubr.f32.mxu0 0.0
      %711 = vmatmul.mubr.f32.gmra.mrb[0].mxu0 %v537
      %v712 = vpop.f32.mrb[0].mxu0
      %v713 = vadd.f32 0.0, %v712
      %v714 = vpop.f32.mrb[0].mxu0
      %715 = vmatprep.mubr.f32.mxu0 0.0
      %716 = vmatmul.mubr.f32.gmra.mrb[0].mxu0 %v539
      %v717 = vpop.f32.mrb[0].mxu0
      %v718 = vadd.f32 0.0, %v717
      %v719 = vpop.f32.mrb[0].mxu0
      %720 = vmatprep.mubr.f32.mxu0 0.0
      %721 = vmatmul.mubr.f32.gmra.mrb[0].mxu0 %v541
      %v722 = vpop.f32.mrb[0].mxu0
      %v723 = vadd.f32 0.0, %v722
      %v724 = vpop.f32.mrb[0].mxu0
      %725 = vmatprep.mubr.f32.mxu0 0.0
      %726 = vmatmul.mubr.f32.gmra.mrb[0].mxu0 %v543
      %v727 = vpop.f32.mrb[0].mxu0
      %v728 = vadd.f32 0.0, %v727
      %v729 = vpop.f32.mrb[0].mxu0
      %730 = vmatprep.mubr.f32.mxu0 0.0
      %731 = vmatmul.mubr.f32.gmra.mrb[0].mxu0 %v545
      %v732 = vpop.f32.mrb[0].mxu0
      %v733 = vadd.f32 0.0, %v732
      %v734 = vpop.f32.mrb[0].mxu0
      %735 = vmatprep.mubr.f32.mxu0 0.0
      %736 = vmatmul.mubr.f32.gmra.mrb[0].mxu0 %v547
      %v737 = vpop.f32.mrb[0].mxu0
      %v738 = vadd.f32 0.0, %v737
      %v739 = vpop.f32.mrb[0].mxu0
      %740 = vmatprep.mubr.f32.mxu0 0.0
      %741 = vmatmul.mubr.f32.gmra.mrb[0].mxu0 %v549
      %v742 = vpop.f32.mrb[0].mxu0
      %v743 = vadd.f32 0.0, %v742
      %v744 = vpop.f32.mrb[0].mxu0
      %745 = vmatprep.mubr.f32.mxu0 0.0
      %746 = vmatmul.mubr.f32.gmra.mrb[0].mxu0 %v551
      %v747 = vpop.f32.mrb[0].mxu0
      %v748 = vadd.f32 0.0, %v747
      %v749 = vpop.f32.mrb[0].mxu0
      %750 = vmatprep.mubr.f32.mxu0 0.0
      %751 = vmatmul.mubr.f32.gmra.mrb[0].mxu0 %v553
      %v752 = vpop.f32.mrb[0].mxu0
      %v753 = vadd.f32 0.0, %v752
      %v754 = vpop.f32.mrb[0].mxu0
      %755 = vmatprep.mubr.f32.mxu0 0.0
      %756 = vmatmul.mubr.f32.gmra.mrb[0].mxu0 %v555
      %v757 = vpop.f32.mrb[0].mxu0
      %v758 = vadd.f32 0.0, %v757
      %v759 = vpop.f32.mrb[0].mxu0
      %760 = vmatprep.mubr.f32.mxu0 0.0
      %761 = vmatmul.mubr.f32.gmra.mrb[0].mxu0 %v557
      %v762 = vpop.f32.mrb[0].mxu0
      %v763 = vadd.f32 0.0, %v762
      %v764 = vpop.f32.mrb[0].mxu0
      %765 = vmatprep.mubr.f32.mxu0 0.0
      %766 = vmatmul.mubr.f32.gmra.mrb[0].mxu0 %v559
      %v767 = vpop.f32.mrb[0].mxu0
      %v768 = vadd.f32 0.0, %v767
      %v769 = vpop.f32.mrb[0].mxu0
      %770 = vmatprep.mubr.f32.mxu0 0.0
      %771 = vmatmul.mubr.f32.gmra.mrb[0].mxu0 %v561
      %v772 = vpop.f32.mrb[0].mxu0
      %v773 = vadd.f32 0.0, %v772
      %v774 = vpop.f32.mrb[0].mxu0
      %775 = vmatprep.mubr.f32.mxu0 0.0
      %776 = vmatmul.mubr.f32.gmra.mrb[0].mxu0 %v563
      %v777 = vpop.f32.mrb[0].mxu0
      %v778 = vadd.f32 0.0, %v777
      %v779 = vpop.f32.mrb[0].mxu0
      %780 = vmatprep.mubr.f32.mxu0 0.0
      %781 = vmatmul.mubr.f32.gmra.mrb[0].mxu0 %v565
      %v782 = vpop.f32.mrb[0].mxu0
      %v783 = vadd.f32 0.0, %v782
      %v784 = vpop.f32.mrb[0].mxu0
      %785 = vmatprep.mubr.f32.mxu0 0.0
      %786 = vmatmul.mubr.f32.gmra.mrb[0].mxu0 %v567
      %v787 = vpop.f32.mrb[0].mxu0
      %v788 = vadd.f32 0.0, %v787
      %v789 = vpop.f32.mrb[0].mxu0
      %790 = vmatprep.mubr.f32.mxu0 0.0
      %791 = vmatmul.mubr.f32.gmra.mrb[0].mxu0 %v569
      %v792 = vpop.f32.mrb[0].mxu0
      %v793 = vadd.f32 0.0, %v792
      %v794 = vpop.f32.mrb[0].mxu0
      %795 = vdwg.mxu0
      %v796 = vsel %vm506, %v320, 0
      %v798 = vsel %vm506, %v321, 0
      %v800 = vsel %vm506, %v323, 0
      %v802 = vsel %vm506, %v324, 0
      %v804 = vsel %vm506, %v326, 0
      %v806 = vsel %vm506, %v327, 0
      %v808 = vsel %vm506, %v329, 0
      %v810 = vsel %vm506, %v330, 0
      %v812 = vsel %vm506, %v332, 0
      %v814 = vsel %vm506, %v333, 0
      %v816 = vsel %vm506, %v335, 0
      %v818 = vsel %vm506, %v336, 0
      %v820 = vsel %vm506, %v338, 0
      %v822 = vsel %vm506, %v339, 0
      %v824 = vsel %vm506, %v341, 0
      %v826 = vsel %vm506, %v342, 0
      %v828 = vsel %vm506, %v344, 0
      %v830 = vsel %vm506, %v345, 0
      %v832 = vsel %vm506, %v347, 0
      %v834 = vsel %vm506, %v348, 0
      %v836 = vsel %vm506, %v350, 0
      %v838 = vsel %vm506, %v351, 0
      %v840 = vsel %vm506, %v353, 0
      %v842 = vsel %vm506, %v354, 0
      %v844 = vsel %vm506, %v356, 0
      %v846 = vsel %vm506, %v357, 0
      %v848 = vsel %vm506, %v359, 0
      %v850 = vsel %vm506, %v360, 0
      %v852 = vsel %vm506, %v362, 0
      %v854 = vsel %vm506, %v363, 0
      %v856 = vsel %vm506, %v365, 0
      %v858 = vsel %vm506, %v366, 0
      %860 = vmatprep.subr.mxu0 0.0
      %861 = vmatpush1.msra.mxu0 %v374
      %862 = vmatprep.subr.mxu0 0.0
      %863 = vmatpush1.msra.mxu0 0.0
      %864 = vmatprep.subr.mxu0 0.0
      %865 = vmatpush1.msra.mxu0 0.0
      %866 = vmatprep.subr.mxu0 0.0
      %867 = vmatpush1.msra.mxu0 0.0
      %868 = vmatprep.subr.mxu0 0.0
      %869 = vmatpush1.msra.mxu0 0.0
      %870 = vmatprep.subr.mxu0 0.0
      %871 = vmatpush1.msra.mxu0 0.0
      %872 = vmatprep.subr.mxu0 0.0
      %873 = vmatpush1.msra.mxu0 0.0
      %874 = vmatprep.subr.mxu0 0.0
      %875 = vmatpush1.msra.mxu0 0.0
      %876 = vmatprep.subr.mxu0 0.0
      %877 = vmatpush1.msra.mxu0 0.0
      %878 = vmatprep.subr.mxu0 0.0
      %879 = vmatpush1.msra.mxu0 0.0
      %880 = vmatprep.subr.mxu0 0.0
      %881 = vmatpush1.msra.mxu0 0.0
      %882 = vmatprep.subr.mxu0 0.0
      %883 = vmatpush1.msra.mxu0 0.0
      %884 = vmatprep.subr.mxu0 0.0
      %885 = vmatpush1.msra.mxu0 0.0
      %886 = vmatprep.subr.mxu0 0.0
      %887 = vmatpush1.msra.mxu0 0.0
      %888 = vmatprep.subr.mxu0 0.0
      %889 = vmatpush1.msra.mxu0 0.0
      %890 = vmatprep.subr.mxu0 0.0
      %891 = vmatpush1.msra.mxu0 0.0
      %892 = vmatprep.subr.mxu0 0.0
      %893 = vmatpush1.msra.mxu0 0.0
      %894 = vmatprep.subr.mxu0 0.0
      %895 = vmatpush1.msra.mxu0 0.0
      %896 = vmatprep.subr.mxu0 0.0
      %897 = vmatpush1.msra.mxu0 0.0
      %898 = vmatprep.subr.mxu0 0.0
      %899 = vmatpush1.msra.mxu0 0.0
      %900 = vmatprep.subr.mxu0 0.0
      %901 = vmatpush1.msra.mxu0 0.0
      %902 = vmatprep.subr.mxu0 0.0
      %903 = vmatpush1.msra.mxu0 0.0
      %904 = vmatprep.subr.mxu0 0.0
      %905 = vmatpush1.msra.mxu0 0.0
      %906 = vmatprep.subr.mxu0 0.0
      %907 = vmatpush1.msra.mxu0 0.0
      %908 = vmatprep.subr.mxu0 0.0
      %909 = vmatpush1.msra.mxu0 0.0
      %910 = vmatprep.subr.mxu0 0.0
      %911 = vmatpush1.msra.mxu0 0.0
      %912 = vmatprep.subr.mxu0 0.0
      %913 = vmatpush1.msra.mxu0 0.0
      %914 = vmatprep.subr.mxu0 0.0
      %915 = vmatpush1.msra.mxu0 0.0
      %916 = vmatprep.subr.mxu0 0.0
      %917 = vmatpush1.msra.mxu0 0.0
      %918 = vmatprep.subr.mxu0 0.0
      %919 = vmatpush1.msra.mxu0 0.0
      %920 = vmatprep.subr.mxu0 0.0
      %921 = vmatpush1.msra.mxu0 0.0
      %922 = vmatprep.subr.mxu0 0.0
      %923 = vmatpush1.msra.mxu0 0.0
      %924 = vmatprep.mubr.f32.mxu0 0.0
      %925 = vmatmul.mubr.f32.gmra.mrb[0].mxu0 %v796
      %v926 = vpop.f32.mrb[0].mxu0
      %v927 = vadd.f32 %v638, %v926
      %v928 = vpop.f32.mrb[0].mxu0
      %929 = vmatprep.mubr.f32.mxu0 0.0
      %930 = vmatmul.mubr.f32.gmra.mrb[0].mxu0 %v798
      %v931 = vpop.f32.mrb[0].mxu0
      %v932 = vadd.f32 %v643, %v931
      %v933 = vpop.f32.mrb[0].mxu0
      %934 = vmatprep.mubr.f32.mxu0 0.0
      %935 = vmatmul.mubr.f32.gmra.mrb[0].mxu0 %v800
      %v936 = vpop.f32.mrb[0].mxu0
      %v937 = vadd.f32 %v648, %v936
      %v938 = vpop.f32.mrb[0].mxu0
      %939 = vmatprep.mubr.f32.mxu0 0.0
      %940 = vmatmul.mubr.f32.gmra.mrb[0].mxu0 %v802
      %v941 = vpop.f32.mrb[0].mxu0
      %v942 = vadd.f32 %v653, %v941
      %v943 = vpop.f32.mrb[0].mxu0
      %944 = vmatprep.mubr.f32.mxu0 0.0
      %945 = vmatmul.mubr.f32.gmra.mrb[0].mxu0 %v804
      %v946 = vpop.f32.mrb[0].mxu0
      %v947 = vadd.f32 %v658, %v946
      %v948 = vpop.f32.mrb[0].mxu0
      %949 = vmatprep.mubr.f32.mxu0 0.0
      %950 = vmatmul.mubr.f32.gmra.mrb[0].mxu0 %v806
      %v951 = vpop.f32.mrb[0].mxu0
      %v952 = vadd.f32 %v663, %v951
      %v953 = vpop.f32.mrb[0].mxu0
      %954 = vmatprep.mubr.f32.mxu0 0.0
      %955 = vmatmul.mubr.f32.gmra.mrb[0].mxu0 %v808
      %v956 = vpop.f32.mrb[0].mxu0
      %v957 = vadd.f32 %v668, %v956
      %v958 = vpop.f32.mrb[0].mxu0
      %959 = vmatprep.mubr.f32.mxu0 0.0
      %960 = vmatmul.mubr.f32.gmra.mrb[0].mxu0 %v810
      %v961 = vpop.f32.mrb[0].mxu0
      %v962 = vadd.f32 %v673, %v961
      %v963 = vpop.f32.mrb[0].mxu0
      %964 = vmatprep.mubr.f32.mxu0 0.0
      %965 = vmatmul.mubr.f32.gmra.mrb[0].mxu0 %v812
      %v966 = vpop.f32.mrb[0].mxu0
      %v967 = vadd.f32 %v678, %v966
      %v968 = vpop.f32.mrb[0].mxu0
      %969 = vmatprep.mubr.f32.mxu0 0.0
      %970 = vmatmul.mubr.f32.gmra.mrb[0].mxu0 %v814
      %v971 = vpop.f32.mrb[0].mxu0
      %v972 = vadd.f32 %v683, %v971
      %v973 = vpop.f32.mrb[0].mxu0
      %974 = vmatprep.mubr.f32.mxu0 0.0
      %975 = vmatmul.mubr.f32.gmra.mrb[0].mxu0 %v816
      %v976 = vpop.f32.mrb[0].mxu0
      %v977 = vadd.f32 %v688, %v976
      %v978 = vpop.f32.mrb[0].mxu0
      %979 = vmatprep.mubr.f32.mxu0 0.0
      %980 = vmatmul.mubr.f32.gmra.mrb[0].mxu0 %v818
      %v981 = vpop.f32.mrb[0].mxu0
      %v982 = vadd.f32 %v693, %v981
      %v983 = vpop.f32.mrb[0].mxu0
      %984 = vmatprep.mubr.f32.mxu0 0.0
      %985 = vmatmul.mubr.f32.gmra.mrb[0].mxu0 %v820
      %v986 = vpop.f32.mrb[0].mxu0
      %v987 = vadd.f32 %v698, %v986
      %v988 = vpop.f32.mrb[0].mxu0
      %989 = vmatprep.mubr.f32.mxu0 0.0
      %990 = vmatmul.mubr.f32.gmra.mrb[0].mxu0 %v822
      %v991 = vpop.f32.mrb[0].mxu0
      %v992 = vadd.f32 %v703, %v991
      %v993 = vpop.f32.mrb[0].mxu0
      %994 = vmatprep.mubr.f32.mxu0 0.0
      %995 = vmatmul.mubr.f32.gmra.mrb[0].mxu0 %v824
      %v996 = vpop.f32.mrb[0].mxu0
      %v997 = vadd.f32 %v708, %v996
      %v998 = vpop.f32.mrb[0].mxu0
      %999 = vmatprep.mubr.f32.mxu0 0.0
      %1000 = vmatmul.mubr.f32.gmra.mrb[0].mxu0 %v826
      %v1001 = vpop.f32.mrb[0].mxu0
      %v1002 = vadd.f32 %v713, %v1001
      %v1003 = vpop.f32.mrb[0].mxu0
      %1004 = vmatprep.mubr.f32.mxu0 0.0
      %1005 = vmatmul.mubr.f32.gmra.mrb[0].mxu0 %v828
      %v1006 = vpop.f32.mrb[0].mxu0
      %v1007 = vadd.f32 %v718, %v1006
      %v1008 = vpop.f32.mrb[0].mxu0
      %1009 = vmatprep.mubr.f32.mxu0 0.0
      %1010 = vmatmul.mubr.f32.gmra.mrb[0].mxu0 %v830
      %v1011 = vpop.f32.mrb[0].mxu0
      %v1012 = vadd.f32 %v723, %v1011
      %v1013 = vpop.f32.mrb[0].mxu0
      %1014 = vmatprep.mubr.f32.mxu0 0.0
      %1015 = vmatmul.mubr.f32.gmra.mrb[0].mxu0 %v832
      %v1016 = vpop.f32.mrb[0].mxu0
      %v1017 = vadd.f32 %v728, %v1016
      %v1018 = vpop.f32.mrb[0].mxu0
      %1019 = vmatprep.mubr.f32.mxu0 0.0
      %1020 = vmatmul.mubr.f32.gmra.mrb[0].mxu0 %v834
      %v1021 = vpop.f32.mrb[0].mxu0
      %v1022 = vadd.f32 %v733, %v1021
      %v1023 = vpop.f32.mrb[0].mxu0
      %1024 = vmatprep.mubr.f32.mxu0 0.0
      %1025 = vmatmul.mubr.f32.gmra.mrb[0].mxu0 %v836
      %v1026 = vpop.f32.mrb[0].mxu0
      %v1027 = vadd.f32 %v738, %v1026
      %v1028 = vpop.f32.mrb[0].mxu0
      %1029 = vmatprep.mubr.f32.mxu0 0.0
      %1030 = vmatmul.mubr.f32.gmra.mrb[0].mxu0 %v838
      %v1031 = vpop.f32.mrb[0].mxu0
      %v1032 = vadd.f32 %v743, %v1031
      %v1033 = vpop.f32.mrb[0].mxu0
      %1034 = vmatprep.mubr.f32.mxu0 0.0
      %1035 = vmatmul.mubr.f32.gmra.mrb[0].mxu0 %v840
      %v1036 = vpop.f32.mrb[0].mxu0
      %v1037 = vadd.f32 %v748, %v1036
      %v1038 = vpop.f32.mrb[0].mxu0
      %1039 = vmatprep.mubr.f32.mxu0 0.0
      %1040 = vmatmul.mubr.f32.gmra.mrb[0].mxu0 %v842
      %v1041 = vpop.f32.mrb[0].mxu0
      %v1042 = vadd.f32 %v753, %v1041
      %v1043 = vpop.f32.mrb[0].mxu0
      %1044 = vmatprep.mubr.f32.mxu0 0.0
      %1045 = vmatmul.mubr.f32.gmra.mrb[0].mxu0 %v844
      %v1046 = vpop.f32.mrb[0].mxu0
      %v1047 = vadd.f32 %v758, %v1046
      %v1048 = vpop.f32.mrb[0].mxu0
      %1049 = vmatprep.mubr.f32.mxu0 0.0
      %1050 = vmatmul.mubr.f32.gmra.mrb[0].mxu0 %v846
      %v1051 = vpop.f32.mrb[0].mxu0
      %v1052 = vadd.f32 %v763, %v1051
      %v1053 = vpop.f32.mrb[0].mxu0
      %1054 = vmatprep.mubr.f32.mxu0 0.0
      %1055 = vmatmul.mubr.f32.gmra.mrb[0].mxu0 %v848
      %v1056 = vpop.f32.mrb[0].mxu0
      %v1057 = vadd.f32 %v768, %v1056
      %v1058 = vpop.f32.mrb[0].mxu0
      %1059 = vmatprep.mubr.f32.mxu0 0.0
      %1060 = vmatmul.mubr.f32.gmra.mrb[0].mxu0 %v850
      %v1061 = vpop.f32.mrb[0].mxu0
      %v1062 = vadd.f32 %v773, %v1061
      %v1063 = vpop.f32.mrb[0].mxu0
      %1064 = vmatprep.mubr.f32.mxu0 0.0
      %1065 = vmatmul.mubr.f32.gmra.mrb[0].mxu0 %v852
      %v1066 = vpop.f32.mrb[0].mxu0
      %v1067 = vadd.f32 %v778, %v1066
      %v1068 = vpop.f32.mrb[0].mxu0
      %1069 = vmatprep.mubr.f32.mxu0 0.0
      %1070 = vmatmul.mubr.f32.gmra.mrb[0].mxu0 %v854
      %v1071 = vpop.f32.mrb[0].mxu0
      %v1072 = vadd.f32 %v783, %v1071
      %v1073 = vpop.f32.mrb[0].mxu0
      %1074 = vmatprep.mubr.f32.mxu0 0.0
      %1075 = vmatmul.mubr.f32.gmra.mrb[0].mxu0 %v856
      %v1076 = vpop.f32.mrb[0].mxu0
      %v1077 = vadd.f32 %v788, %v1076
      %v1078 = vpop.f32.mrb[0].mxu0
      %1079 = vmatprep.mubr.f32.mxu0 0.0
      %1080 = vmatmul.mubr.f32.gmra.mrb[0].mxu0 %v858
      %v1081 = vpop.f32.mrb[0].mxu0
      %v1082 = vadd.f32 %v793, %v1081
      %v1083 = vpop.f32.mrb[0].mxu0
      %1084 = vdwg.mxu0
      %vm1085 = vcmask 1045504
      %v1086 = vrot.slane %v320, 2
      %v1087 = vrot.slane %v321, 2
      %v1088 = vsel %vm1085, %v1086, %v1087
      %v1089 = vrot.slane %v322, 2
      %v1090 = vsel %vm1085, %v1087, %v1089
      %v1091 = vrot.slane %v323, 2
      %v1092 = vrot.slane %v324, 2
      %v1093 = vsel %vm1085, %v1091, %v1092
      %v1094 = vrot.slane %v325, 2
      %v1095 = vsel %vm1085, %v1092, %v1094
      %v1096 = vrot.slane %v326, 2
      %v1097 = vrot.slane %v327, 2
      %v1098 = vsel %vm1085, %v1096, %v1097
      %v1099 = vrot.slane %v328, 2
      %v1100 = vsel %vm1085, %v1097, %v1099
      %v1101 = vrot.slane %v329, 2
      %v1102 = vrot.slane %v330, 2
      %v1103 = vsel %vm1085, %v1101, %v1102
      %v1104 = vrot.slane %v331, 2
      %v1105 = vsel %vm1085, %v1102, %v1104
      %v1106 = vrot.slane %v332, 2
      %v1107 = vrot.slane %v333, 2
      %v1108 = vsel %vm1085, %v1106, %v1107
      %v1109 = vrot.slane %v334, 2
      %v1110 = vsel %vm1085, %v1107, %v1109
      %v1111 = vrot.slane %v335, 2
      %v1112 = vrot.slane %v336, 2
      %v1113 = vsel %vm1085, %v1111, %v1112
      %v1114 = vrot.slane %v337, 2
      %v1115 = vsel %vm1085, %v1112, %v1114
      %v1116 = vrot.slane %v338, 2
      %v1117 = vrot.slane %v339, 2
      %v1118 = vsel %vm1085, %v1116, %v1117
      %v1119 = vrot.slane %v340, 2
      %v1120 = vsel %vm1085, %v1117, %v1119
      %v1121 = vrot.slane %v341, 2
      %v1122 = vrot.slane %v342, 2
      %v1123 = vsel %vm1085, %v1121, %v1122
      %v1124 = vrot.slane %v343, 2
      %v1125 = vsel %vm1085, %v1122, %v1124
      %v1126 = vrot.slane %v344, 2
      %v1127 = vrot.slane %v345, 2
      %v1128 = vsel %vm1085, %v1126, %v1127
      %v1129 = vrot.slane %v346, 2
      %v1130 = vsel %vm1085, %v1127, %v1129
      %v1131 = vrot.slane %v347, 2
      %v1132 = vrot.slane %v348, 2
      %v1133 = vsel %vm1085, %v1131, %v1132
      %v1134 = vrot.slane %v349, 2
      %v1135 = vsel %vm1085, %v1132, %v1134
      %v1136 = vrot.slane %v350, 2
      %v1137 = vrot.slane %v351, 2
      %v1138 = vsel %vm1085, %v1136, %v1137
      %v1139 = vrot.slane %v352, 2
      %v1140 = vsel %vm1085, %v1137, %v1139
      %v1141 = vrot.slane %v353, 2
      %v1142 = vrot.slane %v354, 2
      %v1143 = vsel %vm1085, %v1141, %v1142
      %v1144 = vrot.slane %v355, 2
      %v1145 = vsel %vm1085, %v1142, %v1144
      %v1146 = vrot.slane %v356, 2
      %v1147 = vrot.slane %v357, 2
      %v1148 = vsel %vm1085, %v1146, %v1147
      %v1149 = vrot.slane %v358, 2
      %v1150 = vsel %vm1085, %v1147, %v1149
      %v1151 = vrot.slane %v359, 2
      %v1152 = vrot.slane %v360, 2
      %v1153 = vsel %vm1085, %v1151, %v1152
      %v1154 = vrot.slane %v361, 2
      %v1155 = vsel %vm1085, %v1152, %v1154
      %v1156 = vrot.slane %v362, 2
      %v1157 = vrot.slane %v363, 2
      %v1158 = vsel %vm1085, %v1156, %v1157
      %v1159 = vrot.slane %v364, 2
      %v1160 = vsel %vm1085, %v1157, %v1159
      %v1161 = vrot.slane %v365, 2
      %v1162 = vrot.slane %v366, 2
      %v1163 = vsel %vm1085, %v1161, %v1162
      %v1164 = vrot.slane %v367, 2
      %v1165 = vsel %vm1085, %v1162, %v1164
      %s1166 = scalar_lea.vmem %s2, 16
      %v1167 = vld [vmem:[%s1166] sm:$0xff]
      %v1168 = vsel %vm506, %v1088, 0
      %v1170 = vsel %vm506, %v1090, 0
      %v1172 = vsel %vm506, %v1093, 0
      %v1174 = vsel %vm506, %v1095, 0
      %v1176 = vsel %vm506, %v1098, 0
      %v1178 = vsel %vm506, %v1100, 0
      %v1180 = vsel %vm506, %v1103, 0
      %v1182 = vsel %vm506, %v1105, 0
      %v1184 = vsel %vm506, %v1108, 0
      %v1186 = vsel %vm506, %v1110, 0
      %v1188 = vsel %vm506, %v1113, 0
      %v1190 = vsel %vm506, %v1115, 0
      %v1192 = vsel %vm506, %v1118, 0
      %v1194 = vsel %vm506, %v1120, 0
      %v1196 = vsel %vm506, %v1123, 0
      %v1198 = vsel %vm506, %v1125, 0
      %v1200 = vsel %vm506, %v1128, 0
      %v1202 = vsel %vm506, %v1130, 0
      %v1204 = vsel %vm506, %v1133, 0
      %v1206 = vsel %vm506, %v1135, 0
      %v1208 = vsel %vm506, %v1138, 0
      %v1210 = vsel %vm506, %v1140, 0
      %v1212 = vsel %vm506, %v1143, 0
      %v1214 = vsel %vm506, %v1145, 0
      %v1216 = vsel %vm506, %v1148, 0
      %v1218 = vsel %vm506, %v1150, 0
      %v1220 = vsel %vm506, %v1153, 0
      %v1222 = vsel %vm506, %v1155, 0
      %v1224 = vsel %vm506, %v1158, 0
      %v1226 = vsel %vm506, %v1160, 0
      %v1228 = vsel %vm506, %v1163, 0
      %v1230 = vsel %vm506, %v1165, 0
      %1232 = vmatprep.subr.mxu0 0.0
      %1233 = vmatpush1.msra.mxu0 %v1167
      %1234 = vmatprep.subr.mxu0 0.0
      %1235 = vmatpush1.msra.mxu0 0.0
      %1236 = vmatprep.subr.mxu0 0.0
      %1237 = vmatpush1.msra.mxu0 0.0
      %1238 = vmatprep.subr.mxu0 0.0
      %1239 = vmatpush1.msra.mxu0 0.0
      %1240 = vmatprep.subr.mxu0 0.0
      %1241 = vmatpush1.msra.mxu0 0.0
      %1242 = vmatprep.subr.mxu0 0.0
      %1243 = vmatpush1.msra.mxu0 0.0
      %1244 = vmatprep.subr.mxu0 0.0
      %1245 = vmatpush1.msra.mxu0 0.0
      %1246 = vmatprep.subr.mxu0 0.0
      %1247 = vmatpush1.msra.mxu0 0.0
      %1248 = vmatprep.subr.mxu0 0.0
      %1249 = vmatpush1.msra.mxu0 0.0
      %1250 = vmatprep.subr.mxu0 0.0
      %1251 = vmatpush1.msra.mxu0 0.0
      %1252 = vmatprep.subr.mxu0 0.0
      %1253 = vmatpush1.msra.mxu0 0.0
      %1254 = vmatprep.subr.mxu0 0.0
      %1255 = vmatpush1.msra.mxu0 0.0
      %1256 = vmatprep.subr.mxu0 0.0
      %1257 = vmatpush1.msra.mxu0 0.0
      %1258 = vmatprep.subr.mxu0 0.0
      %1259 = vmatpush1.msra.mxu0 0.0
      %1260 = vmatprep.subr.mxu0 0.0
      %1261 = vmatpush1.msra.mxu0 0.0
      %1262 = vmatprep.subr.mxu0 0.0
      %1263 = vmatpush1.msra.mxu0 0.0
      %1264 = vmatprep.subr.mxu0 0.0
      %1265 = vmatpush1.msra.mxu0 0.0
      %1266 = vmatprep.subr.mxu0 0.0
      %1267 = vmatpush1.msra.mxu0 0.0
      %1268 = vmatprep.subr.mxu0 0.0
      %1269 = vmatpush1.msra.mxu0 0.0
      %1270 = vmatprep.subr.mxu0 0.0
      %1271 = vmatpush1.msra.mxu0 0.0
      %1272 = vmatprep.subr.mxu0 0.0
      %1273 = vmatpush1.msra.mxu0 0.0
      %1274 = vmatprep.subr.mxu0 0.0
      %1275 = vmatpush1.msra.mxu0 0.0
      %1276 = vmatprep.subr.mxu0 0.0
      %1277 = vmatpush1.msra.mxu0 0.0
      %1278 = vmatprep.subr.mxu0 0.0
      %1279 = vmatpush1.msra.mxu0 0.0
      %1280 = vmatprep.subr.mxu0 0.0
      %1281 = vmatpush1.msra.mxu0 0.0
      %1282 = vmatprep.subr.mxu0 0.0
      %1283 = vmatpush1.msra.mxu0 0.0
      %1284 = vmatprep.subr.mxu0 0.0
      %1285 = vmatpush1.msra.mxu0 0.0
      %1286 = vmatprep.subr.mxu0 0.0
      %1287 = vmatpush1.msra.mxu0 0.0
      %1288 = vmatprep.subr.mxu0 0.0
      %1289 = vmatpush1.msra.mxu0 0.0
      %1290 = vmatprep.subr.mxu0 0.0
      %1291 = vmatpush1.msra.mxu0 0.0
      %1292 = vmatprep.subr.mxu0 0.0
      %1293 = vmatpush1.msra.mxu0 0.0
      %1294 = vmatprep.subr.mxu0 0.0
      %1295 = vmatpush1.msra.mxu0 0.0
      %1296 = vmatprep.mubr.f32.mxu0 0.0
      %1297 = vmatmul.mubr.f32.gmra.mrb[0].mxu0 %v1168
      %v1298 = vpop.f32.mrb[0].mxu0
      %v1299 = vadd.f32 0.0, %v1298
      %v1300 = vpop.f32.mrb[0].mxu0
      %1301 = vmatprep.mubr.f32.mxu0 0.0
      %1302 = vmatmul.mubr.f32.gmra.mrb[0].mxu0 %v1170
      %v1303 = vpop.f32.mrb[0].mxu0
      %v1304 = vadd.f32 0.0, %v1303
      %v1305 = vpop.f32.mrb[0].mxu0
      %1306 = vmatprep.mubr.f32.mxu0 0.0
      %1307 = vmatmul.mubr.f32.gmra.mrb[0].mxu0 %v1172
      %v1308 = vpop.f32.mrb[0].mxu0
      %v1309 = vadd.f32 0.0, %v1308
      %v1310 = vpop.f32.mrb[0].mxu0
      %1311 = vmatprep.mubr.f32.mxu0 0.0
      %1312 = vmatmul.mubr.f32.gmra.mrb[0].mxu0 %v1174
      %v1313 = vpop.f32.mrb[0].mxu0
      %v1314 = vadd.f32 0.0, %v1313
      %v1315 = vpop.f32.mrb[0].mxu0
      %1316 = vmatprep.mubr.f32.mxu0 0.0
      %1317 = vmatmul.mubr.f32.gmra.mrb[0].mxu0 %v1176
      %v1318 = vpop.f32.mrb[0].mxu0
      %v1319 = vadd.f32 0.0, %v1318
      %v1320 = vpop.f32.mrb[0].mxu0
      %1321 = vmatprep.mubr.f32.mxu0 0.0
      %1322 = vmatmul.mubr.f32.gmra.mrb[0].mxu0 %v1178
      %v1323 = vpop.f32.mrb[0].mxu0
      %v1324 = vadd.f32 0.0, %v1323
      %v1325 = vpop.f32.mrb[0].mxu0
      %1326 = vmatprep.mubr.f32.mxu0 0.0
      %1327 = vmatmul.mubr.f32.gmra.mrb[0].mxu0 %v1180
      %v1328 = vpop.f32.mrb[0].mxu0
      %v1329 = vadd.f32 0.0, %v1328
      %v1330 = vpop.f32.mrb[0].mxu0
      %1331 = vmatprep.mubr.f32.mxu0 0.0
      %1332 = vmatmul.mubr.f32.gmra.mrb[0].mxu0 %v1182
      %v1333 = vpop.f32.mrb[0].mxu0
      %v1334 = vadd.f32 0.0, %v1333
      %v1335 = vpop.f32.mrb[0].mxu0
      %1336 = vmatprep.mubr.f32.mxu0 0.0
      %1337 = vmatmul.mubr.f32.gmra.mrb[0].mxu0 %v1184
      %v1338 = vpop.f32.mrb[0].mxu0
      %v1339 = vadd.f32 0.0, %v1338
      %v1340 = vpop.f32.mrb[0].mxu0
      %1341 = vmatprep.mubr.f32.mxu0 0.0
      %1342 = vmatmul.mubr.f32.gmra.mrb[0].mxu0 %v1186
      %v1343 = vpop.f32.mrb[0].mxu0
      %v1344 = vadd.f32 0.0, %v1343
      %v1345 = vpop.f32.mrb[0].mxu0
      %1346 = vmatprep.mubr.f32.mxu0 0.0
      %1347 = vmatmul.mubr.f32.gmra.mrb[0].mxu0 %v1188
      %v1348 = vpop.f32.mrb[0].mxu0
      %v1349 = vadd.f32 0.0, %v1348
      %v1350 = vpop.f32.mrb[0].mxu0
      %1351 = vmatprep.mubr.f32.mxu0 0.0
      %1352 = vmatmul.mubr.f32.gmra.mrb[0].mxu0 %v1190
      %v1353 = vpop.f32.mrb[0].mxu0
      %v1354 = vadd.f32 0.0, %v1353
      %v1355 = vpop.f32.mrb[0].mxu0
      %1356 = vmatprep.mubr.f32.mxu0 0.0
      %1357 = vmatmul.mubr.f32.gmra.mrb[0].mxu0 %v1192
      %v1358 = vpop.f32.mrb[0].mxu0
      %v1359 = vadd.f32 0.0, %v1358
      %v1360 = vpop.f32.mrb[0].mxu0
      %1361 = vmatprep.mubr.f32.mxu0 0.0
      %1362 = vmatmul.mubr.f32.gmra.mrb[0].mxu0 %v1194
      %v1363 = vpop.f32.mrb[0].mxu0
      %v1364 = vadd.f32 0.0, %v1363
      %v1365 = vpop.f32.mrb[0].mxu0
      %1366 = vmatprep.mubr.f32.mxu0 0.0
      %1367 = vmatmul.mubr.f32.gmra.mrb[0].mxu0 %v1196
      %v1368 = vpop.f32.mrb[0].mxu0
      %v1369 = vadd.f32 0.0, %v1368
      %v1370 = vpop.f32.mrb[0].mxu0
      %1371 = vmatprep.mubr.f32.mxu0 0.0
      %1372 = vmatmul.mubr.f32.gmra.mrb[0].mxu0 %v1198
      %v1373 = vpop.f32.mrb[0].mxu0
      %v1374 = vadd.f32 0.0, %v1373
      %v1375 = vpop.f32.mrb[0].mxu0
      %1376 = vmatprep.mubr.f32.mxu0 0.0
      %1377 = vmatmul.mubr.f32.gmra.mrb[0].mxu0 %v1200
      %v1378 = vpop.f32.mrb[0].mxu0
      %v1379 = vadd.f32 0.0, %v1378
      %v1380 = vpop.f32.mrb[0].mxu0
      %1381 = vmatprep.mubr.f32.mxu0 0.0
      %1382 = vmatmul.mubr.f32.gmra.mrb[0].mxu0 %v1202
      %v1383 = vpop.f32.mrb[0].mxu0
      %v1384 = vadd.f32 0.0, %v1383
      %v1385 = vpop.f32.mrb[0].mxu0
      %1386 = vmatprep.mubr.f32.mxu0 0.0
      %1387 = vmatmul.mubr.f32.gmra.mrb[0].mxu0 %v1204
      %v1388 = vpop.f32.mrb[0].mxu0
      %v1389 = vadd.f32 0.0, %v1388
      %v1390 = vpop.f32.mrb[0].mxu0
      %1391 = vmatprep.mubr.f32.mxu0 0.0
      %1392 = vmatmul.mubr.f32.gmra.mrb[0].mxu0 %v1206
      %v1393 = vpop.f32.mrb[0].mxu0
      %v1394 = vadd.f32 0.0, %v1393
      %v1395 = vpop.f32.mrb[0].mxu0
      %1396 = vmatprep.mubr.f32.mxu0 0.0
      %1397 = vmatmul.mubr.f32.gmra.mrb[0].mxu0 %v1208
      %v1398 = vpop.f32.mrb[0].mxu0
      %v1399 = vadd.f32 0.0, %v1398
      %v1400 = vpop.f32.mrb[0].mxu0
      %1401 = vmatprep.mubr.f32.mxu0 0.0
      %1402 = vmatmul.mubr.f32.gmra.mrb[0].mxu0 %v1210
      %v1403 = vpop.f32.mrb[0].mxu0
      %v1404 = vadd.f32 0.0, %v1403
      %v1405 = vpop.f32.mrb[0].mxu0
      %1406 = vmatprep.mubr.f32.mxu0 0.0
      %1407 = vmatmul.mubr.f32.gmra.mrb[0].mxu0 %v1212
      %v1408 = vpop.f32.mrb[0].mxu0
      %v1409 = vadd.f32 0.0, %v1408
      %v1410 = vpop.f32.mrb[0].mxu0
      %1411 = vmatprep.mubr.f32.mxu0 0.0
      %1412 = vmatmul.mubr.f32.gmra.mrb[0].mxu0 %v1214
      %v1413 = vpop.f32.mrb[0].mxu0
      %v1414 = vadd.f32 0.0, %v1413
      %v1415 = vpop.f32.mrb[0].mxu0
      %1416 = vmatprep.mubr.f32.mxu0 0.0
      %1417 = vmatmul.mubr.f32.gmra.mrb[0].mxu0 %v1216
      %v1418 = vpop.f32.mrb[0].mxu0
      %v1419 = vadd.f32 0.0, %v1418
      %v1420 = vpop.f32.mrb[0].mxu0
      %1421 = vmatprep.mubr.f32.mxu0 0.0
      %1422 = vmatmul.mubr.f32.gmra.mrb[0].mxu0 %v1218
      %v1423 = vpop.f32.mrb[0].mxu0
      %v1424 = vadd.f32 0.0, %v1423
      %v1425 = vpop.f32.mrb[0].mxu0
      %1426 = vmatprep.mubr.f32.mxu0 0.0
      %1427 = vmatmul.mubr.f32.gmra.mrb[0].mxu0 %v1220
      %v1428 = vpop.f32.mrb[0].mxu0
      %v1429 = vadd.f32 0.0, %v1428
      %v1430 = vpop.f32.mrb[0].mxu0
      %1431 = vmatprep.mubr.f32.mxu0 0.0
      %1432 = vmatmul.mubr.f32.gmra.mrb[0].mxu0 %v1222
      %v1433 = vpop.f32.mrb[0].mxu0
      %v1434 = vadd.f32 0.0, %v1433
      %v1435 = vpop.f32.mrb[0].mxu0
      %1436 = vmatprep.mubr.f32.mxu0 0.0
      %1437 = vmatmul.mubr.f32.gmra.mrb[0].mxu0 %v1224
      %v1438 = vpop.f32.mrb[0].mxu0
      %v1439 = vadd.f32 0.0, %v1438
      %v1440 = vpop.f32.mrb[0].mxu0
      %1441 = vmatprep.mubr.f32.mxu0 0.0
      %1442 = vmatmul.mubr.f32.gmra.mrb[0].mxu0 %v1226
      %v1443 = vpop.f32.mrb[0].mxu0
      %v1444 = vadd.f32 0.0, %v1443
      %v1445 = vpop.f32.mrb[0].mxu0
      %1446 = vmatprep.mubr.f32.mxu0 0.0
      %1447 = vmatmul.mubr.f32.gmra.mrb[0].mxu0 %v1228
      %v1448 = vpop.f32.mrb[0].mxu0
      %v1449 = vadd.f32 0.0, %v1448
      %v1450 = vpop.f32.mrb[0].mxu0
      %1451 = vmatprep.mubr.f32.mxu0 0.0
      %1452 = vmatmul.mubr.f32.gmra.mrb[0].mxu0 %v1230
      %v1453 = vpop.f32.mrb[0].mxu0
      %v1454 = vadd.f32 0.0, %v1453
      %v1455 = vpop.f32.mrb[0].mxu0
      %1456 = vdwg.mxu0
      %v1457 = vadd.f32 %v927, %v1299
      %v1458 = vadd.f32 %v932, %v1304
      %v1459 = vadd.f32 %v937, %v1309
      %v1460 = vadd.f32 %v942, %v1314
      %v1461 = vadd.f32 %v947, %v1319
      %v1462 = vadd.f32 %v952, %v1324
      %v1463 = vadd.f32 %v957, %v1329
      %v1464 = vadd.f32 %v962, %v1334
      %v1465 = vadd.f32 %v967, %v1339
      %v1466 = vadd.f32 %v972, %v1344
      %v1467 = vadd.f32 %v977, %v1349
      %v1468 = vadd.f32 %v982, %v1354
      %v1469 = vadd.f32 %v987, %v1359
      %v1470 = vadd.f32 %v992, %v1364
      %v1471 = vadd.f32 %v997, %v1369
      %v1472 = vadd.f32 %v1002, %v1374
      %v1473 = vadd.f32 %v1007, %v1379
      %v1474 = vadd.f32 %v1012, %v1384
      %v1475 = vadd.f32 %v1017, %v1389
      %v1476 = vadd.f32 %v1022, %v1394
      %v1477 = vadd.f32 %v1027, %v1399
      %v1478 = vadd.f32 %v1032, %v1404
      %v1479 = vadd.f32 %v1037, %v1409
      %v1480 = vadd.f32 %v1042, %v1414
      %v1481 = vadd.f32 %v1047, %v1419
      %v1482 = vadd.f32 %v1052, %v1424
      %v1483 = vadd.f32 %v1057, %v1429
      %v1484 = vadd.f32 %v1062, %v1434
      %v1485 = vadd.f32 %v1067, %v1439
      %v1486 = vadd.f32 %v1072, %v1444
      %v1487 = vadd.f32 %v1077, %v1449
      %v1488 = vadd.f32 %v1082, %v1454
      %s1489 = scalar_lea.vmem %s2, 24
      %v1490 = vld [vmem:[%s1489] sm:$0xff]
      %v1492 = vsel %vm506, %v368, 0
      %v1495 = vsel %vm506, %v369, 0
      %1497 = vmatprep.subr.mxu0 0.0
      %1498 = vmatpush1.msra.mxu0 %v1490
      %1499 = vmatprep.subr.mxu0 0.0
      %1500 = vmatpush1.msra.mxu0 0.0
      %1501 = vmatprep.subr.mxu0 0.0
      %1502 = vmatpush1.msra.mxu0 0.0
      %1503 = vmatprep.subr.mxu0 0.0
      %1504 = vmatpush1.msra.mxu0 0.0
      %1505 = vmatprep.subr.mxu0 0.0
      %1506 = vmatpush1.msra.mxu0 0.0
      %1507 = vmatprep.subr.mxu0 0.0
      %1508 = vmatpush1.msra.mxu0 0.0
      %1509 = vmatprep.subr.mxu0 0.0
      %1510 = vmatpush1.msra.mxu0 0.0
      %1511 = vmatprep.subr.mxu0 0.0
      %1512 = vmatpush1.msra.mxu0 0.0
      %1513 = vmatprep.subr.mxu0 0.0
      %1514 = vmatpush1.msra.mxu0 0.0
      %1515 = vmatprep.subr.mxu0 0.0
      %1516 = vmatpush1.msra.mxu0 0.0
      %1517 = vmatprep.subr.mxu0 0.0
      %1518 = vmatpush1.msra.mxu0 0.0
      %1519 = vmatprep.subr.mxu0 0.0
      %1520 = vmatpush1.msra.mxu0 0.0
      %1521 = vmatprep.subr.mxu0 0.0
      %1522 = vmatpush1.msra.mxu0 0.0
      %1523 = vmatprep.subr.mxu0 0.0
      %1524 = vmatpush1.msra.mxu0 0.0
      %1525 = vmatprep.subr.mxu0 0.0
      %1526 = vmatpush1.msra.mxu0 0.0
      %1527 = vmatprep.subr.mxu0 0.0
      %1528 = vmatpush1.msra.mxu0 0.0
      %1529 = vmatprep.subr.mxu0 0.0
      %1530 = vmatpush1.msra.mxu0 0.0
      %1531 = vmatprep.subr.mxu0 0.0
      %1532 = vmatpush1.msra.mxu0 0.0
      %1533 = vmatprep.subr.mxu0 0.0
      %1534 = vmatpush1.msra.mxu0 0.0
      %1535 = vmatprep.subr.mxu0 0.0
      %1536 = vmatpush1.msra.mxu0 0.0
      %1537 = vmatprep.subr.mxu0 0.0
      %1538 = vmatpush1.msra.mxu0 0.0
      %1539 = vmatprep.subr.mxu0 0.0
      %1540 = vmatpush1.msra.mxu0 0.0
      %1541 = vmatprep.subr.mxu0 0.0
      %1542 = vmatpush1.msra.mxu0 0.0
      %1543 = vmatprep.subr.mxu0 0.0
      %1544 = vmatpush1.msra.mxu0 0.0
      %1545 = vmatprep.subr.mxu0 0.0
      %1546 = vmatpush1.msra.mxu0 0.0
      %1547 = vmatprep.subr.mxu0 0.0
      %1548 = vmatpush1.msra.mxu0 0.0
      %1549 = vmatprep.subr.mxu0 0.0
      %1550 = vmatpush1.msra.mxu0 0.0
      %1551 = vmatprep.subr.mxu0 0.0
      %1552 = vmatpush1.msra.mxu0 0.0
      %1553 = vmatprep.subr.mxu0 0.0
      %1554 = vmatpush1.msra.mxu0 0.0
      %1555 = vmatprep.subr.mxu0 0.0
      %1556 = vmatpush1.msra.mxu0 0.0
      %1557 = vmatprep.subr.mxu0 0.0
      %1558 = vmatpush1.msra.mxu0 0.0
      %1559 = vmatprep.subr.mxu0 0.0
      %1560 = vmatpush1.msra.mxu0 0.0
      %1561 = vmatprep.mubr.f32.mxu0 0.0
      %1562 = vmatmul.mubr.f32.gmra.mrb[0].mxu0 %v800
      %v1563 = vpop.f32.mrb[0].mxu0
      %v1564 = vadd.f32 0.0, %v1563
      %v1565 = vpop.f32.mrb[0].mxu0
      %1566 = vmatprep.mubr.f32.mxu0 0.0
      %1567 = vmatmul.mubr.f32.gmra.mrb[0].mxu0 %v802
      %v1568 = vpop.f32.mrb[0].mxu0
      %v1569 = vadd.f32 0.0, %v1568
      %v1570 = vpop.f32.mrb[0].mxu0
      %1571 = vmatprep.mubr.f32.mxu0 0.0
      %1572 = vmatmul.mubr.f32.gmra.mrb[0].mxu0 %v804
      %v1573 = vpop.f32.mrb[0].mxu0
      %v1574 = vadd.f32 0.0, %v1573
      %v1575 = vpop.f32.mrb[0].mxu0
      %1576 = vmatprep.mubr.f32.mxu0 0.0
      %1577 = vmatmul.mubr.f32.gmra.mrb[0].mxu0 %v806
      %v1578 = vpop.f32.mrb[0].mxu0
      %v1579 = vadd.f32 0.0, %v1578
      %v1580 = vpop.f32.mrb[0].mxu0
      %1581 = vmatprep.mubr.f32.mxu0 0.0
      %1582 = vmatmul.mubr.f32.gmra.mrb[0].mxu0 %v808
      %v1583 = vpop.f32.mrb[0].mxu0
      %v1584 = vadd.f32 0.0, %v1583
      %v1585 = vpop.f32.mrb[0].mxu0
      %1586 = vmatprep.mubr.f32.mxu0 0.0
      %1587 = vmatmul.mubr.f32.gmra.mrb[0].mxu0 %v810
      %v1588 = vpop.f32.mrb[0].mxu0
      %v1589 = vadd.f32 0.0, %v1588
      %v1590 = vpop.f32.mrb[0].mxu0
      %1591 = vmatprep.mubr.f32.mxu0 0.0
      %1592 = vmatmul.mubr.f32.gmra.mrb[0].mxu0 %v812
      %v1593 = vpop.f32.mrb[0].mxu0
      %v1594 = vadd.f32 0.0, %v1593
      %v1595 = vpop.f32.mrb[0].mxu0
      %1596 = vmatprep.mubr.f32.mxu0 0.0
      %1597 = vmatmul.mubr.f32.gmra.mrb[0].mxu0 %v814
      %v1598 = vpop.f32.mrb[0].mxu0
      %v1599 = vadd.f32 0.0, %v1598
      %v1600 = vpop.f32.mrb[0].mxu0
      %1601 = vmatprep.mubr.f32.mxu0 0.0
      %1602 = vmatmul.mubr.f32.gmra.mrb[0].mxu0 %v816
      %v1603 = vpop.f32.mrb[0].mxu0
      %v1604 = vadd.f32 0.0, %v1603
      %v1605 = vpop.f32.mrb[0].mxu0
      %1606 = vmatprep.mubr.f32.mxu0 0.0
      %1607 = vmatmul.mubr.f32.gmra.mrb[0].mxu0 %v818
      %v1608 = vpop.f32.mrb[0].mxu0
      %v1609 = vadd.f32 0.0, %v1608
      %v1610 = vpop.f32.mrb[0].mxu0
      %1611 = vmatprep.mubr.f32.mxu0 0.0
      %1612 = vmatmul.mubr.f32.gmra.mrb[0].mxu0 %v820
      %v1613 = vpop.f32.mrb[0].mxu0
      %v1614 = vadd.f32 0.0, %v1613
      %v1615 = vpop.f32.mrb[0].mxu0
      %1616 = vmatprep.mubr.f32.mxu0 0.0
      %1617 = vmatmul.mubr.f32.gmra.mrb[0].mxu0 %v822
      %v1618 = vpop.f32.mrb[0].mxu0
      %v1619 = vadd.f32 0.0, %v1618
      %v1620 = vpop.f32.mrb[0].mxu0
      %1621 = vmatprep.mubr.f32.mxu0 0.0
      %1622 = vmatmul.mubr.f32.gmra.mrb[0].mxu0 %v824
      %v1623 = vpop.f32.mrb[0].mxu0
      %v1624 = vadd.f32 0.0, %v1623
      %v1625 = vpop.f32.mrb[0].mxu0
      %1626 = vmatprep.mubr.f32.mxu0 0.0
      %1627 = vmatmul.mubr.f32.gmra.mrb[0].mxu0 %v826
      %v1628 = vpop.f32.mrb[0].mxu0
      %v1629 = vadd.f32 0.0, %v1628
      %v1630 = vpop.f32.mrb[0].mxu0
      %1631 = vmatprep.mubr.f32.mxu0 0.0
      %1632 = vmatmul.mubr.f32.gmra.mrb[0].mxu0 %v828
      %v1633 = vpop.f32.mrb[0].mxu0
      %v1634 = vadd.f32 0.0, %v1633
      %v1635 = vpop.f32.mrb[0].mxu0
      %1636 = vmatprep.mubr.f32.mxu0 0.0
      %1637 = vmatmul.mubr.f32.gmra.mrb[0].mxu0 %v830
      %v1638 = vpop.f32.mrb[0].mxu0
      %v1639 = vadd.f32 0.0, %v1638
      %v1640 = vpop.f32.mrb[0].mxu0
      %1641 = vmatprep.mubr.f32.mxu0 0.0
      %1642 = vmatmul.mubr.f32.gmra.mrb[0].mxu0 %v832
      %v1643 = vpop.f32.mrb[0].mxu0
      %v1644 = vadd.f32 0.0, %v1643
      %v1645 = vpop.f32.mrb[0].mxu0
      %1646 = vmatprep.mubr.f32.mxu0 0.0
      %1647 = vmatmul.mubr.f32.gmra.mrb[0].mxu0 %v834
      %v1648 = vpop.f32.mrb[0].mxu0
      %v1649 = vadd.f32 0.0, %v1648
      %v1650 = vpop.f32.mrb[0].mxu0
      %1651 = vmatprep.mubr.f32.mxu0 0.0
      %1652 = vmatmul.mubr.f32.gmra.mrb[0].mxu0 %v836
      %v1653 = vpop.f32.mrb[0].mxu0
      %v1654 = vadd.f32 0.0, %v1653
      %v1655 = vpop.f32.mrb[0].mxu0
      %1656 = vmatprep.mubr.f32.mxu0 0.0
      %1657 = vmatmul.mubr.f32.gmra.mrb[0].mxu0 %v838
      %v1658 = vpop.f32.mrb[0].mxu0
      %v1659 = vadd.f32 0.0, %v1658
      %v1660 = vpop.f32.mrb[0].mxu0
      %1661 = vmatprep.mubr.f32.mxu0 0.0
      %1662 = vmatmul.mubr.f32.gmra.mrb[0].mxu0 %v840
      %v1663 = vpop.f32.mrb[0].mxu0
      %v1664 = vadd.f32 0.0, %v1663
      %v1665 = vpop.f32.mrb[0].mxu0
      %1666 = vmatprep.mubr.f32.mxu0 0.0
      %1667 = vmatmul.mubr.f32.gmra.mrb[0].mxu0 %v842
      %v1668 = vpop.f32.mrb[0].mxu0
      %v1669 = vadd.f32 0.0, %v1668
      %v1670 = vpop.f32.mrb[0].mxu0
      %1671 = vmatprep.mubr.f32.mxu0 0.0
      %1672 = vmatmul.mubr.f32.gmra.mrb[0].mxu0 %v844
      %v1673 = vpop.f32.mrb[0].mxu0
      %v1674 = vadd.f32 0.0, %v1673
      %v1675 = vpop.f32.mrb[0].mxu0
      %1676 = vmatprep.mubr.f32.mxu0 0.0
      %1677 = vmatmul.mubr.f32.gmra.mrb[0].mxu0 %v846
      %v1678 = vpop.f32.mrb[0].mxu0
      %v1679 = vadd.f32 0.0, %v1678
      %v1680 = vpop.f32.mrb[0].mxu0
      %1681 = vmatprep.mubr.f32.mxu0 0.0
      %1682 = vmatmul.mubr.f32.gmra.mrb[0].mxu0 %v848
      %v1683 = vpop.f32.mrb[0].mxu0
      %v1684 = vadd.f32 0.0, %v1683
      %v1685 = vpop.f32.mrb[0].mxu0
      %1686 = vmatprep.mubr.f32.mxu0 0.0
      %1687 = vmatmul.mubr.f32.gmra.mrb[0].mxu0 %v850
      %v1688 = vpop.f32.mrb[0].mxu0
      %v1689 = vadd.f32 0.0, %v1688
      %v1690 = vpop.f32.mrb[0].mxu0
      %1691 = vmatprep.mubr.f32.mxu0 0.0
      %1692 = vmatmul.mubr.f32.gmra.mrb[0].mxu0 %v852
      %v1693 = vpop.f32.mrb[0].mxu0
      %v1694 = vadd.f32 0.0, %v1693
      %v1695 = vpop.f32.mrb[0].mxu0
      %1696 = vmatprep.mubr.f32.mxu0 0.0
      %1697 = vmatmul.mubr.f32.gmra.mrb[0].mxu0 %v854
      %v1698 = vpop.f32.mrb[0].mxu0
      %v1699 = vadd.f32 0.0, %v1698
      %v1700 = vpop.f32.mrb[0].mxu0
      %1701 = vmatprep.mubr.f32.mxu0 0.0
      %1702 = vmatmul.mubr.f32.gmra.mrb[0].mxu0 %v856
      %v1703 = vpop.f32.mrb[0].mxu0
      %v1704 = vadd.f32 0.0, %v1703
      %v1705 = vpop.f32.mrb[0].mxu0
      %1706 = vmatprep.mubr.f32.mxu0 0.0
      %1707 = vmatmul.mubr.f32.gmra.mrb[0].mxu0 %v858
      %v1708 = vpop.f32.mrb[0].mxu0
      %v1709 = vadd.f32 0.0, %v1708
      %v1710 = vpop.f32.mrb[0].mxu0
      %1711 = vmatprep.mubr.f32.mxu0 0.0
      %1712 = vmatmul.mubr.f32.gmra.mrb[0].mxu0 %v1492
      %v1713 = vpop.f32.mrb[0].mxu0
      %v1714 = vadd.f32 0.0, %v1713
      %v1715 = vpop.f32.mrb[0].mxu0
      %1716 = vmatprep.mubr.f32.mxu0 0.0
      %1717 = vmatmul.mubr.f32.gmra.mrb[0].mxu0 %v1495
      %v1718 = vpop.f32.mrb[0].mxu0
      %v1719 = vadd.f32 0.0, %v1718
      %v1720 = vpop.f32.mrb[0].mxu0
      %1721 = vdwg.mxu0
      %v1722 = vadd.f32 %v1457, %v1564
      %v1723 = vadd.f32 %v1458, %v1569
      %v1724 = vadd.f32 %v1459, %v1574
      %v1725 = vadd.f32 %v1460, %v1579
      %v1726 = vadd.f32 %v1461, %v1584
      %v1727 = vadd.f32 %v1462, %v1589
      %v1728 = vadd.f32 %v1463, %v1594
      %v1729 = vadd.f32 %v1464, %v1599
      %v1730 = vadd.f32 %v1465, %v1604
      %v1731 = vadd.f32 %v1466, %v1609
      %v1732 = vadd.f32 %v1467, %v1614
      %v1733 = vadd.f32 %v1468, %v1619
      %v1734 = vadd.f32 %v1469, %v1624
      %v1735 = vadd.f32 %v1470, %v1629
      %v1736 = vadd.f32 %v1471, %v1634
      %v1737 = vadd.f32 %v1472, %v1639
      %v1738 = vadd.f32 %v1473, %v1644
      %v1739 = vadd.f32 %v1474, %v1649
      %v1740 = vadd.f32 %v1475, %v1654
      %v1741 = vadd.f32 %v1476, %v1659
      %v1742 = vadd.f32 %v1477, %v1664
      %v1743 = vadd.f32 %v1478, %v1669
      %v1744 = vadd.f32 %v1479, %v1674
      %v1745 = vadd.f32 %v1480, %v1679
      %v1746 = vadd.f32 %v1481, %v1684
      %v1747 = vadd.f32 %v1482, %v1689
      %v1748 = vadd.f32 %v1483, %v1694
      %v1749 = vadd.f32 %v1484, %v1699
      %v1750 = vadd.f32 %v1485, %v1704
      %v1751 = vadd.f32 %v1486, %v1709
      %v1752 = vadd.f32 %v1487, %v1714
      %v1753 = vadd.f32 %v1488, %v1719
      %v1755 = vrot.slane %v368, 1
      %v1756 = vrot.slane %v369, 1
      %v1757 = vsel %vm423, %v1755, %v1756
      %v1758 = vrot.slane %v370, 1
      %v1759 = vsel %vm423, %v1756, %v1758
      %s1760 = scalar_lea.vmem %s2, 32
      %v1761 = vld [vmem:[%s1760] sm:$0xff]
      %v1762 = vsel %vm506, %v1757, 0
      %v1764 = vsel %vm506, %v1759, 0
      %1766 = vmatprep.subr.mxu0 0.0
      %1767 = vmatpush1.msra.mxu0 %v1761
      %1768 = vmatprep.subr.mxu0 0.0
      %1769 = vmatpush1.msra.mxu0 0.0
      %1770 = vmatprep.subr.mxu0 0.0
      %1771 = vmatpush1.msra.mxu0 0.0
      %1772 = vmatprep.subr.mxu0 0.0
      %1773 = vmatpush1.msra.mxu0 0.0
      %1774 = vmatprep.subr.mxu0 0.0
      %1775 = vmatpush1.msra.mxu0 0.0
      %1776 = vmatprep.subr.mxu0 0.0
      %1777 = vmatpush1.msra.mxu0 0.0
      %1778 = vmatprep.subr.mxu0 0.0
      %1779 = vmatpush1.msra.mxu0 0.0
      %1780 = vmatprep.subr.mxu0 0.0
      %1781 = vmatpush1.msra.mxu0 0.0
      %1782 = vmatprep.subr.mxu0 0.0
      %1783 = vmatpush1.msra.mxu0 0.0
      %1784 = vmatprep.subr.mxu0 0.0
      %1785 = vmatpush1.msra.mxu0 0.0
      %1786 = vmatprep.subr.mxu0 0.0
      %1787 = vmatpush1.msra.mxu0 0.0
      %1788 = vmatprep.subr.mxu0 0.0
      %1789 = vmatpush1.msra.mxu0 0.0
      %1790 = vmatprep.subr.mxu0 0.0
      %1791 = vmatpush1.msra.mxu0 0.0
      %1792 = vmatprep.subr.mxu0 0.0
      %1793 = vmatpush1.msra.mxu0 0.0
      %1794 = vmatprep.subr.mxu0 0.0
      %1795 = vmatpush1.msra.mxu0 0.0
      %1796 = vmatprep.subr.mxu0 0.0
      %1797 = vmatpush1.msra.mxu0 0.0
      %1798 = vmatprep.subr.mxu0 0.0
      %1799 = vmatpush1.msra.mxu0 0.0
      %1800 = vmatprep.subr.mxu0 0.0
      %1801 = vmatpush1.msra.mxu0 0.0
      %1802 = vmatprep.subr.mxu0 0.0
      %1803 = vmatpush1.msra.mxu0 0.0
      %1804 = vmatprep.subr.mxu0 0.0
      %1805 = vmatpush1.msra.mxu0 0.0
      %1806 = vmatprep.subr.mxu0 0.0
      %1807 = vmatpush1.msra.mxu0 0.0
      %1808 = vmatprep.subr.mxu0 0.0
      %1809 = vmatpush1.msra.mxu0 0.0
      %1810 = vmatprep.subr.mxu0 0.0
      %1811 = vmatpush1.msra.mxu0 0.0
      %1812 = vmatprep.subr.mxu0 0.0
      %1813 = vmatpush1.msra.mxu0 0.0
      %1814 = vmatprep.subr.mxu0 0.0
      %1815 = vmatpush1.msra.mxu0 0.0
      %1816 = vmatprep.subr.mxu0 0.0
      %1817 = vmatpush1.msra.mxu0 0.0
      %1818 = vmatprep.subr.mxu0 0.0
      %1819 = vmatpush1.msra.mxu0 0.0
      %1820 = vmatprep.subr.mxu0 0.0
      %1821 = vmatpush1.msra.mxu0 0.0
      %1822 = vmatprep.subr.mxu0 0.0
      %1823 = vmatpush1.msra.mxu0 0.0
      %1824 = vmatprep.subr.mxu0 0.0
      %1825 = vmatpush1.msra.mxu0 0.0
      %1826 = vmatprep.subr.mxu0 0.0
      %1827 = vmatpush1.msra.mxu0 0.0
      %1828 = vmatprep.subr.mxu0 0.0
      %1829 = vmatpush1.msra.mxu0 0.0
      %1830 = vmatprep.mubr.f32.mxu0 0.0
      %1831 = vmatmul.mubr.f32.gmra.mrb[0].mxu0 %v511
      %v1832 = vpop.f32.mrb[0].mxu0
      %v1833 = vadd.f32 0.0, %v1832
      %v1834 = vpop.f32.mrb[0].mxu0
      %1835 = vmatprep.mubr.f32.mxu0 0.0
      %1836 = vmatmul.mubr.f32.gmra.mrb[0].mxu0 %v513
      %v1837 = vpop.f32.mrb[0].mxu0
      %v1838 = vadd.f32 0.0, %v1837
      %v1839 = vpop.f32.mrb[0].mxu0
      %1840 = vmatprep.mubr.f32.mxu0 0.0
      %1841 = vmatmul.mubr.f32.gmra.mrb[0].mxu0 %v515
      %v1842 = vpop.f32.mrb[0].mxu0
      %v1843 = vadd.f32 0.0, %v1842
      %v1844 = vpop.f32.mrb[0].mxu0
      %1845 = vmatprep.mubr.f32.mxu0 0.0
      %1846 = vmatmul.mubr.f32.gmra.mrb[0].mxu0 %v517
      %v1847 = vpop.f32.mrb[0].mxu0
      %v1848 = vadd.f32 0.0, %v1847
      %v1849 = vpop.f32.mrb[0].mxu0
      %1850 = vmatprep.mubr.f32.mxu0 0.0
      %1851 = vmatmul.mubr.f32.gmra.mrb[0].mxu0 %v519
      %v1852 = vpop.f32.mrb[0].mxu0
      %v1853 = vadd.f32 0.0, %v1852
      %v1854 = vpop.f32.mrb[0].mxu0
      %1855 = vmatprep.mubr.f32.mxu0 0.0
      %1856 = vmatmul.mubr.f32.gmra.mrb[0].mxu0 %v521
      %v1857 = vpop.f32.mrb[0].mxu0
      %v1858 = vadd.f32 0.0, %v1857
      %v1859 = vpop.f32.mrb[0].mxu0
      %1860 = vmatprep.mubr.f32.mxu0 0.0
      %1861 = vmatmul.mubr.f32.gmra.mrb[0].mxu0 %v523
      %v1862 = vpop.f32.mrb[0].mxu0
      %v1863 = vadd.f32 0.0, %v1862
      %v1864 = vpop.f32.mrb[0].mxu0
      %1865 = vmatprep.mubr.f32.mxu0 0.0
      %1866 = vmatmul.mubr.f32.gmra.mrb[0].mxu0 %v525
      %v1867 = vpop.f32.mrb[0].mxu0
      %v1868 = vadd.f32 0.0, %v1867
      %v1869 = vpop.f32.mrb[0].mxu0
      %1870 = vmatprep.mubr.f32.mxu0 0.0
      %1871 = vmatmul.mubr.f32.gmra.mrb[0].mxu0 %v527
      %v1872 = vpop.f32.mrb[0].mxu0
      %v1873 = vadd.f32 0.0, %v1872
      %v1874 = vpop.f32.mrb[0].mxu0
      %1875 = vmatprep.mubr.f32.mxu0 0.0
      %1876 = vmatmul.mubr.f32.gmra.mrb[0].mxu0 %v529
      %v1877 = vpop.f32.mrb[0].mxu0
      %v1878 = vadd.f32 0.0, %v1877
      %v1879 = vpop.f32.mrb[0].mxu0
      %1880 = vmatprep.mubr.f32.mxu0 0.0
      %1881 = vmatmul.mubr.f32.gmra.mrb[0].mxu0 %v531
      %v1882 = vpop.f32.mrb[0].mxu0
      %v1883 = vadd.f32 0.0, %v1882
      %v1884 = vpop.f32.mrb[0].mxu0
      %1885 = vmatprep.mubr.f32.mxu0 0.0
      %1886 = vmatmul.mubr.f32.gmra.mrb[0].mxu0 %v533
      %v1887 = vpop.f32.mrb[0].mxu0
      %v1888 = vadd.f32 0.0, %v1887
      %v1889 = vpop.f32.mrb[0].mxu0
      %1890 = vmatprep.mubr.f32.mxu0 0.0
      %1891 = vmatmul.mubr.f32.gmra.mrb[0].mxu0 %v535
      %v1892 = vpop.f32.mrb[0].mxu0
      %v1893 = vadd.f32 0.0, %v1892
      %v1894 = vpop.f32.mrb[0].mxu0
      %1895 = vmatprep.mubr.f32.mxu0 0.0
      %1896 = vmatmul.mubr.f32.gmra.mrb[0].mxu0 %v537
      %v1897 = vpop.f32.mrb[0].mxu0
      %v1898 = vadd.f32 0.0, %v1897
      %v1899 = vpop.f32.mrb[0].mxu0
      %1900 = vmatprep.mubr.f32.mxu0 0.0
      %1901 = vmatmul.mubr.f32.gmra.mrb[0].mxu0 %v539
      %v1902 = vpop.f32.mrb[0].mxu0
      %v1903 = vadd.f32 0.0, %v1902
      %v1904 = vpop.f32.mrb[0].mxu0
      %1905 = vmatprep.mubr.f32.mxu0 0.0
      %1906 = vmatmul.mubr.f32.gmra.mrb[0].mxu0 %v541
      %v1907 = vpop.f32.mrb[0].mxu0
      %v1908 = vadd.f32 0.0, %v1907
      %v1909 = vpop.f32.mrb[0].mxu0
      %1910 = vmatprep.mubr.f32.mxu0 0.0
      %1911 = vmatmul.mubr.f32.gmra.mrb[0].mxu0 %v543
      %v1912 = vpop.f32.mrb[0].mxu0
      %v1913 = vadd.f32 0.0, %v1912
      %v1914 = vpop.f32.mrb[0].mxu0
      %1915 = vmatprep.mubr.f32.mxu0 0.0
      %1916 = vmatmul.mubr.f32.gmra.mrb[0].mxu0 %v545
      %v1917 = vpop.f32.mrb[0].mxu0
      %v1918 = vadd.f32 0.0, %v1917
      %v1919 = vpop.f32.mrb[0].mxu0
      %1920 = vmatprep.mubr.f32.mxu0 0.0
      %1921 = vmatmul.mubr.f32.gmra.mrb[0].mxu0 %v547
      %v1922 = vpop.f32.mrb[0].mxu0
      %v1923 = vadd.f32 0.0, %v1922
      %v1924 = vpop.f32.mrb[0].mxu0
      %1925 = vmatprep.mubr.f32.mxu0 0.0
      %1926 = vmatmul.mubr.f32.gmra.mrb[0].mxu0 %v549
      %v1927 = vpop.f32.mrb[0].mxu0
      %v1928 = vadd.f32 0.0, %v1927
      %v1929 = vpop.f32.mrb[0].mxu0
      %1930 = vmatprep.mubr.f32.mxu0 0.0
      %1931 = vmatmul.mubr.f32.gmra.mrb[0].mxu0 %v551
      %v1932 = vpop.f32.mrb[0].mxu0
      %v1933 = vadd.f32 0.0, %v1932
      %v1934 = vpop.f32.mrb[0].mxu0
      %1935 = vmatprep.mubr.f32.mxu0 0.0
      %1936 = vmatmul.mubr.f32.gmra.mrb[0].mxu0 %v553
      %v1937 = vpop.f32.mrb[0].mxu0
      %v1938 = vadd.f32 0.0, %v1937
      %v1939 = vpop.f32.mrb[0].mxu0
      %1940 = vmatprep.mubr.f32.mxu0 0.0
      %1941 = vmatmul.mubr.f32.gmra.mrb[0].mxu0 %v555
      %v1942 = vpop.f32.mrb[0].mxu0
      %v1943 = vadd.f32 0.0, %v1942
      %v1944 = vpop.f32.mrb[0].mxu0
      %1945 = vmatprep.mubr.f32.mxu0 0.0
      %1946 = vmatmul.mubr.f32.gmra.mrb[0].mxu0 %v557
      %v1947 = vpop.f32.mrb[0].mxu0
      %v1948 = vadd.f32 0.0, %v1947
      %v1949 = vpop.f32.mrb[0].mxu0
      %1950 = vmatprep.mubr.f32.mxu0 0.0
      %1951 = vmatmul.mubr.f32.gmra.mrb[0].mxu0 %v559
      %v1952 = vpop.f32.mrb[0].mxu0
      %v1953 = vadd.f32 0.0, %v1952
      %v1954 = vpop.f32.mrb[0].mxu0
      %1955 = vmatprep.mubr.f32.mxu0 0.0
      %1956 = vmatmul.mubr.f32.gmra.mrb[0].mxu0 %v561
      %v1957 = vpop.f32.mrb[0].mxu0
      %v1958 = vadd.f32 0.0, %v1957
      %v1959 = vpop.f32.mrb[0].mxu0
      %1960 = vmatprep.mubr.f32.mxu0 0.0
      %1961 = vmatmul.mubr.f32.gmra.mrb[0].mxu0 %v563
      %v1962 = vpop.f32.mrb[0].mxu0
      %v1963 = vadd.f32 0.0, %v1962
      %v1964 = vpop.f32.mrb[0].mxu0
      %1965 = vmatprep.mubr.f32.mxu0 0.0
      %1966 = vmatmul.mubr.f32.gmra.mrb[0].mxu0 %v565
      %v1967 = vpop.f32.mrb[0].mxu0
      %v1968 = vadd.f32 0.0, %v1967
      %v1969 = vpop.f32.mrb[0].mxu0
      %1970 = vmatprep.mubr.f32.mxu0 0.0
      %1971 = vmatmul.mubr.f32.gmra.mrb[0].mxu0 %v567
      %v1972 = vpop.f32.mrb[0].mxu0
      %v1973 = vadd.f32 0.0, %v1972
      %v1974 = vpop.f32.mrb[0].mxu0
      %1975 = vmatprep.mubr.f32.mxu0 0.0
      %1976 = vmatmul.mubr.f32.gmra.mrb[0].mxu0 %v569
      %v1977 = vpop.f32.mrb[0].mxu0
      %v1978 = vadd.f32 0.0, %v1977
      %v1979 = vpop.f32.mrb[0].mxu0
      %1980 = vmatprep.mubr.f32.mxu0 0.0
      %1981 = vmatmul.mubr.f32.gmra.mrb[0].mxu0 %v1762
      %v1982 = vpop.f32.mrb[0].mxu0
      %v1983 = vadd.f32 0.0, %v1982
      %v1984 = vpop.f32.mrb[0].mxu0
      %1985 = vmatprep.mubr.f32.mxu0 0.0
      %1986 = vmatmul.mubr.f32.gmra.mrb[0].mxu0 %v1764
      %v1987 = vpop.f32.mrb[0].mxu0
      %v1988 = vadd.f32 0.0, %v1987
      %v1989 = vpop.f32.mrb[0].mxu0
      %1990 = vdwg.mxu0
      %v1991 = vadd.f32 %v1722, %v1833
      %v1992 = vadd.f32 %v1723, %v1838
      %v1993 = vadd.f32 %v1724, %v1843
      %v1994 = vadd.f32 %v1725, %v1848
      %v1995 = vadd.f32 %v1726, %v1853
      %v1996 = vadd.f32 %v1727, %v1858
      %v1997 = vadd.f32 %v1728, %v1863
      %v1998 = vadd.f32 %v1729, %v1868
      %v1999 = vadd.f32 %v1730, %v1873
      %v2000 = vadd.f32 %v1731, %v1878
      %v2001 = vadd.f32 %v1732, %v1883
      %v2002 = vadd.f32 %v1733, %v1888
      %v2003 = vadd.f32 %v1734, %v1893
      %v2004 = vadd.f32 %v1735, %v1898
      %v2005 = vadd.f32 %v1736, %v1903
      %v2006 = vadd.f32 %v1737, %v1908
      %v2007 = vadd.f32 %v1738, %v1913
      %v2008 = vadd.f32 %v1739, %v1918
      %v2009 = vadd.f32 %v1740, %v1923
      %v2010 = vadd.f32 %v1741, %v1928
      %v2011 = vadd.f32 %v1742, %v1933
      %v2012 = vadd.f32 %v1743, %v1938
      %v2013 = vadd.f32 %v1744, %v1943
      %v2014 = vadd.f32 %v1745, %v1948
      %v2015 = vadd.f32 %v1746, %v1953
      %v2016 = vadd.f32 %v1747, %v1958
      %v2017 = vadd.f32 %v1748, %v1963
      %v2018 = vadd.f32 %v1749, %v1968
      %v2019 = vadd.f32 %v1750, %v1973
      %v2020 = vadd.f32 %v1751, %v1978
      %v2021 = vadd.f32 %v1752, %v1983
      %v2022 = vadd.f32 %v1753, %v1988
      %v2023 = vrot.slane %v368, 2
      %v2024 = vrot.slane %v369, 2
      %v2025 = vsel %vm1085, %v2023, %v2024
      %v2026 = vrot.slane %v370, 2
      %v2027 = vsel %vm1085, %v2024, %v2026
      %s2028 = scalar_lea.vmem %s2, 40
      %v2029 = vld [vmem:[%s2028] sm:$0xff]
      %v2030 = vsel %vm506, %v2025, 0
      %v2032 = vsel %vm506, %v2027, 0
      %2034 = vmatprep.subr.mxu0 0.0
      %2035 = vmatpush1.msra.mxu0 %v2029
      %2036 = vmatprep.subr.mxu0 0.0
      %2037 = vmatpush1.msra.mxu0 0.0
      %2038 = vmatprep.subr.mxu0 0.0
      %2039 = vmatpush1.msra.mxu0 0.0
      %2040 = vmatprep.subr.mxu0 0.0
      %2041 = vmatpush1.msra.mxu0 0.0
      %2042 = vmatprep.subr.mxu0 0.0
      %2043 = vmatpush1.msra.mxu0 0.0
      %2044 = vmatprep.subr.mxu0 0.0
      %2045 = vmatpush1.msra.mxu0 0.0
      %2046 = vmatprep.subr.mxu0 0.0
      %2047 = vmatpush1.msra.mxu0 0.0
      %2048 = vmatprep.subr.mxu0 0.0
      %2049 = vmatpush1.msra.mxu0 0.0
      %2050 = vmatprep.subr.mxu0 0.0
      %2051 = vmatpush1.msra.mxu0 0.0
      %2052 = vmatprep.subr.mxu0 0.0
      %2053 = vmatpush1.msra.mxu0 0.0
      %2054 = vmatprep.subr.mxu0 0.0
      %2055 = vmatpush1.msra.mxu0 0.0
      %2056 = vmatprep.subr.mxu0 0.0
      %2057 = vmatpush1.msra.mxu0 0.0
      %2058 = vmatprep.subr.mxu0 0.0
      %2059 = vmatpush1.msra.mxu0 0.0
      %2060 = vmatprep.subr.mxu0 0.0
      %2061 = vmatpush1.msra.mxu0 0.0
      %2062 = vmatprep.subr.mxu0 0.0
      %2063 = vmatpush1.msra.mxu0 0.0
      %2064 = vmatprep.subr.mxu0 0.0
      %2065 = vmatpush1.msra.mxu0 0.0
      %2066 = vmatprep.subr.mxu0 0.0
      %2067 = vmatpush1.msra.mxu0 0.0
      %2068 = vmatprep.subr.mxu0 0.0
      %2069 = vmatpush1.msra.mxu0 0.0
      %2070 = vmatprep.subr.mxu0 0.0
      %2071 = vmatpush1.msra.mxu0 0.0
      %2072 = vmatprep.subr.mxu0 0.0
      %2073 = vmatpush1.msra.mxu0 0.0
      %2074 = vmatprep.subr.mxu0 0.0
      %2075 = vmatpush1.msra.mxu0 0.0
      %2076 = vmatprep.subr.mxu0 0.0
      %2077 = vmatpush1.msra.mxu0 0.0
      %2078 = vmatprep.subr.mxu0 0.0
      %2079 = vmatpush1.msra.mxu0 0.0
      %2080 = vmatprep.subr.mxu0 0.0
      %2081 = vmatpush1.msra.mxu0 0.0
      %2082 = vmatprep.subr.mxu0 0.0
      %2083 = vmatpush1.msra.mxu0 0.0
      %2084 = vmatprep.subr.mxu0 0.0
      %2085 = vmatpush1.msra.mxu0 0.0
      %2086 = vmatprep.subr.mxu0 0.0
      %2087 = vmatpush1.msra.mxu0 0.0
      %2088 = vmatprep.subr.mxu0 0.0
      %2089 = vmatpush1.msra.mxu0 0.0
      %2090 = vmatprep.subr.mxu0 0.0
      %2091 = vmatpush1.msra.mxu0 0.0
      %2092 = vmatprep.subr.mxu0 0.0
      %2093 = vmatpush1.msra.mxu0 0.0
      %2094 = vmatprep.subr.mxu0 0.0
      %2095 = vmatpush1.msra.mxu0 0.0
      %2096 = vmatprep.subr.mxu0 0.0
      %2097 = vmatpush1.msra.mxu0 0.0
      %2098 = vmatprep.mubr.f32.mxu0 0.0
      %2099 = vmatmul.mubr.f32.gmra.mrb[0].mxu0 %v1172
      %v2100 = vpop.f32.mrb[0].mxu0
      %v2101 = vadd.f32 0.0, %v2100
      %v2102 = vpop.f32.mrb[0].mxu0
      %2103 = vmatprep.mubr.f32.mxu0 0.0
      %2104 = vmatmul.mubr.f32.gmra.mrb[0].mxu0 %v1174
      %v2105 = vpop.f32.mrb[0].mxu0
      %v2106 = vadd.f32 0.0, %v2105
      %v2107 = vpop.f32.mrb[0].mxu0
      %2108 = vmatprep.mubr.f32.mxu0 0.0
      %2109 = vmatmul.mubr.f32.gmra.mrb[0].mxu0 %v1176
      %v2110 = vpop.f32.mrb[0].mxu0
      %v2111 = vadd.f32 0.0, %v2110
      %v2112 = vpop.f32.mrb[0].mxu0
      %2113 = vmatprep.mubr.f32.mxu0 0.0
      %2114 = vmatmul.mubr.f32.gmra.mrb[0].mxu0 %v1178
      %v2115 = vpop.f32.mrb[0].mxu0
      %v2116 = vadd.f32 0.0, %v2115
      %v2117 = vpop.f32.mrb[0].mxu0
      %2118 = vmatprep.mubr.f32.mxu0 0.0
      %2119 = vmatmul.mubr.f32.gmra.mrb[0].mxu0 %v1180
      %v2120 = vpop.f32.mrb[0].mxu0
      %v2121 = vadd.f32 0.0, %v2120
      %v2122 = vpop.f32.mrb[0].mxu0
      %2123 = vmatprep.mubr.f32.mxu0 0.0
      %2124 = vmatmul.mubr.f32.gmra.mrb[0].mxu0 %v1182
      %v2125 = vpop.f32.mrb[0].mxu0
      %v2126 = vadd.f32 0.0, %v2125
      %v2127 = vpop.f32.mrb[0].mxu0
      %2128 = vmatprep.mubr.f32.mxu0 0.0
      %2129 = vmatmul.mubr.f32.gmra.mrb[0].mxu0 %v1184
      %v2130 = vpop.f32.mrb[0].mxu0
      %v2131 = vadd.f32 0.0, %v2130
      %v2132 = vpop.f32.mrb[0].mxu0
      %2133 = vmatprep.mubr.f32.mxu0 0.0
      %2134 = vmatmul.mubr.f32.gmra.mrb[0].mxu0 %v1186
      %v2135 = vpop.f32.mrb[0].mxu0
      %v2136 = vadd.f32 0.0, %v2135
      %v2137 = vpop.f32.mrb[0].mxu0
      %2138 = vmatprep.mubr.f32.mxu0 0.0
      %2139 = vmatmul.mubr.f32.gmra.mrb[0].mxu0 %v1188
      %v2140 = vpop.f32.mrb[0].mxu0
      %v2141 = vadd.f32 0.0, %v2140
      %v2142 = vpop.f32.mrb[0].mxu0
      %2143 = vmatprep.mubr.f32.mxu0 0.0
      %2144 = vmatmul.mubr.f32.gmra.mrb[0].mxu0 %v1190
      %v2145 = vpop.f32.mrb[0].mxu0
      %v2146 = vadd.f32 0.0, %v2145
      %v2147 = vpop.f32.mrb[0].mxu0
      %2148 = vmatprep.mubr.f32.mxu0 0.0
      %2149 = vmatmul.mubr.f32.gmra.mrb[0].mxu0 %v1192
      %v2150 = vpop.f32.mrb[0].mxu0
      %v2151 = vadd.f32 0.0, %v2150
      %v2152 = vpop.f32.mrb[0].mxu0
      %2153 = vmatprep.mubr.f32.mxu0 0.0
      %2154 = vmatmul.mubr.f32.gmra.mrb[0].mxu0 %v1194
      %v2155 = vpop.f32.mrb[0].mxu0
      %v2156 = vadd.f32 0.0, %v2155
      %v2157 = vpop.f32.mrb[0].mxu0
      %2158 = vmatprep.mubr.f32.mxu0 0.0
      %2159 = vmatmul.mubr.f32.gmra.mrb[0].mxu0 %v1196
      %v2160 = vpop.f32.mrb[0].mxu0
      %v2161 = vadd.f32 0.0, %v2160
      %v2162 = vpop.f32.mrb[0].mxu0
      %2163 = vmatprep.mubr.f32.mxu0 0.0
      %2164 = vmatmul.mubr.f32.gmra.mrb[0].mxu0 %v1198
      %v2165 = vpop.f32.mrb[0].mxu0
      %v2166 = vadd.f32 0.0, %v2165
      %v2167 = vpop.f32.mrb[0].mxu0
      %2168 = vmatprep.mubr.f32.mxu0 0.0
      %2169 = vmatmul.mubr.f32.gmra.mrb[0].mxu0 %v1200
      %v2170 = vpop.f32.mrb[0].mxu0
      %v2171 = vadd.f32 0.0, %v2170
      %v2172 = vpop.f32.mrb[0].mxu0
      %2173 = vmatprep.mubr.f32.mxu0 0.0
      %2174 = vmatmul.mubr.f32.gmra.mrb[0].mxu0 %v1202
      %v2175 = vpop.f32.mrb[0].mxu0
      %v2176 = vadd.f32 0.0, %v2175
      %v2177 = vpop.f32.mrb[0].mxu0
      %2178 = vmatprep.mubr.f32.mxu0 0.0
      %2179 = vmatmul.mubr.f32.gmra.mrb[0].mxu0 %v1204
      %v2180 = vpop.f32.mrb[0].mxu0
      %v2181 = vadd.f32 0.0, %v2180
      %v2182 = vpop.f32.mrb[0].mxu0
      %2183 = vmatprep.mubr.f32.mxu0 0.0
      %2184 = vmatmul.mubr.f32.gmra.mrb[0].mxu0 %v1206
      %v2185 = vpop.f32.mrb[0].mxu0
      %v2186 = vadd.f32 0.0, %v2185
      %v2187 = vpop.f32.mrb[0].mxu0
      %2188 = vmatprep.mubr.f32.mxu0 0.0
      %2189 = vmatmul.mubr.f32.gmra.mrb[0].mxu0 %v1208
      %v2190 = vpop.f32.mrb[0].mxu0
      %v2191 = vadd.f32 0.0, %v2190
      %v2192 = vpop.f32.mrb[0].mxu0
      %2193 = vmatprep.mubr.f32.mxu0 0.0
      %2194 = vmatmul.mubr.f32.gmra.mrb[0].mxu0 %v1210
      %v2195 = vpop.f32.mrb[0].mxu0
      %v2196 = vadd.f32 0.0, %v2195
      %v2197 = vpop.f32.mrb[0].mxu0
      %2198 = vmatprep.mubr.f32.mxu0 0.0
      %2199 = vmatmul.mubr.f32.gmra.mrb[0].mxu0 %v1212
      %v2200 = vpop.f32.mrb[0].mxu0
      %v2201 = vadd.f32 0.0, %v2200
      %v2202 = vpop.f32.mrb[0].mxu0
      %2203 = vmatprep.mubr.f32.mxu0 0.0
      %2204 = vmatmul.mubr.f32.gmra.mrb[0].mxu0 %v1214
      %v2205 = vpop.f32.mrb[0].mxu0
      %v2206 = vadd.f32 0.0, %v2205
      %v2207 = vpop.f32.mrb[0].mxu0
      %2208 = vmatprep.mubr.f32.mxu0 0.0
      %2209 = vmatmul.mubr.f32.gmra.mrb[0].mxu0 %v1216
      %v2210 = vpop.f32.mrb[0].mxu0
      %v2211 = vadd.f32 0.0, %v2210
      %v2212 = vpop.f32.mrb[0].mxu0
      %2213 = vmatprep.mubr.f32.mxu0 0.0
      %2214 = vmatmul.mubr.f32.gmra.mrb[0].mxu0 %v1218
      %v2215 = vpop.f32.mrb[0].mxu0
      %v2216 = vadd.f32 0.0, %v2215
      %v2217 = vpop.f32.mrb[0].mxu0
      %2218 = vmatprep.mubr.f32.mxu0 0.0
      %2219 = vmatmul.mubr.f32.gmra.mrb[0].mxu0 %v1220
      %v2220 = vpop.f32.mrb[0].mxu0
      %v2221 = vadd.f32 0.0, %v2220
      %v2222 = vpop.f32.mrb[0].mxu0
      %2223 = vmatprep.mubr.f32.mxu0 0.0
      %2224 = vmatmul.mubr.f32.gmra.mrb[0].mxu0 %v1222
      %v2225 = vpop.f32.mrb[0].mxu0
      %v2226 = vadd.f32 0.0, %v2225
      %v2227 = vpop.f32.mrb[0].mxu0
      %2228 = vmatprep.mubr.f32.mxu0 0.0
      %2229 = vmatmul.mubr.f32.gmra.mrb[0].mxu0 %v1224
      %v2230 = vpop.f32.mrb[0].mxu0
      %v2231 = vadd.f32 0.0, %v2230
      %v2232 = vpop.f32.mrb[0].mxu0
      %2233 = vmatprep.mubr.f32.mxu0 0.0
      %2234 = vmatmul.mubr.f32.gmra.mrb[0].mxu0 %v1226
      %v2235 = vpop.f32.mrb[0].mxu0
      %v2236 = vadd.f32 0.0, %v2235
      %v2237 = vpop.f32.mrb[0].mxu0
      %2238 = vmatprep.mubr.f32.mxu0 0.0
      %2239 = vmatmul.mubr.f32.gmra.mrb[0].mxu0 %v1228
      %v2240 = vpop.f32.mrb[0].mxu0
      %v2241 = vadd.f32 0.0, %v2240
      %v2242 = vpop.f32.mrb[0].mxu0
      %2243 = vmatprep.mubr.f32.mxu0 0.0
      %2244 = vmatmul.mubr.f32.gmra.mrb[0].mxu0 %v1230
      %v2245 = vpop.f32.mrb[0].mxu0
      %v2246 = vadd.f32 0.0, %v2245
      %v2247 = vpop.f32.mrb[0].mxu0
      %2248 = vmatprep.mubr.f32.mxu0 0.0
      %2249 = vmatmul.mubr.f32.gmra.mrb[0].mxu0 %v2030
      %v2250 = vpop.f32.mrb[0].mxu0
      %v2251 = vadd.f32 0.0, %v2250
      %v2252 = vpop.f32.mrb[0].mxu0
      %2253 = vmatprep.mubr.f32.mxu0 0.0
      %2254 = vmatmul.mubr.f32.gmra.mrb[0].mxu0 %v2032
      %v2255 = vpop.f32.mrb[0].mxu0
      %v2256 = vadd.f32 0.0, %v2255
      %v2257 = vpop.f32.mrb[0].mxu0
      %2258 = vdwg.mxu0
      %v2259 = vadd.f32 %v1991, %v2101
      %v2260 = vadd.f32 %v1992, %v2106
      %v2261 = vadd.f32 %v1993, %v2111
      %v2262 = vadd.f32 %v1994, %v2116
      %v2263 = vadd.f32 %v1995, %v2121
      %v2264 = vadd.f32 %v1996, %v2126
      %v2265 = vadd.f32 %v1997, %v2131
      %v2266 = vadd.f32 %v1998, %v2136
      %v2267 = vadd.f32 %v1999, %v2141
      %v2268 = vadd.f32 %v2000, %v2146
      %v2269 = vadd.f32 %v2001, %v2151
      %v2270 = vadd.f32 %v2002, %v2156
      %v2271 = vadd.f32 %v2003, %v2161
      %v2272 = vadd.f32 %v2004, %v2166
      %v2273 = vadd.f32 %v2005, %v2171
      %v2274 = vadd.f32 %v2006, %v2176
      %v2275 = vadd.f32 %v2007, %v2181
      %v2276 = vadd.f32 %v2008, %v2186
      %v2277 = vadd.f32 %v2009, %v2191
      %v2278 = vadd.f32 %v2010, %v2196
      %v2279 = vadd.f32 %v2011, %v2201
      %v2280 = vadd.f32 %v2012, %v2206
      %v2281 = vadd.f32 %v2013, %v2211
      %v2282 = vadd.f32 %v2014, %v2216
      %v2283 = vadd.f32 %v2015, %v2221
      %v2284 = vadd.f32 %v2016, %v2226
      %v2285 = vadd.f32 %v2017, %v2231
      %v2286 = vadd.f32 %v2018, %v2236
      %v2287 = vadd.f32 %v2019, %v2241
      %v2288 = vadd.f32 %v2020, %v2246
      %v2289 = vadd.f32 %v2021, %v2251
      %v2290 = vadd.f32 %v2022, %v2256
      %s2291 = scalar_lea.vmem %s2, 48
      %v2292 = vld [vmem:[%s2291] sm:$0xff]
      %v2294 = vsel %vm506, %v371, 0
      %v2297 = vsel %vm506, %v372, 0
      %2299 = vmatprep.subr.mxu0 0.0
      %2300 = vmatpush1.msra.mxu0 %v2292
      %2301 = vmatprep.subr.mxu0 0.0
      %2302 = vmatpush1.msra.mxu0 0.0
      %2303 = vmatprep.subr.mxu0 0.0
      %2304 = vmatpush1.msra.mxu0 0.0
      %2305 = vmatprep.subr.mxu0 0.0
      %2306 = vmatpush1.msra.mxu0 0.0
      %2307 = vmatprep.subr.mxu0 0.0
      %2308 = vmatpush1.msra.mxu0 0.0
      %2309 = vmatprep.subr.mxu0 0.0
      %2310 = vmatpush1.msra.mxu0 0.0
      %2311 = vmatprep.subr.mxu0 0.0
      %2312 = vmatpush1.msra.mxu0 0.0
      %2313 = vmatprep.subr.mxu0 0.0
      %2314 = vmatpush1.msra.mxu0 0.0
      %2315 = vmatprep.subr.mxu0 0.0
      %2316 = vmatpush1.msra.mxu0 0.0
      %2317 = vmatprep.subr.mxu0 0.0
      %2318 = vmatpush1.msra.mxu0 0.0
      %2319 = vmatprep.subr.mxu0 0.0
      %2320 = vmatpush1.msra.mxu0 0.0
      %2321 = vmatprep.subr.mxu0 0.0
      %2322 = vmatpush1.msra.mxu0 0.0
      %2323 = vmatprep.subr.mxu0 0.0
      %2324 = vmatpush1.msra.mxu0 0.0
      %2325 = vmatprep.subr.mxu0 0.0
      %2326 = vmatpush1.msra.mxu0 0.0
      %2327 = vmatprep.subr.mxu0 0.0
      %2328 = vmatpush1.msra.mxu0 0.0
      %2329 = vmatprep.subr.mxu0 0.0
      %2330 = vmatpush1.msra.mxu0 0.0
      %2331 = vmatprep.subr.mxu0 0.0
      %2332 = vmatpush1.msra.mxu0 0.0
      %2333 = vmatprep.subr.mxu0 0.0
      %2334 = vmatpush1.msra.mxu0 0.0
      %2335 = vmatprep.subr.mxu0 0.0
      %2336 = vmatpush1.msra.mxu0 0.0
      %2337 = vmatprep.subr.mxu0 0.0
      %2338 = vmatpush1.msra.mxu0 0.0
      %2339 = vmatprep.subr.mxu0 0.0
      %2340 = vmatpush1.msra.mxu0 0.0
      %2341 = vmatprep.subr.mxu0 0.0
      %2342 = vmatpush1.msra.mxu0 0.0
      %2343 = vmatprep.subr.mxu0 0.0
      %2344 = vmatpush1.msra.mxu0 0.0
      %2345 = vmatprep.subr.mxu0 0.0
      %2346 = vmatpush1.msra.mxu0 0.0
      %2347 = vmatprep.subr.mxu0 0.0
      %2348 = vmatpush1.msra.mxu0 0.0
      %2349 = vmatprep.subr.mxu0 0.0
      %2350 = vmatpush1.msra.mxu0 0.0
      %2351 = vmatprep.subr.mxu0 0.0
      %2352 = vmatpush1.msra.mxu0 0.0
      %2353 = vmatprep.subr.mxu0 0.0
      %2354 = vmatpush1.msra.mxu0 0.0
      %2355 = vmatprep.subr.mxu0 0.0
      %2356 = vmatpush1.msra.mxu0 0.0
      %2357 = vmatprep.subr.mxu0 0.0
      %2358 = vmatpush1.msra.mxu0 0.0
      %2359 = vmatprep.subr.mxu0 0.0
      %2360 = vmatpush1.msra.mxu0 0.0
      %2361 = vmatprep.subr.mxu0 0.0
      %2362 = vmatpush1.msra.mxu0 0.0
      %2363 = vmatprep.mubr.f32.mxu0 0.0
      %2364 = vmatmul.mubr.f32.gmra.mrb[0].mxu0 %v804
      %v2365 = vpop.f32.mrb[0].mxu0
      %v2366 = vadd.f32 0.0, %v2365
      %v2367 = vpop.f32.mrb[0].mxu0
      %2368 = vmatprep.mubr.f32.mxu0 0.0
      %2369 = vmatmul.mubr.f32.gmra.mrb[0].mxu0 %v806
      %v2370 = vpop.f32.mrb[0].mxu0
      %v2371 = vadd.f32 0.0, %v2370
      %v2372 = vpop.f32.mrb[0].mxu0
      %2373 = vmatprep.mubr.f32.mxu0 0.0
      %2374 = vmatmul.mubr.f32.gmra.mrb[0].mxu0 %v808
      %v2375 = vpop.f32.mrb[0].mxu0
      %v2376 = vadd.f32 0.0, %v2375
      %v2377 = vpop.f32.mrb[0].mxu0
      %2378 = vmatprep.mubr.f32.mxu0 0.0
      %2379 = vmatmul.mubr.f32.gmra.mrb[0].mxu0 %v810
      %v2380 = vpop.f32.mrb[0].mxu0
      %v2381 = vadd.f32 0.0, %v2380
      %v2382 = vpop.f32.mrb[0].mxu0
      %2383 = vmatprep.mubr.f32.mxu0 0.0
      %2384 = vmatmul.mubr.f32.gmra.mrb[0].mxu0 %v812
      %v2385 = vpop.f32.mrb[0].mxu0
      %v2386 = vadd.f32 0.0, %v2385
      %v2387 = vpop.f32.mrb[0].mxu0
      %2388 = vmatprep.mubr.f32.mxu0 0.0
      %2389 = vmatmul.mubr.f32.gmra.mrb[0].mxu0 %v814
      %v2390 = vpop.f32.mrb[0].mxu0
      %v2391 = vadd.f32 0.0, %v2390
      %v2392 = vpop.f32.mrb[0].mxu0
      %2393 = vmatprep.mubr.f32.mxu0 0.0
      %2394 = vmatmul.mubr.f32.gmra.mrb[0].mxu0 %v816
      %v2395 = vpop.f32.mrb[0].mxu0
      %v2396 = vadd.f32 0.0, %v2395
      %v2397 = vpop.f32.mrb[0].mxu0
      %2398 = vmatprep.mubr.f32.mxu0 0.0
      %2399 = vmatmul.mubr.f32.gmra.mrb[0].mxu0 %v818
      %v2400 = vpop.f32.mrb[0].mxu0
      %v2401 = vadd.f32 0.0, %v2400
      %v2402 = vpop.f32.mrb[0].mxu0
      %2403 = vmatprep.mubr.f32.mxu0 0.0
      %2404 = vmatmul.mubr.f32.gmra.mrb[0].mxu0 %v820
      %v2405 = vpop.f32.mrb[0].mxu0
      %v2406 = vadd.f32 0.0, %v2405
      %v2407 = vpop.f32.mrb[0].mxu0
      %2408 = vmatprep.mubr.f32.mxu0 0.0
      %2409 = vmatmul.mubr.f32.gmra.mrb[0].mxu0 %v822
      %v2410 = vpop.f32.mrb[0].mxu0
      %v2411 = vadd.f32 0.0, %v2410
      %v2412 = vpop.f32.mrb[0].mxu0
      %2413 = vmatprep.mubr.f32.mxu0 0.0
      %2414 = vmatmul.mubr.f32.gmra.mrb[0].mxu0 %v824
      %v2415 = vpop.f32.mrb[0].mxu0
      %v2416 = vadd.f32 0.0, %v2415
      %v2417 = vpop.f32.mrb[0].mxu0
      %2418 = vmatprep.mubr.f32.mxu0 0.0
      %2419 = vmatmul.mubr.f32.gmra.mrb[0].mxu0 %v826
      %v2420 = vpop.f32.mrb[0].mxu0
      %v2421 = vadd.f32 0.0, %v2420
      %v2422 = vpop.f32.mrb[0].mxu0
      %2423 = vmatprep.mubr.f32.mxu0 0.0
      %2424 = vmatmul.mubr.f32.gmra.mrb[0].mxu0 %v828
      %v2425 = vpop.f32.mrb[0].mxu0
      %v2426 = vadd.f32 0.0, %v2425
      %v2427 = vpop.f32.mrb[0].mxu0
      %2428 = vmatprep.mubr.f32.mxu0 0.0
      %2429 = vmatmul.mubr.f32.gmra.mrb[0].mxu0 %v830
      %v2430 = vpop.f32.mrb[0].mxu0
      %v2431 = vadd.f32 0.0, %v2430
      %v2432 = vpop.f32.mrb[0].mxu0
      %2433 = vmatprep.mubr.f32.mxu0 0.0
      %2434 = vmatmul.mubr.f32.gmra.mrb[0].mxu0 %v832
      %v2435 = vpop.f32.mrb[0].mxu0
      %v2436 = vadd.f32 0.0, %v2435
      %v2437 = vpop.f32.mrb[0].mxu0
      %2438 = vmatprep.mubr.f32.mxu0 0.0
      %2439 = vmatmul.mubr.f32.gmra.mrb[0].mxu0 %v834
      %v2440 = vpop.f32.mrb[0].mxu0
      %v2441 = vadd.f32 0.0, %v2440
      %v2442 = vpop.f32.mrb[0].mxu0
      %2443 = vmatprep.mubr.f32.mxu0 0.0
      %2444 = vmatmul.mubr.f32.gmra.mrb[0].mxu0 %v836
      %v2445 = vpop.f32.mrb[0].mxu0
      %v2446 = vadd.f32 0.0, %v2445
      %v2447 = vpop.f32.mrb[0].mxu0
      %2448 = vmatprep.mubr.f32.mxu0 0.0
      %2449 = vmatmul.mubr.f32.gmra.mrb[0].mxu0 %v838
      %v2450 = vpop.f32.mrb[0].mxu0
      %v2451 = vadd.f32 0.0, %v2450
      %v2452 = vpop.f32.mrb[0].mxu0
      %2453 = vmatprep.mubr.f32.mxu0 0.0
      %2454 = vmatmul.mubr.f32.gmra.mrb[0].mxu0 %v840
      %v2455 = vpop.f32.mrb[0].mxu0
      %v2456 = vadd.f32 0.0, %v2455
      %v2457 = vpop.f32.mrb[0].mxu0
      %2458 = vmatprep.mubr.f32.mxu0 0.0
      %2459 = vmatmul.mubr.f32.gmra.mrb[0].mxu0 %v842
      %v2460 = vpop.f32.mrb[0].mxu0
      %v2461 = vadd.f32 0.0, %v2460
      %v2462 = vpop.f32.mrb[0].mxu0
      %2463 = vmatprep.mubr.f32.mxu0 0.0
      %2464 = vmatmul.mubr.f32.gmra.mrb[0].mxu0 %v844
      %v2465 = vpop.f32.mrb[0].mxu0
      %v2466 = vadd.f32 0.0, %v2465
      %v2467 = vpop.f32.mrb[0].mxu0
      %2468 = vmatprep.mubr.f32.mxu0 0.0
      %2469 = vmatmul.mubr.f32.gmra.mrb[0].mxu0 %v846
      %v2470 = vpop.f32.mrb[0].mxu0
      %v2471 = vadd.f32 0.0, %v2470
      %v2472 = vpop.f32.mrb[0].mxu0
      %2473 = vmatprep.mubr.f32.mxu0 0.0
      %2474 = vmatmul.mubr.f32.gmra.mrb[0].mxu0 %v848
      %v2475 = vpop.f32.mrb[0].mxu0
      %v2476 = vadd.f32 0.0, %v2475
      %v2477 = vpop.f32.mrb[0].mxu0
      %2478 = vmatprep.mubr.f32.mxu0 0.0
      %2479 = vmatmul.mubr.f32.gmra.mrb[0].mxu0 %v850
      %v2480 = vpop.f32.mrb[0].mxu0
      %v2481 = vadd.f32 0.0, %v2480
      %v2482 = vpop.f32.mrb[0].mxu0
      %2483 = vmatprep.mubr.f32.mxu0 0.0
      %2484 = vmatmul.mubr.f32.gmra.mrb[0].mxu0 %v852
      %v2485 = vpop.f32.mrb[0].mxu0
      %v2486 = vadd.f32 0.0, %v2485
      %v2487 = vpop.f32.mrb[0].mxu0
      %2488 = vmatprep.mubr.f32.mxu0 0.0
      %2489 = vmatmul.mubr.f32.gmra.mrb[0].mxu0 %v854
      %v2490 = vpop.f32.mrb[0].mxu0
      %v2491 = vadd.f32 0.0, %v2490
      %v2492 = vpop.f32.mrb[0].mxu0
      %2493 = vmatprep.mubr.f32.mxu0 0.0
      %2494 = vmatmul.mubr.f32.gmra.mrb[0].mxu0 %v856
      %v2495 = vpop.f32.mrb[0].mxu0
      %v2496 = vadd.f32 0.0, %v2495
      %v2497 = vpop.f32.mrb[0].mxu0
      %2498 = vmatprep.mubr.f32.mxu0 0.0
      %2499 = vmatmul.mubr.f32.gmra.mrb[0].mxu0 %v858
      %v2500 = vpop.f32.mrb[0].mxu0
      %v2501 = vadd.f32 0.0, %v2500
      %v2502 = vpop.f32.mrb[0].mxu0
      %2503 = vmatprep.mubr.f32.mxu0 0.0
      %2504 = vmatmul.mubr.f32.gmra.mrb[0].mxu0 %v1492
      %v2505 = vpop.f32.mrb[0].mxu0
      %v2506 = vadd.f32 0.0, %v2505
      %v2507 = vpop.f32.mrb[0].mxu0
      %2508 = vmatprep.mubr.f32.mxu0 0.0
      %2509 = vmatmul.mubr.f32.gmra.mrb[0].mxu0 %v1495
      %v2510 = vpop.f32.mrb[0].mxu0
      %v2511 = vadd.f32 0.0, %v2510
      %v2512 = vpop.f32.mrb[0].mxu0
      %2513 = vmatprep.mubr.f32.mxu0 0.0
      %2514 = vmatmul.mubr.f32.gmra.mrb[0].mxu0 %v2294
      %v2515 = vpop.f32.mrb[0].mxu0
      %v2516 = vadd.f32 0.0, %v2515
      %v2517 = vpop.f32.mrb[0].mxu0
      %2518 = vmatprep.mubr.f32.mxu0 0.0
      %2519 = vmatmul.mubr.f32.gmra.mrb[0].mxu0 %v2297
      %v2520 = vpop.f32.mrb[0].mxu0
      %v2521 = vadd.f32 0.0, %v2520
      %v2522 = vpop.f32.mrb[0].mxu0
      %2523 = vdwg.mxu0
      %v2524 = vadd.f32 %v2259, %v2366
      %v2525 = vadd.f32 %v2260, %v2371
      %v2526 = vadd.f32 %v2261, %v2376
      %v2527 = vadd.f32 %v2262, %v2381
      %v2528 = vadd.f32 %v2263, %v2386
      %v2529 = vadd.f32 %v2264, %v2391
      %v2530 = vadd.f32 %v2265, %v2396
      %v2531 = vadd.f32 %v2266, %v2401
      %v2532 = vadd.f32 %v2267, %v2406
      %v2533 = vadd.f32 %v2268, %v2411
      %v2534 = vadd.f32 %v2269, %v2416
      %v2535 = vadd.f32 %v2270, %v2421
      %v2536 = vadd.f32 %v2271, %v2426
      %v2537 = vadd.f32 %v2272, %v2431
      %v2538 = vadd.f32 %v2273, %v2436
      %v2539 = vadd.f32 %v2274, %v2441
      %v2540 = vadd.f32 %v2275, %v2446
      %v2541 = vadd.f32 %v2276, %v2451
      %v2542 = vadd.f32 %v2277, %v2456
      %v2543 = vadd.f32 %v2278, %v2461
      %v2544 = vadd.f32 %v2279, %v2466
      %v2545 = vadd.f32 %v2280, %v2471
      %v2546 = vadd.f32 %v2281, %v2476
      %v2547 = vadd.f32 %v2282, %v2481
      %v2548 = vadd.f32 %v2283, %v2486
      %v2549 = vadd.f32 %v2284, %v2491
      %v2550 = vadd.f32 %v2285, %v2496
      %v2551 = vadd.f32 %v2286, %v2501
      %v2552 = vadd.f32 %v2287, %v2506
      %v2553 = vadd.f32 %v2288, %v2511
      %v2554 = vadd.f32 %v2289, %v2516
      %v2555 = vadd.f32 %v2290, %v2521
      %v2557 = vrot.slane %v371, 1
      %v2558 = vrot.slane %v372, 1
      %v2559 = vsel %vm423, %v2557, %v2558
      %v2560 = vrot.slane %v373, 1
      %v2561 = vsel %vm423, %v2558, %v2560
      %s2562 = scalar_lea.vmem %s2, 56
      %v2563 = vld [vmem:[%s2562] sm:$0xff]
      %v2564 = vsel %vm506, %v2559, 0
      %v2566 = vsel %vm506, %v2561, 0
      %2568 = vmatprep.subr.mxu0 0.0
      %2569 = vmatpush1.msra.mxu0 %v2563
      %2570 = vmatprep.subr.mxu0 0.0
      %2571 = vmatpush1.msra.mxu0 0.0
      %2572 = vmatprep.subr.mxu0 0.0
      %2573 = vmatpush1.msra.mxu0 0.0
      %2574 = vmatprep.subr.mxu0 0.0
      %2575 = vmatpush1.msra.mxu0 0.0
      %2576 = vmatprep.subr.mxu0 0.0
      %2577 = vmatpush1.msra.mxu0 0.0
      %2578 = vmatprep.subr.mxu0 0.0
      %2579 = vmatpush1.msra.mxu0 0.0
      %2580 = vmatprep.subr.mxu0 0.0
      %2581 = vmatpush1.msra.mxu0 0.0
      %2582 = vmatprep.subr.mxu0 0.0
      %2583 = vmatpush1.msra.mxu0 0.0
      %2584 = vmatprep.subr.mxu0 0.0
      %2585 = vmatpush1.msra.mxu0 0.0
      %2586 = vmatprep.subr.mxu0 0.0
      %2587 = vmatpush1.msra.mxu0 0.0
      %2588 = vmatprep.subr.mxu0 0.0
      %2589 = vmatpush1.msra.mxu0 0.0
      %2590 = vmatprep.subr.mxu0 0.0
      %2591 = vmatpush1.msra.mxu0 0.0
      %2592 = vmatprep.subr.mxu0 0.0
      %2593 = vmatpush1.msra.mxu0 0.0
      %2594 = vmatprep.subr.mxu0 0.0
      %2595 = vmatpush1.msra.mxu0 0.0
      %2596 = vmatprep.subr.mxu0 0.0
      %2597 = vmatpush1.msra.mxu0 0.0
      %2598 = vmatprep.subr.mxu0 0.0
      %2599 = vmatpush1.msra.mxu0 0.0
      %2600 = vmatprep.subr.mxu0 0.0
      %2601 = vmatpush1.msra.mxu0 0.0
      %2602 = vmatprep.subr.mxu0 0.0
      %2603 = vmatpush1.msra.mxu0 0.0
      %2604 = vmatprep.subr.mxu0 0.0
      %2605 = vmatpush1.msra.mxu0 0.0
      %2606 = vmatprep.subr.mxu0 0.0
      %2607 = vmatpush1.msra.mxu0 0.0
      %2608 = vmatprep.subr.mxu0 0.0
      %2609 = vmatpush1.msra.mxu0 0.0
      %2610 = vmatprep.subr.mxu0 0.0
      %2611 = vmatpush1.msra.mxu0 0.0
      %2612 = vmatprep.subr.mxu0 0.0
      %2613 = vmatpush1.msra.mxu0 0.0
      %2614 = vmatprep.subr.mxu0 0.0
      %2615 = vmatpush1.msra.mxu0 0.0
      %2616 = vmatprep.subr.mxu0 0.0
      %2617 = vmatpush1.msra.mxu0 0.0
      %2618 = vmatprep.subr.mxu0 0.0
      %2619 = vmatpush1.msra.mxu0 0.0
      %2620 = vmatprep.subr.mxu0 0.0
      %2621 = vmatpush1.msra.mxu0 0.0
      %2622 = vmatprep.subr.mxu0 0.0
      %2623 = vmatpush1.msra.mxu0 0.0
      %2624 = vmatprep.subr.mxu0 0.0
      %2625 = vmatpush1.msra.mxu0 0.0
      %2626 = vmatprep.subr.mxu0 0.0
      %2627 = vmatpush1.msra.mxu0 0.0
      %2628 = vmatprep.subr.mxu0 0.0
      %2629 = vmatpush1.msra.mxu0 0.0
      %2630 = vmatprep.subr.mxu0 0.0
      %2631 = vmatpush1.msra.mxu0 0.0
      %2632 = vmatprep.mubr.f32.mxu0 0.0
      %2633 = vmatmul.mubr.f32.gmra.mrb[0].mxu0 %v515
      %v2634 = vpop.f32.mrb[0].mxu0
      %v2635 = vadd.f32 0.0, %v2634
      %v2636 = vpop.f32.mrb[0].mxu0
      %2637 = vmatprep.mubr.f32.mxu0 0.0
      %2638 = vmatmul.mubr.f32.gmra.mrb[0].mxu0 %v517
      %v2639 = vpop.f32.mrb[0].mxu0
      %v2640 = vadd.f32 0.0, %v2639
      %v2641 = vpop.f32.mrb[0].mxu0
      %2642 = vmatprep.mubr.f32.mxu0 0.0
      %2643 = vmatmul.mubr.f32.gmra.mrb[0].mxu0 %v519
      %v2644 = vpop.f32.mrb[0].mxu0
      %v2645 = vadd.f32 0.0, %v2644
      %v2646 = vpop.f32.mrb[0].mxu0
      %2647 = vmatprep.mubr.f32.mxu0 0.0
      %2648 = vmatmul.mubr.f32.gmra.mrb[0].mxu0 %v521
      %v2649 = vpop.f32.mrb[0].mxu0
      %v2650 = vadd.f32 0.0, %v2649
      %v2651 = vpop.f32.mrb[0].mxu0
      %2652 = vmatprep.mubr.f32.mxu0 0.0
      %2653 = vmatmul.mubr.f32.gmra.mrb[0].mxu0 %v523
      %v2654 = vpop.f32.mrb[0].mxu0
      %v2655 = vadd.f32 0.0, %v2654
      %v2656 = vpop.f32.mrb[0].mxu0
      %2657 = vmatprep.mubr.f32.mxu0 0.0
      %2658 = vmatmul.mubr.f32.gmra.mrb[0].mxu0 %v525
      %v2659 = vpop.f32.mrb[0].mxu0
      %v2660 = vadd.f32 0.0, %v2659
      %v2661 = vpop.f32.mrb[0].mxu0
      %2662 = vmatprep.mubr.f32.mxu0 0.0
      %2663 = vmatmul.mubr.f32.gmra.mrb[0].mxu0 %v527
      %v2664 = vpop.f32.mrb[0].mxu0
      %v2665 = vadd.f32 0.0, %v2664
      %v2666 = vpop.f32.mrb[0].mxu0
      %2667 = vmatprep.mubr.f32.mxu0 0.0
      %2668 = vmatmul.mubr.f32.gmra.mrb[0].mxu0 %v529
      %v2669 = vpop.f32.mrb[0].mxu0
      %v2670 = vadd.f32 0.0, %v2669
      %v2671 = vpop.f32.mrb[0].mxu0
      %2672 = vmatprep.mubr.f32.mxu0 0.0
      %2673 = vmatmul.mubr.f32.gmra.mrb[0].mxu0 %v531
      %v2674 = vpop.f32.mrb[0].mxu0
      %v2675 = vadd.f32 0.0, %v2674
      %v2676 = vpop.f32.mrb[0].mxu0
      %2677 = vmatprep.mubr.f32.mxu0 0.0
      %2678 = vmatmul.mubr.f32.gmra.mrb[0].mxu0 %v533
      %v2679 = vpop.f32.mrb[0].mxu0
      %v2680 = vadd.f32 0.0, %v2679
      %v2681 = vpop.f32.mrb[0].mxu0
      %2682 = vmatprep.mubr.f32.mxu0 0.0
      %2683 = vmatmul.mubr.f32.gmra.mrb[0].mxu0 %v535
      %v2684 = vpop.f32.mrb[0].mxu0
      %v2685 = vadd.f32 0.0, %v2684
      %v2686 = vpop.f32.mrb[0].mxu0
      %2687 = vmatprep.mubr.f32.mxu0 0.0
      %2688 = vmatmul.mubr.f32.gmra.mrb[0].mxu0 %v537
      %v2689 = vpop.f32.mrb[0].mxu0
      %v2690 = vadd.f32 0.0, %v2689
      %v2691 = vpop.f32.mrb[0].mxu0
      %2692 = vmatprep.mubr.f32.mxu0 0.0
      %2693 = vmatmul.mubr.f32.gmra.mrb[0].mxu0 %v539
      %v2694 = vpop.f32.mrb[0].mxu0
      %v2695 = vadd.f32 0.0, %v2694
      %v2696 = vpop.f32.mrb[0].mxu0
      %2697 = vmatprep.mubr.f32.mxu0 0.0
      %2698 = vmatmul.mubr.f32.gmra.mrb[0].mxu0 %v541
      %v2699 = vpop.f32.mrb[0].mxu0
      %v2700 = vadd.f32 0.0, %v2699
      %v2701 = vpop.f32.mrb[0].mxu0
      %2702 = vmatprep.mubr.f32.mxu0 0.0
      %2703 = vmatmul.mubr.f32.gmra.mrb[0].mxu0 %v543
      %v2704 = vpop.f32.mrb[0].mxu0
      %v2705 = vadd.f32 0.0, %v2704
      %v2706 = vpop.f32.mrb[0].mxu0
      %2707 = vmatprep.mubr.f32.mxu0 0.0
      %2708 = vmatmul.mubr.f32.gmra.mrb[0].mxu0 %v545
      %v2709 = vpop.f32.mrb[0].mxu0
      %v2710 = vadd.f32 0.0, %v2709
      %v2711 = vpop.f32.mrb[0].mxu0
      %2712 = vmatprep.mubr.f32.mxu0 0.0
      %2713 = vmatmul.mubr.f32.gmra.mrb[0].mxu0 %v547
      %v2714 = vpop.f32.mrb[0].mxu0
      %v2715 = vadd.f32 0.0, %v2714
      %v2716 = vpop.f32.mrb[0].mxu0
      %2717 = vmatprep.mubr.f32.mxu0 0.0
      %2718 = vmatmul.mubr.f32.gmra.mrb[0].mxu0 %v549
      %v2719 = vpop.f32.mrb[0].mxu0
      %v2720 = vadd.f32 0.0, %v2719
      %v2721 = vpop.f32.mrb[0].mxu0
      %2722 = vmatprep.mubr.f32.mxu0 0.0
      %2723 = vmatmul.mubr.f32.gmra.mrb[0].mxu0 %v551
      %v2724 = vpop.f32.mrb[0].mxu0
      %v2725 = vadd.f32 0.0, %v2724
      %v2726 = vpop.f32.mrb[0].mxu0
      %2727 = vmatprep.mubr.f32.mxu0 0.0
      %2728 = vmatmul.mubr.f32.gmra.mrb[0].mxu0 %v553
      %v2729 = vpop.f32.mrb[0].mxu0
      %v2730 = vadd.f32 0.0, %v2729
      %v2731 = vpop.f32.mrb[0].mxu0
      %2732 = vmatprep.mubr.f32.mxu0 0.0
      %2733 = vmatmul.mubr.f32.gmra.mrb[0].mxu0 %v555
      %v2734 = vpop.f32.mrb[0].mxu0
      %v2735 = vadd.f32 0.0, %v2734
      %v2736 = vpop.f32.mrb[0].mxu0
      %2737 = vmatprep.mubr.f32.mxu0 0.0
      %2738 = vmatmul.mubr.f32.gmra.mrb[0].mxu0 %v557
      %v2739 = vpop.f32.mrb[0].mxu0
      %v2740 = vadd.f32 0.0, %v2739
      %v2741 = vpop.f32.mrb[0].mxu0
      %2742 = vmatprep.mubr.f32.mxu0 0.0
      %2743 = vmatmul.mubr.f32.gmra.mrb[0].mxu0 %v559
      %v2744 = vpop.f32.mrb[0].mxu0
      %v2745 = vadd.f32 0.0, %v2744
      %v2746 = vpop.f32.mrb[0].mxu0
      %2747 = vmatprep.mubr.f32.mxu0 0.0
      %2748 = vmatmul.mubr.f32.gmra.mrb[0].mxu0 %v561
      %v2749 = vpop.f32.mrb[0].mxu0
      %v2750 = vadd.f32 0.0, %v2749
      %v2751 = vpop.f32.mrb[0].mxu0
      %2752 = vmatprep.mubr.f32.mxu0 0.0
      %2753 = vmatmul.mubr.f32.gmra.mrb[0].mxu0 %v563
      %v2754 = vpop.f32.mrb[0].mxu0
      %v2755 = vadd.f32 0.0, %v2754
      %v2756 = vpop.f32.mrb[0].mxu0
      %2757 = vmatprep.mubr.f32.mxu0 0.0
      %2758 = vmatmul.mubr.f32.gmra.mrb[0].mxu0 %v565
      %v2759 = vpop.f32.mrb[0].mxu0
      %v2760 = vadd.f32 0.0, %v2759
      %v2761 = vpop.f32.mrb[0].mxu0
      %2762 = vmatprep.mubr.f32.mxu0 0.0
      %2763 = vmatmul.mubr.f32.gmra.mrb[0].mxu0 %v567
      %v2764 = vpop.f32.mrb[0].mxu0
      %v2765 = vadd.f32 0.0, %v2764
      %v2766 = vpop.f32.mrb[0].mxu0
      %2767 = vmatprep.mubr.f32.mxu0 0.0
      %2768 = vmatmul.mubr.f32.gmra.mrb[0].mxu0 %v569
      %v2769 = vpop.f32.mrb[0].mxu0
      %v2770 = vadd.f32 0.0, %v2769
      %v2771 = vpop.f32.mrb[0].mxu0
      %2772 = vmatprep.mubr.f32.mxu0 0.0
      %2773 = vmatmul.mubr.f32.gmra.mrb[0].mxu0 %v1762
      %v2774 = vpop.f32.mrb[0].mxu0
      %v2775 = vadd.f32 0.0, %v2774
      %v2776 = vpop.f32.mrb[0].mxu0
      %2777 = vmatprep.mubr.f32.mxu0 0.0
      %2778 = vmatmul.mubr.f32.gmra.mrb[0].mxu0 %v1764
      %v2779 = vpop.f32.mrb[0].mxu0
      %v2780 = vadd.f32 0.0, %v2779
      %v2781 = vpop.f32.mrb[0].mxu0
      %2782 = vmatprep.mubr.f32.mxu0 0.0
      %2783 = vmatmul.mubr.f32.gmra.mrb[0].mxu0 %v2564
      %v2784 = vpop.f32.mrb[0].mxu0
      %v2785 = vadd.f32 0.0, %v2784
      %v2786 = vpop.f32.mrb[0].mxu0
      %2787 = vmatprep.mubr.f32.mxu0 0.0
      %2788 = vmatmul.mubr.f32.gmra.mrb[0].mxu0 %v2566
      %v2789 = vpop.f32.mrb[0].mxu0
      %v2790 = vadd.f32 0.0, %v2789
      %v2791 = vpop.f32.mrb[0].mxu0
      %2792 = vdwg.mxu0
      %v2793 = vadd.f32 %v2524, %v2635
      %v2794 = vadd.f32 %v2525, %v2640
      %v2795 = vadd.f32 %v2526, %v2645
      %v2796 = vadd.f32 %v2527, %v2650
      %v2797 = vadd.f32 %v2528, %v2655
      %v2798 = vadd.f32 %v2529, %v2660
      %v2799 = vadd.f32 %v2530, %v2665
      %v2800 = vadd.f32 %v2531, %v2670
      %v2801 = vadd.f32 %v2532, %v2675
      %v2802 = vadd.f32 %v2533, %v2680
      %v2803 = vadd.f32 %v2534, %v2685
      %v2804 = vadd.f32 %v2535, %v2690
      %v2805 = vadd.f32 %v2536, %v2695
      %v2806 = vadd.f32 %v2537, %v2700
      %v2807 = vadd.f32 %v2538, %v2705
      %v2808 = vadd.f32 %v2539, %v2710
      %v2809 = vadd.f32 %v2540, %v2715
      %v2810 = vadd.f32 %v2541, %v2720
      %v2811 = vadd.f32 %v2542, %v2725
      %v2812 = vadd.f32 %v2543, %v2730
      %v2813 = vadd.f32 %v2544, %v2735
      %v2814 = vadd.f32 %v2545, %v2740
      %v2815 = vadd.f32 %v2546, %v2745
      %v2816 = vadd.f32 %v2547, %v2750
      %v2817 = vadd.f32 %v2548, %v2755
      %v2818 = vadd.f32 %v2549, %v2760
      %v2819 = vadd.f32 %v2550, %v2765
      %v2820 = vadd.f32 %v2551, %v2770
      %v2821 = vadd.f32 %v2552, %v2775
      %v2822 = vadd.f32 %v2553, %v2780
      %v2823 = vadd.f32 %v2554, %v2785
      %v2824 = vadd.f32 %v2555, %v2790
      %v2825 = vrot.slane %v371, 2
      %v2826 = vrot.slane %v372, 2
      %v2827 = vsel %vm1085, %v2825, %v2826
      %v2828 = vrot.slane %v373, 2
      %v2829 = vsel %vm1085, %v2826, %v2828
      %s2830 = scalar_lea.vmem %s2, 64
      %v2831 = vld [vmem:[%s2830] sm:$0xff]
      %v2832 = vsel %vm506, %v2827, 0
      %v2834 = vsel %vm506, %v2829, 0
      %2836 = vmatprep.subr.mxu0 0.0
      %2837 = vmatpush1.msra.mxu0 %v2831
      %2838 = vmatprep.subr.mxu0 0.0
      %2839 = vmatpush1.msra.mxu0 0.0
      %2840 = vmatprep.subr.mxu0 0.0
      %2841 = vmatpush1.msra.mxu0 0.0
      %2842 = vmatprep.subr.mxu0 0.0
      %2843 = vmatpush1.msra.mxu0 0.0
      %2844 = vmatprep.subr.mxu0 0.0
      %2845 = vmatpush1.msra.mxu0 0.0
      %2846 = vmatprep.subr.mxu0 0.0
      %2847 = vmatpush1.msra.mxu0 0.0
      %2848 = vmatprep.subr.mxu0 0.0
      %2849 = vmatpush1.msra.mxu0 0.0
      %2850 = vmatprep.subr.mxu0 0.0
      %2851 = vmatpush1.msra.mxu0 0.0
      %2852 = vmatprep.subr.mxu0 0.0
      %2853 = vmatpush1.msra.mxu0 0.0
      %2854 = vmatprep.subr.mxu0 0.0
      %2855 = vmatpush1.msra.mxu0 0.0
      %2856 = vmatprep.subr.mxu0 0.0
      %2857 = vmatpush1.msra.mxu0 0.0
      %2858 = vmatprep.subr.mxu0 0.0
      %2859 = vmatpush1.msra.mxu0 0.0
      %2860 = vmatprep.subr.mxu0 0.0
      %2861 = vmatpush1.msra.mxu0 0.0
      %2862 = vmatprep.subr.mxu0 0.0
      %2863 = vmatpush1.msra.mxu0 0.0
      %2864 = vmatprep.subr.mxu0 0.0
      %2865 = vmatpush1.msra.mxu0 0.0
      %2866 = vmatprep.subr.mxu0 0.0
      %2867 = vmatpush1.msra.mxu0 0.0
      %2868 = vmatprep.subr.mxu0 0.0
      %2869 = vmatpush1.msra.mxu0 0.0
      %2870 = vmatprep.subr.mxu0 0.0
      %2871 = vmatpush1.msra.mxu0 0.0
      %2872 = vmatprep.subr.mxu0 0.0
      %2873 = vmatpush1.msra.mxu0 0.0
      %2874 = vmatprep.subr.mxu0 0.0
      %2875 = vmatpush1.msra.mxu0 0.0
      %2876 = vmatprep.subr.mxu0 0.0
      %2877 = vmatpush1.msra.mxu0 0.0
      %2878 = vmatprep.subr.mxu0 0.0
      %2879 = vmatpush1.msra.mxu0 0.0
      %2880 = vmatprep.subr.mxu0 0.0
      %2881 = vmatpush1.msra.mxu0 0.0
      %2882 = vmatprep.subr.mxu0 0.0
      %2883 = vmatpush1.msra.mxu0 0.0
      %2884 = vmatprep.subr.mxu0 0.0
      %2885 = vmatpush1.msra.mxu0 0.0
      %2886 = vmatprep.subr.mxu0 0.0
      %2887 = vmatpush1.msra.mxu0 0.0
      %2888 = vmatprep.subr.mxu0 0.0
      %2889 = vmatpush1.msra.mxu0 0.0
      %2890 = vmatprep.subr.mxu0 0.0
      %2891 = vmatpush1.msra.mxu0 0.0
      %2892 = vmatprep.subr.mxu0 0.0
      %2893 = vmatpush1.msra.mxu0 0.0
      %2894 = vmatprep.subr.mxu0 0.0
      %2895 = vmatpush1.msra.mxu0 0.0
      %2896 = vmatprep.subr.mxu0 0.0
      %2897 = vmatpush1.msra.mxu0 0.0
      %2898 = vmatprep.subr.mxu0 0.0
      %2899 = vmatpush1.msra.mxu0 0.0
      %2900 = vmatprep.mubr.f32.mxu0 0.0
      %2901 = vmatmul.mubr.f32.gmra.mrb[0].mxu0 %v1176
      %v2902 = vpop.f32.mrb[0].mxu0
      %v2903 = vadd.f32 0.0, %v2902
      %v2904 = vpop.f32.mrb[0].mxu0
      %2905 = vmatprep.mubr.f32.mxu0 0.0
      %2906 = vmatmul.mubr.f32.gmra.mrb[0].mxu0 %v1178
      %v2907 = vpop.f32.mrb[0].mxu0
      %v2908 = vadd.f32 0.0, %v2907
      %v2909 = vpop.f32.mrb[0].mxu0
      %2910 = vmatprep.mubr.f32.mxu0 0.0
      %2911 = vmatmul.mubr.f32.gmra.mrb[0].mxu0 %v1180
      %v2912 = vpop.f32.mrb[0].mxu0
      %v2913 = vadd.f32 0.0, %v2912
      %v2914 = vpop.f32.mrb[0].mxu0
      %2915 = vmatprep.mubr.f32.mxu0 0.0
      %2916 = vmatmul.mubr.f32.gmra.mrb[0].mxu0 %v1182
      %v2917 = vpop.f32.mrb[0].mxu0
      %v2918 = vadd.f32 0.0, %v2917
      %v2919 = vpop.f32.mrb[0].mxu0
      %2920 = vmatprep.mubr.f32.mxu0 0.0
      %2921 = vmatmul.mubr.f32.gmra.mrb[0].mxu0 %v1184
      %v2922 = vpop.f32.mrb[0].mxu0
      %v2923 = vadd.f32 0.0, %v2922
      %v2924 = vpop.f32.mrb[0].mxu0
      %2925 = vmatprep.mubr.f32.mxu0 0.0
      %2926 = vmatmul.mubr.f32.gmra.mrb[0].mxu0 %v1186
      %v2927 = vpop.f32.mrb[0].mxu0
      %v2928 = vadd.f32 0.0, %v2927
      %v2929 = vpop.f32.mrb[0].mxu0
      %2930 = vmatprep.mubr.f32.mxu0 0.0
      %2931 = vmatmul.mubr.f32.gmra.mrb[0].mxu0 %v1188
      %v2932 = vpop.f32.mrb[0].mxu0
      %v2933 = vadd.f32 0.0, %v2932
      %v2934 = vpop.f32.mrb[0].mxu0
      %2935 = vmatprep.mubr.f32.mxu0 0.0
      %2936 = vmatmul.mubr.f32.gmra.mrb[0].mxu0 %v1190
      %v2937 = vpop.f32.mrb[0].mxu0
      %v2938 = vadd.f32 0.0, %v2937
      %v2939 = vpop.f32.mrb[0].mxu0
      %2940 = vmatprep.mubr.f32.mxu0 0.0
      %2941 = vmatmul.mubr.f32.gmra.mrb[0].mxu0 %v1192
      %v2942 = vpop.f32.mrb[0].mxu0
      %v2943 = vadd.f32 0.0, %v2942
      %v2944 = vpop.f32.mrb[0].mxu0
      %2945 = vmatprep.mubr.f32.mxu0 0.0
      %2946 = vmatmul.mubr.f32.gmra.mrb[0].mxu0 %v1194
      %v2947 = vpop.f32.mrb[0].mxu0
      %v2948 = vadd.f32 0.0, %v2947
      %v2949 = vpop.f32.mrb[0].mxu0
      %2950 = vmatprep.mubr.f32.mxu0 0.0
      %2951 = vmatmul.mubr.f32.gmra.mrb[0].mxu0 %v1196
      %v2952 = vpop.f32.mrb[0].mxu0
      %v2953 = vadd.f32 0.0, %v2952
      %v2954 = vpop.f32.mrb[0].mxu0
      %2955 = vmatprep.mubr.f32.mxu0 0.0
      %2956 = vmatmul.mubr.f32.gmra.mrb[0].mxu0 %v1198
      %v2957 = vpop.f32.mrb[0].mxu0
      %v2958 = vadd.f32 0.0, %v2957
      %v2959 = vpop.f32.mrb[0].mxu0
      %2960 = vmatprep.mubr.f32.mxu0 0.0
      %2961 = vmatmul.mubr.f32.gmra.mrb[0].mxu0 %v1200
      %v2962 = vpop.f32.mrb[0].mxu0
      %v2963 = vadd.f32 0.0, %v2962
      %v2964 = vpop.f32.mrb[0].mxu0
      %2965 = vmatprep.mubr.f32.mxu0 0.0
      %2966 = vmatmul.mubr.f32.gmra.mrb[0].mxu0 %v1202
      %v2967 = vpop.f32.mrb[0].mxu0
      %v2968 = vadd.f32 0.0, %v2967
      %v2969 = vpop.f32.mrb[0].mxu0
      %2970 = vmatprep.mubr.f32.mxu0 0.0
      %2971 = vmatmul.mubr.f32.gmra.mrb[0].mxu0 %v1204
      %v2972 = vpop.f32.mrb[0].mxu0
      %v2973 = vadd.f32 0.0, %v2972
      %v2974 = vpop.f32.mrb[0].mxu0
      %2975 = vmatprep.mubr.f32.mxu0 0.0
      %2976 = vmatmul.mubr.f32.gmra.mrb[0].mxu0 %v1206
      %v2977 = vpop.f32.mrb[0].mxu0
      %v2978 = vadd.f32 0.0, %v2977
      %v2979 = vpop.f32.mrb[0].mxu0
      %2980 = vmatprep.mubr.f32.mxu0 0.0
      %2981 = vmatmul.mubr.f32.gmra.mrb[0].mxu0 %v1208
      %v2982 = vpop.f32.mrb[0].mxu0
      %v2983 = vadd.f32 0.0, %v2982
      %v2984 = vpop.f32.mrb[0].mxu0
      %2985 = vmatprep.mubr.f32.mxu0 0.0
      %2986 = vmatmul.mubr.f32.gmra.mrb[0].mxu0 %v1210
      %v2987 = vpop.f32.mrb[0].mxu0
      %v2988 = vadd.f32 0.0, %v2987
      %v2989 = vpop.f32.mrb[0].mxu0
      %2990 = vmatprep.mubr.f32.mxu0 0.0
      %2991 = vmatmul.mubr.f32.gmra.mrb[0].mxu0 %v1212
      %v2992 = vpop.f32.mrb[0].mxu0
      %v2993 = vadd.f32 0.0, %v2992
      %v2994 = vpop.f32.mrb[0].mxu0
      %2995 = vmatprep.mubr.f32.mxu0 0.0
      %2996 = vmatmul.mubr.f32.gmra.mrb[0].mxu0 %v1214
      %v2997 = vpop.f32.mrb[0].mxu0
      %v2998 = vadd.f32 0.0, %v2997
      %v2999 = vpop.f32.mrb[0].mxu0
      %3000 = vmatprep.mubr.f32.mxu0 0.0
      %3001 = vmatmul.mubr.f32.gmra.mrb[0].mxu0 %v1216
      %v3002 = vpop.f32.mrb[0].mxu0
      %v3003 = vadd.f32 0.0, %v3002
      %v3004 = vpop.f32.mrb[0].mxu0
      %3005 = vmatprep.mubr.f32.mxu0 0.0
      %3006 = vmatmul.mubr.f32.gmra.mrb[0].mxu0 %v1218
      %v3007 = vpop.f32.mrb[0].mxu0
      %v3008 = vadd.f32 0.0, %v3007
      %v3009 = vpop.f32.mrb[0].mxu0
      %3010 = vmatprep.mubr.f32.mxu0 0.0
      %3011 = vmatmul.mubr.f32.gmra.mrb[0].mxu0 %v1220
      %v3012 = vpop.f32.mrb[0].mxu0
      %v3013 = vadd.f32 0.0, %v3012
      %v3014 = vpop.f32.mrb[0].mxu0
      %3015 = vmatprep.mubr.f32.mxu0 0.0
      %3016 = vmatmul.mubr.f32.gmra.mrb[0].mxu0 %v1222
      %v3017 = vpop.f32.mrb[0].mxu0
      %v3018 = vadd.f32 0.0, %v3017
      %v3019 = vpop.f32.mrb[0].mxu0
      %3020 = vmatprep.mubr.f32.mxu0 0.0
      %3021 = vmatmul.mubr.f32.gmra.mrb[0].mxu0 %v1224
      %v3022 = vpop.f32.mrb[0].mxu0
      %v3023 = vadd.f32 0.0, %v3022
      %v3024 = vpop.f32.mrb[0].mxu0
      %3025 = vmatprep.mubr.f32.mxu0 0.0
      %3026 = vmatmul.mubr.f32.gmra.mrb[0].mxu0 %v1226
      %v3027 = vpop.f32.mrb[0].mxu0
      %v3028 = vadd.f32 0.0, %v3027
      %v3029 = vpop.f32.mrb[0].mxu0
      %3030 = vmatprep.mubr.f32.mxu0 0.0
      %3031 = vmatmul.mubr.f32.gmra.mrb[0].mxu0 %v1228
      %v3032 = vpop.f32.mrb[0].mxu0
      %v3033 = vadd.f32 0.0, %v3032
      %v3034 = vpop.f32.mrb[0].mxu0
      %3035 = vmatprep.mubr.f32.mxu0 0.0
      %3036 = vmatmul.mubr.f32.gmra.mrb[0].mxu0 %v1230
      %v3037 = vpop.f32.mrb[0].mxu0
      %v3038 = vadd.f32 0.0, %v3037
      %v3039 = vpop.f32.mrb[0].mxu0
      %3040 = vmatprep.mubr.f32.mxu0 0.0
      %3041 = vmatmul.mubr.f32.gmra.mrb[0].mxu0 %v2030
      %v3042 = vpop.f32.mrb[0].mxu0
      %v3043 = vadd.f32 0.0, %v3042
      %v3044 = vpop.f32.mrb[0].mxu0
      %3045 = vmatprep.mubr.f32.mxu0 0.0
      %3046 = vmatmul.mubr.f32.gmra.mrb[0].mxu0 %v2032
      %v3047 = vpop.f32.mrb[0].mxu0
      %v3048 = vadd.f32 0.0, %v3047
      %v3049 = vpop.f32.mrb[0].mxu0
      %3050 = vmatprep.mubr.f32.mxu0 0.0
      %3051 = vmatmul.mubr.f32.gmra.mrb[0].mxu0 %v2832
      %v3052 = vpop.f32.mrb[0].mxu0
      %v3053 = vadd.f32 0.0, %v3052
      %v3054 = vpop.f32.mrb[0].mxu0
      %3055 = vmatprep.mubr.f32.mxu0 0.0
      %3056 = vmatmul.mubr.f32.gmra.mrb[0].mxu0 %v2834
      %v3057 = vpop.f32.mrb[0].mxu0
      %v3058 = vadd.f32 0.0, %v3057
      %v3059 = vpop.f32.mrb[0].mxu0
      %3060 = vdwg.mxu0
      %v3061 = vadd.f32 %v2793, %v2903
      %v3062 = vadd.f32 %v2794, %v2908
      %v3063 = vadd.f32 %v2795, %v2913
      %v3064 = vadd.f32 %v2796, %v2918
      %v3065 = vadd.f32 %v2797, %v2923
      %v3066 = vadd.f32 %v2798, %v2928
      %v3067 = vadd.f32 %v2799, %v2933
      %v3068 = vadd.f32 %v2800, %v2938
      %v3069 = vadd.f32 %v2801, %v2943
      %v3070 = vadd.f32 %v2802, %v2948
      %v3071 = vadd.f32 %v2803, %v2953
      %v3072 = vadd.f32 %v2804, %v2958
      %v3073 = vadd.f32 %v2805, %v2963
      %v3074 = vadd.f32 %v2806, %v2968
      %v3075 = vadd.f32 %v2807, %v2973
      %v3076 = vadd.f32 %v2808, %v2978
      %v3077 = vadd.f32 %v2809, %v2983
      %v3078 = vadd.f32 %v2810, %v2988
      %v3079 = vadd.f32 %v2811, %v2993
      %v3080 = vadd.f32 %v2812, %v2998
      %v3081 = vadd.f32 %v2813, %v3003
      %v3082 = vadd.f32 %v2814, %v3008
      %v3083 = vadd.f32 %v2815, %v3013
      %v3084 = vadd.f32 %v2816, %v3018
      %v3085 = vadd.f32 %v2817, %v3023
      %v3086 = vadd.f32 %v2818, %v3028
      %v3087 = vadd.f32 %v2819, %v3033
      %v3088 = vadd.f32 %v2820, %v3038
      %v3089 = vadd.f32 %v2821, %v3043
      %v3090 = vadd.f32 %v2822, %v3048
      %v3091 = vadd.f32 %v2823, %v3053
      %v3092 = vadd.f32 %v2824, %v3058
      %v3093 = vld [vmem:[%s3] sm:$0x1]
      %v3095 = vlaneseq
      %v3096 = vshrl.u32 %v3095, 7
      %v3097 = vsub.s32 0, %v3096
      %v3098 = vrot.slane %v3093, %v3097
      %v3100 = vadd.f32 %v3061, %v3098
      %v3101 = vadd.f32 %v3062, %v3098
      %v3102 = vadd.f32 %v3063, %v3098
      %v3103 = vadd.f32 %v3064, %v3098
      %v3104 = vadd.f32 %v3065, %v3098
      %v3105 = vadd.f32 %v3066, %v3098
      %v3106 = vadd.f32 %v3067, %v3098
      %v3107 = vadd.f32 %v3068, %v3098
      %v3108 = vadd.f32 %v3069, %v3098
      %v3109 = vadd.f32 %v3070, %v3098
      %v3110 = vadd.f32 %v3071, %v3098
      %v3111 = vadd.f32 %v3072, %v3098
      %v3112 = vadd.f32 %v3073, %v3098
      %v3113 = vadd.f32 %v3074, %v3098
      %v3114 = vadd.f32 %v3075, %v3098
      %v3115 = vadd.f32 %v3076, %v3098
      %v3116 = vadd.f32 %v3077, %v3098
      %v3117 = vadd.f32 %v3078, %v3098
      %v3118 = vadd.f32 %v3079, %v3098
      %v3119 = vadd.f32 %v3080, %v3098
      %v3120 = vadd.f32 %v3081, %v3098
      %v3121 = vadd.f32 %v3082, %v3098
      %v3122 = vadd.f32 %v3083, %v3098
      %v3123 = vadd.f32 %v3084, %v3098
      %v3124 = vadd.f32 %v3085, %v3098
      %v3125 = vadd.f32 %v3086, %v3098
      %v3126 = vadd.f32 %v3087, %v3098
      %v3127 = vadd.f32 %v3088, %v3098
      %v3128 = vadd.f32 %v3089, %v3098
      %v3129 = vadd.f32 %v3090, %v3098
      %v3130 = vadd.f32 %v3091, %v3098
      %v3131 = vadd.f32 %v3092, %v3098
      %3132 = vst.msk [vmem:[%s318] sm:$0xff] %vm506, %v3100
      %3133 = vst.msk [vmem:[%s318 + $0x8] sm:$0xff] %vm506, %v3101
      %3134 = vst.msk [vmem:[%s318 + $0x10] sm:$0xff] %vm506, %v3102
      %3135 = vst.msk [vmem:[%s318 + $0x18] sm:$0xff] %vm506, %v3103
      %3136 = vst.msk [vmem:[%s318 + $0x20] sm:$0xff] %vm506, %v3104
      %3137 = vst.msk [vmem:[%s318 + $0x28] sm:$0xff] %vm506, %v3105
      %3138 = vst.msk [vmem:[%s318 + $0x30] sm:$0xff] %vm506, %v3106
      %3139 = vst.msk [vmem:[%s318 + $0x38] sm:$0xff] %vm506, %v3107
      %3140 = vst.msk [vmem:[%s318 + $0x40] sm:$0xff] %vm506, %v3108
      %3141 = vst.msk [vmem:[%s318 + $0x48] sm:$0xff] %vm506, %v3109
      %3142 = vst.msk [vmem:[%s318 + $0x50] sm:$0xff] %vm506, %v3110
      %3143 = vst.msk [vmem:[%s318 + $0x58] sm:$0xff] %vm506, %v3111
      %3144 = vst.msk [vmem:[%s318 + $0x60] sm:$0xff] %vm506, %v3112
      %3145 = vst.msk [vmem:[%s318 + $0x68] sm:$0xff] %vm506, %v3113
      %3146 = vst.msk [vmem:[%s318 + $0x70] sm:$0xff] %vm506, %v3114
      %3147 = vst.msk [vmem:[%s318 + $0x78] sm:$0xff] %vm506, %v3115
      %3148 = vst.msk [vmem:[%s318 + $0x80] sm:$0xff] %vm506, %v3116
      %3149 = vst.msk [vmem:[%s318 + $0x88] sm:$0xff] %vm506, %v3117
      %3150 = vst.msk [vmem:[%s318 + $0x90] sm:$0xff] %vm506, %v3118
      %3151 = vst.msk [vmem:[%s318 + $0x98] sm:$0xff] %vm506, %v3119
      %3152 = vst.msk [vmem:[%s318 + $0xa0] sm:$0xff] %vm506, %v3120
      %3153 = vst.msk [vmem:[%s318 + $0xa8] sm:$0xff] %vm506, %v3121
      %3154 = vst.msk [vmem:[%s318 + $0xb0] sm:$0xff] %vm506, %v3122
      %3155 = vst.msk [vmem:[%s318 + $0xb8] sm:$0xff] %vm506, %v3123
      %3156 = vst.msk [vmem:[%s318 + $0xc0] sm:$0xff] %vm506, %v3124
      %3157 = vst.msk [vmem:[%s318 + $0xc8] sm:$0xff] %vm506, %v3125
      %3158 = vst.msk [vmem:[%s318 + $0xd0] sm:$0xff] %vm506, %v3126
      %3159 = vst.msk [vmem:[%s318 + $0xd8] sm:$0xff] %vm506, %v3127
      %3160 = vst.msk [vmem:[%s318 + $0xe0] sm:$0xff] %vm506, %v3128
      %3161 = vst.msk [vmem:[%s318 + $0xe8] sm:$0xff] %vm506, %v3129
      %3162 = vst.msk [vmem:[%s318 + $0xf0] sm:$0xff] %vm506, %v3130
      %3163 = vst.msk [vmem:[%s318 + $0xf8] sm:$0xff] %vm506, %v3131
      %s3164 = smul.u32 16, %s20
      %p3165 = scmp.lt.s32.totalorder %s19, 1
      %s3166 = scalar_select %p3165, %s19, 1
      %p3167 = scmp.lt.s32.totalorder %s3164, 15
      %s3168 = scalar_select %p3167, %s3164, 15
      %s3169 = smul.addr %s3168, 2
      %s3170 = smul.addr %s3166, 32
      %s3171 = sadd.s32 %s3169, %s3170
      %s3172 = smul.addr %s3171, 8
      %s3173 = scalar_lea.vmem %s4, %s3172
      // Predicated region
      $region37: #{encoder_forward.4} parent=35 // pred_check
        %p3174 = pneg %p149
      $region38: #{encoder_forward.4} parent=35 // pred_check_branch
        %3176 = sbr.rel (%p3174) target = $region40
      $region39: #{encoder_forward.4} parent=35 // pred_region
        %s3177 = smul.u32 16, %s20
      $region40: #{encoder_forward.4} parent=35 // pred_fallthru
        _
    $region36: #{encoder_forward.4} parent=5 // pred_fallthru
      _
    %p3178 = scmp.le.s32.totalorder 2, %s10
    // Predicated region
    $region41: #{encoder_forward.4} parent=5 // pred_check
      %p3179 = pneg %p3178
    $region42: #{encoder_forward.4} parent=5 // pred_check_branch
      %3181 = sbr.rel (%p3179) target = $region44
    $region43: #{encoder_forward.4} parent=5 // pred_region
      %s3182 = ssub.s32 %s10, 2
      // Predicated region
      $region45: #{encoder_forward.4} parent=43 // pred_check
        %p3183 = pneg %p155
      $region46: #{encoder_forward.4} parent=43 // pred_check_branch
        %3185 = sbr.rel (%p3183) target = $region48
      $region47: #{encoder_forward.4} parent=43 // pred_region
        %s3186 = smul.u32 16, %s22
        %p3187 = scmp.lt.s32.totalorder %s21, 1
        %s3188 = scalar_select %p3187, %s21, 1
        %p3189 = scmp.lt.s32.totalorder %s3186, 15
        %s3190 = scalar_select %p3189, %s3186, 15
        %s3191 = smul.addr %s3190, 2
        %s3192 = smul.addr %s3188, 32
        %s3193 = sadd.s32 %s3191, %s3192
        %s3194 = smul.addr %s3193, 8
        %s3195 = scalar_lea.vmem %s4, %s3194
      $region48: #{encoder_forward.4} parent=43 // pred_fallthru
        _
    $region44: #{encoder_forward.4} parent=5 // pred_fallthru
      _
  $region6: #{encoder_forward.4} parent=0 // loop_footer
    %s14 = sadd.s32 1, %s10
  $region7: #{encoder_forward.4} parent=0 // loop_footer_branch
    %9 = sbr.rel target = $region3
  $region8: #{encoder_forward.4} parent=0 // loop_exit
    _

// kernel: encoder_forward.7
$region0: #{encoder_forward.7}
  #allocation0 [shape = 'u32[]', space=smem, size = 0x4, offset = 0x4, fixed_abs, tag = 'smem constant byte address 0x4 - core index']
  #allocation1 [shape = 'u32[144,128]{1,0:T(1,128)}', space=vmem, size = 0x12000, scoped, tag = 'internal scratch']
  %s0 = inlined_call_operand.vmem [shape: f32[2,5,5,64], index: 0, kind: input, shape index: {}, may-alias: {0,1}]
  %s1 = inlined_call_operand.vmem [shape: f32[2,5,5,64], index: 1, kind: input, shape index: {}, may-alias: {0,1}]
  %s2 = inlined_call_operand.vmem [shape: f32[4,64,32], index: 2, kind: input, shape index: {}]
  %s3 = inlined_call_operand.hbm [shape: f32[2,4,4,32], index: 3, kind: output, shape index: {}]
  %s4 = sld [smem:[#allocation0]]
  $region45: #{encoder_forward.7} parent=0
    _
  %s6 = ssub.s32 1, %s4
  %s7 = scalar_select 0, %s6, %s4
  $region1: #{encoder_forward.7} parent=0
    #allocation2 [shape = 'u8[16384]{0}', space=vmem, size = 0x4000, scoped, tag = 'output window, operand 0']
    #allocation3 [shape = 's32[2]{0}', space=sflag, size = 0x8, scoped, tag = 'scoped memory for encoder_forward.7']
    %8 = vsyncpa [#allocation3], 0
    %s9 = scalar_lea.sflag [#allocation3], 1
    %10 = vsyncpa %s9, 0
    loop: start=0, step=1, limit=4
    $region2: #{encoder_forward.7} parent=1 // loop_pre_header
      _
    $region3: #{encoder_forward.7} parent=1 // loop_header
      %s12 = sphi 0, %s16
      %p13 = scmp.ge.s32.totalorder %s12, 4
      %s19 = sphi 0, %s31
      %s20 = sphi 0, %s27
      %s21 = sphi 0, %s19
      %s22 = sphi 0, %s20
      %s23 = sphi 0, %s21
      %s24 = sphi 0, %s22
      %s36 = sphi 0, %s38
      %s39 = sphi 0, %s36
      %s40 = sphi 0, %s39
      %s56 = sphi 0, %s40
      %s68 = sphi 0, %s70
      %s71 = sphi 0, %s68
      %s72 = sphi 0, %s71
      %s88 = sphi 0, %s72
      %s92 = sphi 0, %s92
      %s94 = sphi 0, %s92
      %s95 = sphi 0, %s94
      %s109 = sphi 0, %s95
      %s117 = sphi 0, %s119
      %s120 = sphi 0, %s117
      %s121 = sphi 0, %s120
      %s137 = sphi 0, %s121
    $region4: #{encoder_forward.7} parent=1 // loop_header_branch
      %15 = sbr.rel (%p13) target = $region8
    $region5: #{encoder_forward.7} parent=1 // loop_body
      %s17 = ssub.s32 %s12, 1
      %s18 = ssub.s32 %s12, 2
      %s25 = sadd.s32 1, %s20
      %p26 = scmp.ge.s32.totalorder %s25, 1
      %s27 = scalar_select %p26, 0, %s25
      %s28 = sadd.s32 1, %s19
      %s29 = scalar_select %p26, %s28, %s19
      %p30 = scmp.ge.s32.totalorder %s29, 2
      %s31 = scalar_select %p30, 0, %s29
      %s32 = ssub.s32 %s19, %s31
      %s33 = ssub.s32 %s20, %s27
      %s34 = sor.u32 %s32, %s33
      %p35 = scmp.eq.s32.totalorder %s34, 0
      %s37 = sadd.s32 %s36, 1
      %s38 = scalar_select %p35, %s36, %s37
      %p41 = pneg %p35
      %p42 = scmp.eq.s32.totalorder %s12, 1
      %p43 = por %p41, %p42
      %p44 = scmp.ne.s32.totalorder %s36, %s39
      %p45 = scmp.eq.s32.totalorder %s12, 0
      %p46 = por %p44, %p45
      %p47 = scmp.ne.s32.totalorder %s36, %s39
      %p48 = scmp.eq.s32.totalorder %s17, 1
      %p49 = por %p47, %p48
      %p50 = scmp.ne.s32.totalorder %s39, %s40
      %p51 = scmp.eq.s32.totalorder %s17, 0
      %p52 = por %p50, %p51
      %p53 = scmp.ne.s32.totalorder %s39, %s40
      %p54 = scmp.eq.s32.totalorder %s18, 1
      %p55 = por %p53, %p54
      %p57 = scmp.ne.s32.totalorder %s40, %s56
      %p58 = scmp.eq.s32.totalorder %s18, 0
      %p59 = por %p57, %p58
      %s60 = smul.u32 %s20, 4
      %s61 = sadd.s32 %s60, 4
      %s62 = smul.u32 %s27, 4
      %s63 = sadd.s32 %s62, 4
      %s64 = ssub.s32 %s19, %s31
      %s65 = ssub.s32 %s61, %s63
      %s66 = sor.u32 %s64, %s65
      %p67 = scmp.eq.s32.totalorder %s66, 0
      %s69 = sadd.s32 %s68, 1
      %s70 = scalar_select %p67, %s68, %s69
      %p73 = pneg %p67
      %p74 = scmp.eq.s32.totalorder %s12, 1
      %p75 = por %p73, %p74
      %p76 = scmp.ne.s32.totalorder %s68, %s71
      %p77 = scmp.eq.s32.totalorder %s12, 0
      %p78 = por %p76, %p77
      %p79 = scmp.ne.s32.totalorder %s68, %s71
      %p80 = scmp.eq.s32.totalorder %s17, 1
      %p81 = por %p79, %p80
      %p82 = scmp.ne.s32.totalorder %s71, %s72
      %p83 = scmp.eq.s32.totalorder %s17, 0
      %p84 = por %p82, %p83
      %p85 = scmp.ne.s32.totalorder %s71, %s72
      %p86 = scmp.eq.s32.totalorder %s18, 1
      %p87 = por %p85, %p86
      %p89 = scmp.ne.s32.totalorder %s72, %s88
      %p90 = scmp.eq.s32.totalorder %s18, 0
      %p91 = por %p89, %p90
      %s93 = sadd.s32 %s92, 1
      %p96 = scmp.eq.s32.totalorder %s12, 1
      %p97 = scmp.ne.s32.totalorder %s92, %s94
      %p98 = scmp.eq.s32.totalorder %s12, 0
      %p99 = por %p97, %p98
      %p100 = scmp.ne.s32.totalorder %s92, %s94
      %p101 = scmp.eq.s32.totalorder %s17, 1
      %p102 = por %p100, %p101
      %p103 = scmp.ne.s32.totalorder %s94, %s95
      %p104 = scmp.eq.s32.totalorder %s17, 0
      %p105 = por %p103, %p104
      %p106 = scmp.ne.s32.totalorder %s94, %s95
      %p107 = scmp.eq.s32.totalorder %s18, 1
      %p108 = por %p106, %p107
      %p110 = scmp.ne.s32.totalorder %s95, %s109
      %p111 = scmp.eq.s32.totalorder %s18, 0
      %p112 = por %p110, %p111
      %s113 = ssub.s32 %s19, %s31
      %s114 = ssub.s32 %s20, %s27
      %s115 = sor.u32 %s113, %s114
      %p116 = scmp.eq.s32.totalorder %s115, 0
      %s118 = sadd.s32 %s117, 1
      %s119 = scalar_select %p116, %s117, %s118
      %p122 = pneg %p116
      %p123 = scmp.eq.s32.totalorder %s12, 1
      %p124 = por %p122, %p123
      %p125 = scmp.ne.s32.totalorder %s117, %s120
      %p126 = scmp.eq.s32.totalorder %s12, 0
      %p127 = por %p125, %p126
      %p128 = scmp.ne.s32.totalorder %s117, %s120
      %p129 = scmp.eq.s32.totalorder %s17, 1
      %p130 = por %p128, %p129
      %p131 = scmp.ne.s32.totalorder %s120, %s121
      %p132 = scmp.eq.s32.totalorder %s17, 0
      %p133 = por %p131, %p132
      %p134 = scmp.ne.s32.totalorder %s120, %s121
      %p135 = scmp.eq.s32.totalorder %s18, 1
      %p136 = por %p134, %p135
      %p138 = scmp.ne.s32.totalorder %s121, %s137
      %p139 = scmp.eq.s32.totalorder %s18, 0
      %p140 = por %p138, %p139
      %p141 = scmp.le.s32.totalorder 1, %s12
      %p142 = scmp.lt.s32.totalorder %s12, 3
      %p143 = pnand %p141, %p142
      %p144 = pneg %p143
      // Predicated region
      $region9: #{encoder_forward.7} parent=5 // pred_check
        _
      $region10: #{encoder_forward.7} parent=5 // pred_check_branch
        %146 = sbr.rel (%p143) target = $region12
      $region11: #{encoder_forward.7} parent=5 // pred_region
        %s147 = ssub.s32 %s12, 1
        // Predicated region
        $region13: #{encoder_forward.7} parent=11 // pred_check
          %p148 = pneg %p105
        $region14: #{encoder_forward.7} parent=11 // pred_check_branch
          %150 = sbr.rel (%p148) target = $region16
        $region15: #{encoder_forward.7} parent=11 // pred_region
          _
        $region16: #{encoder_forward.7} parent=11 // pred_fallthru
          _
      $region12: #{encoder_forward.7} parent=5 // pred_fallthru
        _
      %p151 = scmp.lt.s32.totalorder %s12, 2
      // Predicated region
      $region17: #{encoder_forward.7} parent=5 // pred_check
        %p152 = pneg %p151
      $region18: #{encoder_forward.7} parent=5 // pred_check_branch
        %154 = sbr.rel (%p152) target = $region20
      $region19: #{encoder_forward.7} parent=5 // pred_region
        // Predicated region
        $region21: #{encoder_forward.7} parent=19 // pred_check
          %p155 = pneg %p46
        $region22: #{encoder_forward.7} parent=19 // pred_check_branch
          %157 = sbr.rel (%p155) target = $region24
        $region23: #{encoder_forward.7} parent=19 // pred_region
          %s158 = smul.u32 4, %s20
          %s159 = ssub.s32 5, %s158
          %p160 = scmp.lt.s32.totalorder %s159, 4
          %s161 = scalar_select %p160, %s159, 4
          %s162 = smul.u32 128, %s161
          %p163 = scmp.lt.s32.totalorder %s19, 1
          %s164 = scalar_select %p163, %s19, 1
          %p165 = scmp.lt.s32.totalorder %s158, 4
          %s166 = scalar_select %p165, %s158, 4
          %s167 = smul.addr %s164, 5
          %s168 = sadd.s32 %s166, %s167
          %s169 = smul.addr %s168, 8
          %s170 = scalar_lea.vmem %s0, %s169
          %s171 = smul.u32 4, %s20
          %s172 = ssub.s32 5, %s171
          %p173 = scmp.lt.s32.totalorder %s172, 4
          %s174 = scalar_select %p173, %s172, 4
          %s175 = smul.u32 128, %s174
        $region24: #{encoder_forward.7} parent=19 // pred_fallthru
          _
        // Predicated region
        $region25: #{encoder_forward.7} parent=19 // pred_check
          %p176 = pneg %p78
        $region26: #{encoder_forward.7} parent=19 // pred_check_branch
          %178 = sbr.rel (%p176) target = $region28
        $region27: #{encoder_forward.7} parent=19 // pred_region
          %s179 = smul.u32 %s20, 4
          %s180 = sadd.s32 %s179, 4
          %p181 = scmp.lt.s32.totalorder %s19, 1
          %s182 = scalar_select %p181, %s19, 1
          %p183 = scmp.lt.s32.totalorder %s180, 4
          %s184 = scalar_select %p183, %s180, 4
          %s185 = smul.addr %s182, 5
          %s186 = sadd.s32 %s184, %s185
          %s187 = smul.addr %s186, 8
          %s188 = scalar_lea.vmem %s1, %s187
          %s189 = smul.u32 %s20, 4
          %s190 = sadd.s32 %s189, 4
        $region28: #{encoder_forward.7} parent=19 // pred_fallthru
          _
      $region20: #{encoder_forward.7} parent=5 // pred_fallthru
        _
      %p191 = scmp.le.s32.totalorder 1, %s12
      %p192 = scmp.lt.s32.totalorder %s12, 3
      %p193 = pnand %p191, %p192
      %p194 = pneg %p193
      // Predicated region
      $region29: #{encoder_forward.7} parent=5 // pred_check
        _
      $region30: #{encoder_forward.7} parent=5 // pred_check_branch
        %196 = sbr.rel (%p193) target = $region32
      $region31: #{encoder_forward.7} parent=5 // pred_region
        %s197 = ssub.s32 %s12, 1
        %s198 = smul.u32 4, %s22
        %s199 = ssub.s32 5, %s198
        %p200 = scmp.lt.s32.totalorder %s199, 4
        %s201 = scalar_select %p200, %s199, 4
        %s202 = smul.u32 128, %s201
        %p203 = scmp.lt.s32.totalorder %s21, 1
        %s204 = scalar_select %p203, %s21, 1
        %p205 = scmp.lt.s32.totalorder %s198, 4
        %s206 = scalar_select %p205, %s198, 4
        %s207 = smul.addr %s204, 5
        %s208 = sadd.s32 %s206, %s207
        %s209 = smul.addr %s208, 8
        %s210 = scalar_lea.vmem %s0, %s209
        %p211 = pneg %p52
        %p212 = pneg %p49
        %s213 = smul.u32 %s22, 4
        %s214 = sadd.s32 %s213, 4
        %p215 = scmp.lt.s32.totalorder %s21, 1
        %s216 = scalar_select %p215, %s21, 1
        %p217 = scmp.lt.s32.totalorder %s214, 4
        %s218 = scalar_select %p217, %s214, 4
        %s219 = smul.addr %s216, 5
        %s220 = sadd.s32 %s218, %s219
        %s221 = smul.addr %s220, 8
        %s222 = scalar_lea.vmem %s1, %s221
        %p223 = pneg %p84
        %p224 = pneg %p81
        %p225 = pneg %p105
        %p226 = pneg %p102
        %p227 = pneg %p133
        %p228 = pneg %p130
        %s229 = sand.u32 %s120, 1
        %s230 = scalar_lea.sflag [#allocation3], %s229
        %s231 = sand.u32 %s120, 1
        %s232 = smul.addr %s231, 16
        %s233 = scalar_lea.vmem [#allocation2], %s232
        %s234 = smul.u32 4, %s22
        %s235 = ssub.s32 5, %s234
        %p236 = scmp.lt.s32.totalorder %s235, 4
        %s237 = scalar_select %p236, %s235, 4
        %s238 = smul.u32 128, %s237
        %p239 = scmp.lt.s32.totalorder %s21, 1
        %s240 = scalar_select %p239, %s21, 1
        %p241 = scmp.lt.s32.totalorder %s234, 4
        %s242 = scalar_select %p241, %s234, 4
        %s243 = smul.addr %s240, 5
        %s244 = sadd.s32 %s242, %s243
        %s245 = smul.addr %s244, 8
        %s246 = scalar_lea.vmem %s0, %s245
        %s247 = smul.u32 4, %s22
        %s248 = ssub.s32 5, %s247
        %p249 = scmp.lt.s32.totalorder %s248, 4
        %s250 = scalar_select %p249, %s248, 4
        %s251 = smul.u32 128, %s250
        %s252 = smul.u32 %s22, 4
        %s253 = sadd.s32 %s252, 4
        %p254 = scmp.lt.s32.totalorder %s21, 1
        %s255 = scalar_select %p254, %s21, 1
        %p256 = scmp.lt.s32.totalorder %s253, 4
        %s257 = scalar_select %p256, %s253, 4
        %s258 = smul.addr %s255, 5
        %s259 = sadd.s32 %s257, %s258
        %s260 = smul.addr %s259, 8
        %s261 = scalar_lea.vmem %s1, %s260
        %s262 = smul.u32 %s22, 4
        %s263 = sadd.s32 %s262, 4
        %s264 = smul.u32 4, %s22
        %v265 = vld [vmem:[%s246] sm:$0x1f]
        %v266 = vld [vmem:[%s246 + $0x8] sm:$0x1f]
        %v267 = vld [vmem:[%s246 + $0x10] sm:$0x1f]
        %v268 = vld [vmem:[%s246 + $0x18] sm:$0x1f]
        %v269 = vld [vmem:[%s261] sm:$0x1f]
        %vm270 = vcmp.ge.f32.partialorder %v265, 0.0
        %vm271 = vcmp.ge.f32.partialorder %v266, 0.0
        %vm272 = vcmp.ge.f32.partialorder %v267, 0.0
        %vm273 = vcmp.ge.f32.partialorder %v268, 0.0
        %vm274 = vcmp.ge.f32.partialorder %v269, 0.0
        %v275 = vmul.f32 %v265, 0.2
        %v276 = vmul.f32 %v266, 0.2
        %v277 = vmul.f32 %v267, 0.2
        %v278 = vmul.f32 %v268, 0.2
        %v279 = vmul.f32 %v269, 0.2
        %v280 = vsel %vm270, %v265, %v275
        %v281 = vsel %vm271, %v266, %v276
        %v282 = vsel %vm272, %v267, %v277
        %v283 = vsel %vm273, %v268, %v278
        %v284 = vsel %vm274, %v269, %v279
        %v285 = vld [vmem:[%s2] sm:$0xff]
        %v286 = vld [vmem:[%s2 + $0x8] sm:$0xff]
        %v287 = vld [vmem:[%s2 + $0x10] sm:$0xff]
        %v288 = vld [vmem:[%s2 + $0x18] sm:$0xff]
        %v289 = vld [vmem:[%s2 + $0x20] sm:$0xff]
        %v290 = vld [vmem:[%s2 + $0x28] sm:$0xff]
        %v291 = vld [vmem:[%s2 + $0x30] sm:$0xff]
        %v292 = vld [vmem:[%s2 + $0x38] sm:$0xff]
        %v297 = vcombine.high %v280, %v280
        %v298 = vcombine.high %v281, %v281
        %v299 = vcombine.high %v282, %v282
        %v300 = vcombine.high %v283, %v283
        %vm301 = vcmask 1042432
        %vm302 = vcmask 1046532
        %vm303 = vmor %vm301, %vm302
        %v304 = vrot.slane %v280, 5
        %v305 = vrot.slane %v304, 4
        %v306 = vrot.slane %v297, 5
        %v307 = vsel %vm303, %v305, %v306
        %v308 = vrot.slane %v281, 5
        %v309 = vrot.slane %v308, 4
        %v310 = vrot.slane %v298, 5
        %v311 = vsel %vm303, %v309, %v310
        %v312 = vrot.slane %v282, 5
        %v313 = vrot.slane %v312, 4
        %v314 = vrot.slane %v299, 5
        %v315 = vsel %vm303, %v313, %v314
        %v316 = vrot.slane %v283, 5
        %v317 = vrot.slane %v316, 4
        %v318 = vrot.slane %v300, 5
        %v319 = vsel %vm303, %v317, %v318
        %s320 = scalar_lea.vmem %s2, 64
        %v321 = vld [vmem:[%s320] sm:$0xff]
        %v322 = vld [vmem:[%s320 + $0x8] sm:$0xff]
        %v323 = vld [vmem:[%s320 + $0x10] sm:$0xff]
        %v324 = vld [vmem:[%s320 + $0x18] sm:$0xff]
        %v325 = vld [vmem:[%s320 + $0x20] sm:$0xff]
        %v326 = vld [vmem:[%s320 + $0x28] sm:$0xff]
        %v327 = vld [vmem:[%s320 + $0x30] sm:$0xff]
        %v328 = vld [vmem:[%s320 + $0x38] sm:$0xff]
        %v329 = vcombine.low %v307, %v311
        %v330 = vcombine.low %v315, %v319
        %vm331 = vcmask 523264
        %v332 = vsel %vm331, %v329, 0
        %v334 = vsel %vm331, %v330, 0
        %336 = vmatprep.subr.mxu0 0.0
        %337 = vmatpush1.msra.mxu0 %v321
        %338 = vmatprep.subr.mxu0 0.0
        %339 = vmatpush1.msra.mxu0 %v322
        %340 = vmatprep.subr.mxu0 0.0
        %341 = vmatpush1.msra.mxu0 %v323
        %342 = vmatprep.subr.mxu0 0.0
        %343 = vmatpush1.msra.mxu0 %v324
        %344 = vmatprep.subr.mxu0 0.0
        %345 = vmatpush1.msra.mxu0 %v325
        %346 = vmatprep.subr.mxu0 0.0
        %347 = vmatpush1.msra.mxu0 %v326
        %348 = vmatprep.subr.mxu0 0.0
        %349 = vmatpush1.msra.mxu0 %v327
        %350 = vmatprep.subr.mxu0 0.0
        %351 = vmatpush1.msra.mxu0 %v328
        %352 = vmatprep.subr.mxu0 0.0
        %353 = vmatpush1.msra.mxu0 0.0
        %354 = vmatprep.subr.mxu0 0.0
        %355 = vmatpush1.msra.mxu0 0.0
        %356 = vmatprep.subr.mxu0 0.0
        %357 = vmatpush1.msra.mxu0 0.0
        %358 = vmatprep.subr.mxu0 0.0
        %359 = vmatpush1.msra.mxu0 0.0
        %360 = vmatprep.subr.mxu0 0.0
        %361 = vmatpush1.msra.mxu0 0.0
        %362 = vmatprep.subr.mxu0 0.0
        %363 = vmatpush1.msra.mxu0 0.0
        %364 = vmatprep.subr.mxu0 0.0
        %365 = vmatpush1.msra.mxu0 0.0
        %366 = vmatprep.subr.mxu0 0.0
        %367 = vmatpush1.msra.mxu0 0.0
        %368 = vmatprep.subr.mxu0 0.0
        %369 = vmatpush1.msra.mxu0 0.0
        %370 = vmatprep.subr.mxu0 0.0
        %371 = vmatpush1.msra.mxu0 0.0
        %372 = vmatprep.subr.mxu0 0.0
        %373 = vmatpush1.msra.mxu0 0.0
        %374 = vmatprep.subr.mxu0 0.0
        %375 = vmatpush1.msra.mxu0 0.0
        %376 = vmatprep.subr.mxu0 0.0
        %377 = vmatpush1.msra.mxu0 0.0
        %378 = vmatprep.subr.mxu0 0.0
        %379 = vmatpush1.msra.mxu0 0.0
        %380 = vmatprep.subr.mxu0 0.0
        %381 = vmatpush1.msra.mxu0 0.0
        %382 = vmatprep.subr.mxu0 0.0
        %383 = vmatpush1.msra.mxu0 0.0
        %384 = vmatprep.subr.mxu0 0.0
        %385 = vmatpush1.msra.mxu0 0.0
        %386 = vmatprep.subr.mxu0 0.0
        %387 = vmatpush1.msra.mxu0 0.0
        %388 = vmatprep.subr.mxu0 0.0
        %389 = vmatpush1.msra.mxu0 0.0
        %390 = vmatprep.subr.mxu0 0.0
        %391 = vmatpush1.msra.mxu0 0.0
        %392 = vmatprep.subr.mxu0 0.0
        %393 = vmatpush1.msra.mxu0 0.0
        %394 = vmatprep.subr.mxu0 0.0
        %395 = vmatpush1.msra.mxu0 0.0
        %396 = vmatprep.subr.mxu0 0.0
        %397 = vmatpush1.msra.mxu0 0.0
        %398 = vmatprep.subr.mxu0 0.0
        %399 = vmatpush1.msra.mxu0 0.0
        %400 = vmatprep.mubr.f32.mxu0 0.0
        %401 = vmatmul.mubr.f32.gmra.mrb[0].mxu0 %v332
        %v402 = vpop.f32.mrb[0].mxu0
        %v403 = vadd.f32 0.0, %v402
        %v404 = vpop.f32.mrb[0].mxu0
        %405 = vmatprep.mubr.f32.mxu0 0.0
        %406 = vmatmul.mubr.f32.gmra.mrb[0].mxu0 %v334
        %v407 = vpop.f32.mrb[0].mxu0
        %v408 = vadd.f32 0.0, %v407
        %v409 = vpop.f32.mrb[0].mxu0
        %410 = vdwg.mxu0
        %v411 = vcombine.low %v280, %v281
        %v412 = vcombine.low %v282, %v283
        %v413 = vsel %vm331, %v411, 0
        %v415 = vsel %vm331, %v412, 0
        %417 = vmatprep.subr.mxu0 0.0
        %418 = vmatpush1.msra.mxu0 %v285
        %419 = vmatprep.subr.mxu0 0.0
        %420 = vmatpush1.msra.mxu0 %v286
        %421 = vmatprep.subr.mxu0 0.0
        %422 = vmatpush1.msra.mxu0 %v287
        %423 = vmatprep.subr.mxu0 0.0
        %424 = vmatpush1.msra.mxu0 %v288
        %425 = vmatprep.subr.mxu0 0.0
        %426 = vmatpush1.msra.mxu0 %v289
        %427 = vmatprep.subr.mxu0 0.0
        %428 = vmatpush1.msra.mxu0 %v290
        %429 = vmatprep.subr.mxu0 0.0
        %430 = vmatpush1.msra.mxu0 %v291
        %431 = vmatprep.subr.mxu0 0.0
        %432 = vmatpush1.msra.mxu0 %v292
        %433 = vmatprep.subr.mxu0 0.0
        %434 = vmatpush1.msra.mxu0 0.0
        %435 = vmatprep.subr.mxu0 0.0
        %436 = vmatpush1.msra.mxu0 0.0
        %437 = vmatprep.subr.mxu0 0.0
        %438 = vmatpush1.msra.mxu0 0.0
        %439 = vmatprep.subr.mxu0 0.0
        %440 = vmatpush1.msra.mxu0 0.0
        %441 = vmatprep.subr.mxu0 0.0
        %442 = vmatpush1.msra.mxu0 0.0
        %443 = vmatprep.subr.mxu0 0.0
        %444 = vmatpush1.msra.mxu0 0.0
        %445 = vmatprep.subr.mxu0 0.0
        %446 = vmatpush1.msra.mxu0 0.0
        %447 = vmatprep.subr.mxu0 0.0
        %448 = vmatpush1.msra.mxu0 0.0
        %449 = vmatprep.subr.mxu0 0.0
        %450 = vmatpush1.msra.mxu0 0.0
        %451 = vmatprep.subr.mxu0 0.0
        %452 = vmatpush1.msra.mxu0 0.0
        %453 = vmatprep.subr.mxu0 0.0
        %454 = vmatpush1.msra.mxu0 0.0
        %455 = vmatprep.subr.mxu0 0.0
        %456 = vmatpush1.msra.mxu0 0.0
        %457 = vmatprep.subr.mxu0 0.0
        %458 = vmatpush1.msra.mxu0 0.0
        %459 = vmatprep.subr.mxu0 0.0
        %460 = vmatpush1.msra.mxu0 0.0
        %461 = vmatprep.subr.mxu0 0.0
        %462 = vmatpush1.msra.mxu0 0.0
        %463 = vmatprep.subr.mxu0 0.0
        %464 = vmatpush1.msra.mxu0 0.0
        %465 = vmatprep.subr.mxu0 0.0
        %466 = vmatpush1.msra.mxu0 0.0
        %467 = vmatprep.subr.mxu0 0.0
        %468 = vmatpush1.msra.mxu0 0.0
        %469 = vmatprep.subr.mxu0 0.0
        %470 = vmatpush1.msra.mxu0 0.0
        %471 = vmatprep.subr.mxu0 0.0
        %472 = vmatpush1.msra.mxu0 0.0
        %473 = vmatprep.subr.mxu0 0.0
        %474 = vmatpush1.msra.mxu0 0.0
        %475 = vmatprep.subr.mxu0 0.0
        %476 = vmatpush1.msra.mxu0 0.0
        %477 = vmatprep.subr.mxu0 0.0
        %478 = vmatpush1.msra.mxu0 0.0
        %479 = vmatprep.subr.mxu0 0.0
        %480 = vmatpush1.msra.mxu0 0.0
        %481 = vmatprep.mubr.f32.mxu0 0.0
        %482 = vmatmul.mubr.f32.gmra.mrb[0].mxu0 %v413
        %v483 = vpop.f32.mrb[0].mxu0
        %v484 = vadd.f32 %v403, %v483
        %v485 = vpop.f32.mrb[0].mxu0
        %486 = vmatprep.mubr.f32.mxu0 0.0
        %487 = vmatmul.mubr.f32.gmra.mrb[0].mxu0 %v415
        %v488 = vpop.f32.mrb[0].mxu0
        %v489 = vadd.f32 %v408, %v488
        %v490 = vpop.f32.mrb[0].mxu0
        %491 = vdwg.mxu0
        %s492 = scalar_lea.vmem %s2, 128
        %v493 = vld [vmem:[%s492] sm:$0xff]
        %v494 = vld [vmem:[%s492 + $0x8] sm:$0xff]
        %v495 = vld [vmem:[%s492 + $0x10] sm:$0xff]
        %v496 = vld [vmem:[%s492 + $0x18] sm:$0xff]
        %v497 = vld [vmem:[%s492 + $0x20] sm:$0xff]
        %v498 = vld [vmem:[%s492 + $0x28] sm:$0xff]
        %v499 = vld [vmem:[%s492 + $0x30] sm:$0xff]
        %v500 = vld [vmem:[%s492 + $0x38] sm:$0xff]
        %v502 = vcombine.low %v281, %v282
        %v503 = vcombine.low %v283, %v284
        %v504 = vsel %vm331, %v502, 0
        %v506 = vsel %vm331, %v503, 0
        %508 = vmatprep.subr.mxu0 0.0
        %509 = vmatpush1.msra.mxu0 %v493
        %510 = vmatprep.subr.mxu0 0.0
        %511 = vmatpush1.msra.mxu0 %v494
        %512 = vmatprep.subr.mxu0 0.0
        %513 = vmatpush1.msra.mxu0 %v495
        %514 = vmatprep.subr.mxu0 0.0
        %515 = vmatpush1.msra.mxu0 %v496
        %516 = vmatprep.subr.mxu0 0.0
        %517 = vmatpush1.msra.mxu0 %v497
        %518 = vmatprep.subr.mxu0 0.0
        %519 = vmatpush1.msra.mxu0 %v498
        %520 = vmatprep.subr.mxu0 0.0
        %521 = vmatpush1.msra.mxu0 %v499
        %522 = vmatprep.subr.mxu0 0.0
        %523 = vmatpush1.msra.mxu0 %v500
        %524 = vmatprep.subr.mxu0 0.0
        %525 = vmatpush1.msra.mxu0 0.0
        %526 = vmatprep.subr.mxu0 0.0
        %527 = vmatpush1.msra.mxu0 0.0
        %528 = vmatprep.subr.mxu0 0.0
        %529 = vmatpush1.msra.mxu0 0.0
        %530 = vmatprep.subr.mxu0 0.0
        %531 = vmatpush1.msra.mxu0 0.0
        %532 = vmatprep.subr.mxu0 0.0
        %533 = vmatpush1.msra.mxu0 0.0
        %534 = vmatprep.subr.mxu0 0.0
        %535 = vmatpush1.msra.mxu0 0.0
        %536 = vmatprep.subr.mxu0 0.0
        %537 = vmatpush1.msra.mxu0 0.0
        %538 = vmatprep.subr.mxu0 0.0
        %539 = vmatpush1.msra.mxu0 0.0
        %540 = vmatprep.subr.mxu0 0.0
        %541 = vmatpush1.msra.mxu0 0.0
        %542 = vmatprep.subr.mxu0 0.0
        %543 = vmatpush1.msra.mxu0 0.0
        %544 = vmatprep.subr.mxu0 0.0
        %545 = vmatpush1.msra.mxu0 0.0
        %546 = vmatprep.subr.mxu0 0.0
        %547 = vmatpush1.msra.mxu0 0.0
        %548 = vmatprep.subr.mxu0 0.0
        %549 = vmatpush1.msra.mxu0 0.0
        %550 = vmatprep.subr.mxu0 0.0
        %551 = vmatpush1.msra.mxu0 0.0
        %552 = vmatprep.subr.mxu0 0.0
        %553 = vmatpush1.msra.mxu0 0.0
        %554 = vmatprep.subr.mxu0 0.0
        %555 = vmatpush1.msra.mxu0 0.0
        %556 = vmatprep.subr.mxu0 0.0
        %557 = vmatpush1.msra.mxu0 0.0
        %558 = vmatprep.subr.mxu0 0.0
        %559 = vmatpush1.msra.mxu0 0.0
        %560 = vmatprep.subr.mxu0 0.0
        %561 = vmatpush1.msra.mxu0 0.0
        %562 = vmatprep.subr.mxu0 0.0
        %563 = vmatpush1.msra.mxu0 0.0
        %564 = vmatprep.subr.mxu0 0.0
        %565 = vmatpush1.msra.mxu0 0.0
        %566 = vmatprep.subr.mxu0 0.0
        %567 = vmatpush1.msra.mxu0 0.0
        %568 = vmatprep.subr.mxu0 0.0
        %569 = vmatpush1.msra.mxu0 0.0
        %570 = vmatprep.subr.mxu0 0.0
        %571 = vmatpush1.msra.mxu0 0.0
        %572 = vmatprep.mubr.f32.mxu0 0.0
        %573 = vmatmul.mubr.f32.gmra.mrb[0].mxu0 %v504
        %v574 = vpop.f32.mrb[0].mxu0
        %v575 = vadd.f32 0.0, %v574
        %v576 = vpop.f32.mrb[0].mxu0
        %577 = vmatprep.mubr.f32.mxu0 0.0
        %578 = vmatmul.mubr.f32.gmra.mrb[0].mxu0 %v506
        %v579 = vpop.f32.mrb[0].mxu0
        %v580 = vadd.f32 0.0, %v579
        %v581 = vpop.f32.mrb[0].mxu0
        %582 = vdwg.mxu0
        %v583 = vadd.f32 %v484, %v575
        %v584 = vadd.f32 %v489, %v580
        %v585 = vcombine.high %v284, %v284
        %v586 = vrot.slane %v284, 5
        %v587 = vrot.slane %v586, 4
        %v588 = vrot.slane %v585, 5
        %v589 = vsel %vm303, %v587, %v588
        %s590 = scalar_lea.vmem %s2, 192
        %v591 = vld [vmem:[%s590] sm:$0xff]
        %v592 = vld [vmem:[%s590 + $0x8] sm:$0xff]
        %v593 = vld [vmem:[%s590 + $0x10] sm:$0xff]
        %v594 = vld [vmem:[%s590 + $0x18] sm:$0xff]
        %v595 = vld [vmem:[%s590 + $0x20] sm:$0xff]
        %v596 = vld [vmem:[%s590 + $0x28] sm:$0xff]
        %v597 = vld [vmem:[%s590 + $0x30] sm:$0xff]
        %v598 = vld [vmem:[%s590 + $0x38] sm:$0xff]
        %v599 = vcombine.low %v311, %v315
        %v600 = vcombine.low %v319, %v589
        %v601 = vsel %vm331, %v599, 0
        %v603 = vsel %vm331, %v600, 0
        %605 = vmatprep.subr.mxu0 0.0
        %606 = vmatpush1.msra.mxu0 %v591
        %607 = vmatprep.subr.mxu0 0.0
        %608 = vmatpush1.msra.mxu0 %v592
        %609 = vmatprep.subr.mxu0 0.0
        %610 = vmatpush1.msra.mxu0 %v593
        %611 = vmatprep.subr.mxu0 0.0
        %612 = vmatpush1.msra.mxu0 %v594
        %613 = vmatprep.subr.mxu0 0.0
        %614 = vmatpush1.msra.mxu0 %v595
        %615 = vmatprep.subr.mxu0 0.0
        %616 = vmatpush1.msra.mxu0 %v596
        %617 = vmatprep.subr.mxu0 0.0
        %618 = vmatpush1.msra.mxu0 %v597
        %619 = vmatprep.subr.mxu0 0.0
        %620 = vmatpush1.msra.mxu0 %v598
        %621 = vmatprep.subr.mxu0 0.0
        %622 = vmatpush1.msra.mxu0 0.0
        %623 = vmatprep.subr.mxu0 0.0
        %624 = vmatpush1.msra.mxu0 0.0
        %625 = vmatprep.subr.mxu0 0.0
        %626 = vmatpush1.msra.mxu0 0.0
        %627 = vmatprep.subr.mxu0 0.0
        %628 = vmatpush1.msra.mxu0 0.0
        %629 = vmatprep.subr.mxu0 0.0
        %630 = vmatpush1.msra.mxu0 0.0
        %631 = vmatprep.subr.mxu0 0.0
        %632 = vmatpush1.msra.mxu0 0.0
        %633 = vmatprep.subr.mxu0 0.0
        %634 = vmatpush1.msra.mxu0 0.0
        %635 = vmatprep.subr.mxu0 0.0
        %636 = vmatpush1.msra.mxu0 0.0
        %637 = vmatprep.subr.mxu0 0.0
        %638 = vmatpush1.msra.mxu0 0.0
        %639 = vmatprep.subr.mxu0 0.0
        %640 = vmatpush1.msra.mxu0 0.0
        %641 = vmatprep.subr.mxu0 0.0
        %642 = vmatpush1.msra.mxu0 0.0
        %643 = vmatprep.subr.mxu0 0.0
        %644 = vmatpush1.msra.mxu0 0.0
        %645 = vmatprep.subr.mxu0 0.0
        %646 = vmatpush1.msra.mxu0 0.0
        %647 = vmatprep.subr.mxu0 0.0
        %648 = vmatpush1.msra.mxu0 0.0
        %649 = vmatprep.subr.mxu0 0.0
        %650 = vmatpush1.msra.mxu0 0.0
        %651 = vmatprep.subr.mxu0 0.0
        %652 = vmatpush1.msra.mxu0 0.0
        %653 = vmatprep.subr.mxu0 0.0
        %654 = vmatpush1.msra.mxu0 0.0
        %655 = vmatprep.subr.mxu0 0.0
        %656 = vmatpush1.msra.mxu0 0.0
        %657 = vmatprep.subr.mxu0 0.0
        %658 = vmatpush1.msra.mxu0 0.0
        %659 = vmatprep.subr.mxu0 0.0
        %660 = vmatpush1.msra.mxu0 0.0
        %661 = vmatprep.subr.mxu0 0.0
        %662 = vmatpush1.msra.mxu0 0.0
        %663 = vmatprep.subr.mxu0 0.0
        %664 = vmatpush1.msra.mxu0 0.0
        %665 = vmatprep.subr.mxu0 0.0
        %666 = vmatpush1.msra.mxu0 0.0
        %667 = vmatprep.subr.mxu0 0.0
        %668 = vmatpush1.msra.mxu0 0.0
        %669 = vmatprep.mubr.f32.mxu0 0.0
        %670 = vmatmul.mubr.f32.gmra.mrb[0].mxu0 %v601
        %v671 = vpop.f32.mrb[0].mxu0
        %v672 = vadd.f32 0.0, %v671
        %v673 = vpop.f32.mrb[0].mxu0
        %674 = vmatprep.mubr.f32.mxu0 0.0
        %675 = vmatmul.mubr.f32.gmra.mrb[0].mxu0 %v603
        %v676 = vpop.f32.mrb[0].mxu0
        %v677 = vadd.f32 0.0, %v676
        %v678 = vpop.f32.mrb[0].mxu0
        %679 = vdwg.mxu0
        %v680 = vadd.f32 %v583, %v672
        %v681 = vadd.f32 %v584, %v677
        %v684 = vcombine.high %v680, %v680
        %v685 = vcombine.high %v681, %v681
        %vm688 = vcmask 257024
        %689 = vst.msk [vmem:[%s233] sm:$0xf] %vm688, %v680
        %690 = vst.msk [vmem:[%s233 + $0x4] sm:$0xf] %vm688, %v684
        %691 = vst.msk [vmem:[%s233 + $0x8] sm:$0xf] %vm688, %v681
        %692 = vst.msk [vmem:[%s233 + $0xc] sm:$0xf] %vm688, %v685
        %s693 = sand.u32 %s120, 1
        %s694 = scalar_lea.sflag [#allocation3], %s693
        %s695 = sand.u32 %s120, 1
        %s696 = smul.addr %s695, 16
        %s697 = scalar_lea.vmem [#allocation2], %s696
        // Predicated region
        $region33: #{encoder_forward.7} parent=31 // pred_check
          %p698 = pneg %p130
        $region34: #{encoder_forward.7} parent=31 // pred_check_branch
          %700 = sbr.rel (%p698) target = $region36
        $region35: #{encoder_forward.7} parent=31 // pred_region
          %s701 = smul.u32 4, %s22
          %s703 = ssub.s32 256, 256
          %704 = vsyncadd %s694, %s703
          %s705 = smul.addr %s21, 4
          %s706 = sadd.s32 %s701, %s705
          %s707 = smul.addr %s706, 64
          %s708 = scalar_lea.hbm %s3, %s707
          %s709 = sshll.u32 %s697, 4
          %s710 = int_to_ptr.vmem [resolvable:$true] %s709
          %715 = dma.vmem_to_hbm [thread:$0]  %s710, 256, %s708, %s694, 64, 64, 4
        $region36: #{encoder_forward.7} parent=31 // pred_fallthru
          _
      $region32: #{encoder_forward.7} parent=5 // pred_fallthru
        _
      %p716 = scmp.le.s32.totalorder 2, %s12
      // Predicated region
      $region37: #{encoder_forward.7} parent=5 // pred_check
        %p717 = pneg %p716
      $region38: #{encoder_forward.7} parent=5 // pred_check_branch
        %719 = sbr.rel (%p717) target = $region40
      $region39: #{encoder_forward.7} parent=5 // pred_region
        %s720 = ssub.s32 %s12, 2
        // Predicated region
        $region41: #{encoder_forward.7} parent=39 // pred_check
          %p721 = pneg %p136
        $region42: #{encoder_forward.7} parent=39 // pred_check_branch
          %723 = sbr.rel (%p721) target = $region44
        $region43: #{encoder_forward.7} parent=39 // pred_region
          %s724 = sand.u32 %s121, 1
          %s725 = scalar_lea.sflag [#allocation3], %s724
          %s726 = sand.u32 %s121, 1
          %s727 = smul.addr %s726, 16
          %s728 = scalar_lea.vmem [#allocation2], %s727
          %729 = dma.done %s725, 256
        $region44: #{encoder_forward.7} parent=39 // pred_fallthru
          _
      $region40: #{encoder_forward.7} parent=5 // pred_fallthru
        _
    $region6: #{encoder_forward.7} parent=1 // loop_footer
      %s16 = sadd.s32 1, %s12
    $region7: #{encoder_forward.7} parent=1 // loop_footer_branch
      %11 = sbr.rel target = $region3
    $region8: #{encoder_forward.7} parent=1 // loop_exit
      _
    %730 = vsyncpa [#allocation3], 1
    %s731 = scalar_lea.sflag [#allocation3], 1
    %732 = vsyncpa %s731, 1

</llo_original>
